<compile_context>
chip_gen: v7x
topology: tpu7x:2x2x1
jax: 0.10.0
libtpu: 0.0.40
codegen_flags: <defaults>
</compile_context>

<pallas_src>
import functools

import jax
import jax.numpy as jnp
from jax.experimental import pallas as pl
from jax.experimental.pallas import tpu as pltpu


H_LANE = 128  # lane-dense padded feature width (multiple of 128)


def _round_up(x, m):
    return ((x + m - 1) // m) * m


def _pad_to(a, shape):
    pads = [(0, t - s) for s, t in zip(a.shape, shape)]
    return jnp.pad(a, pads)


def _ritz_kernel(x_ref, w1s_ref, b1s_ref, w2s_ref, b2s_ref, wo_ref, bo_ref, o_ref,
                 *, num_blocks, in_lanes):
    """One batch tile of the full RitzModel forward.

    x_ref:   (tb, in_lanes)  raw input, zero-padded only to `in_lanes` (<= 8ish)
    w1s_ref: (NB, H, H)      stacked fc1 weights (zero-padded, stored (in, out))
    b1s_ref: (NB, 1, H)      stacked fc1 biases
    w2s_ref: (NB, H, H)      stacked fc2 weights
    b2s_ref: (NB, 1, H)      stacked fc2 biases
    wo_ref:  (H, O)          fc_out weight (zero-padded)
    bo_ref:  (1, O)          fc_out bias
    o_ref:   (tb, 1)         model output column (no padded writeback)
    """
    h_pad = w1s_ref.shape[-1]
    w_dtype = w1s_ref.dtype

    def mx(v):
        # Cast activations to the weight dtype only at the MXU boundary
        # (f32 path: no-op; bf16 path: bf16 x bf16 -> f32 accumulate).
        return v if v.dtype == w_dtype else v.astype(w_dtype)

    # Lane-embed the narrow input to the 128-wide working width:
    #   h = [x | 0 ... 0]  (pad lanes are exactly 0 -> residual/fc_out invariant).
    # Built from iotas (no in-kernel pad/concat, no dense constant), applied with
    # one tiny matmul on the otherwise-idle MXU.
    row = jax.lax.broadcasted_iota(jnp.int32, (in_lanes, h_pad), 0)
    col = jax.lax.broadcasted_iota(jnp.int32, (in_lanes, h_pad), 1)
    emb = jnp.where(row == col, 1.0, 0.0).astype(jnp.float32)
    x = x_ref[...].astype(jnp.float32)
    h = jnp.dot(x, emb, preferred_element_type=jnp.float32)  # (tb, h_pad)

    # Static unroll over blocks: weights stay resident in VMEM across all blocks.
    for b in range(num_blocks):
        retain = h  # residual (pad lanes stay exactly 0 -> matches F.pad semantics)
        h1 = jnp.tanh(
            jnp.dot(mx(h), w1s_ref[b], preferred_element_type=jnp.float32)
            + b1s_ref[b].astype(jnp.float32)
        )
        h2 = jnp.tanh(
            jnp.dot(mx(h1), w2s_ref[b], preferred_element_type=jnp.float32)
            + b2s_ref[b].astype(jnp.float32)
        )
        h = h2 + retain

    out = (
        jnp.dot(mx(h), wo_ref[...], preferred_element_type=jnp.float32)
        + bo_ref[...].astype(jnp.float32)
    )
    # Only column 0 is the model output -> narrow (tb, 1) writeback.
    o_ref[...] = out[:, :1].astype(o_ref.dtype)


def pack_ritz_params(block_params, wo, bo, *, hidden_pad=H_LANE, out_pad=H_LANE,
                     dtype=jnp.float32):
    """Zero-pad & stack the per-block parameters to lane-dense shapes.

    block_params: list of (w1 (in,hid), b1 (hid,), w2 (hid,hid), b2 (hid,)),
                  weights stored transposed vs. torch (so the kernel does x @ W).
    wo: (hid, 1), bo: (1,) or (1, 1).
    dtype: jnp.float32 (default) or jnp.bfloat16 (recommended on v6e/v7x after
           validating tolerance) — f32 accumulation is kept either way.
    """
    w1s, b1s, w2s, b2s = [], [], [], []
    for (w1, b1, w2, b2) in block_params:
        w1s.append(_pad_to(w1.astype(dtype), (hidden_pad, hidden_pad)))
        b1s.append(_pad_to(b1.reshape(1, -1).astype(dtype), (1, hidden_pad)))
        w2s.append(_pad_to(w2.astype(dtype), (hidden_pad, hidden_pad)))
        b2s.append(_pad_to(b2.reshape(1, -1).astype(dtype), (1, hidden_pad)))
    return (
        jnp.stack(w1s), jnp.stack(b1s), jnp.stack(w2s), jnp.stack(b2s),
        _pad_to(wo.astype(dtype), (hidden_pad, out_pad)),
        _pad_to(bo.reshape(1, -1).astype(dtype), (1, out_pad)),
    )


def ritz_forward(x, packed, *, block_b=None, interpret=False):
    """x: (B, input_dim) -> (B, 1), matching RitzModel.forward."""
    w1s, b1s, w2s, b2s, wo, bo = packed
    nb, h_pad, _ = w1s.shape
    out_pad = wo.shape[1]
    B, in_dim = x.shape

    # Narrow input lane width: only round up to 8 sublane-friendly lanes.
    in_lanes = max(8, _round_up(in_dim, 8))
    assert in_lanes <= h_pad, "input_dim must fit inside the padded hidden width"

    # Batch tile: big tiles amortize the ~0.35us/grid-step overhead; clamp to the
    # (8-rounded) batch so tiny batches are never inflated, and auto-pick >=2
    # tiles when possible so the "parallel" axis shards across both TCs on v7x.
    B8 = _round_up(B, 8)
    if block_b is None:
        tb = max(8, min(1024, (B8 // 2) // 8 * 8))
    else:
        tb = max(8, _round_up(block_b, 8))
    tb = min(tb, B8)                      # tiny-batch guard
    B_pad = _round_up(B, tb)
    grid = (B_pad // tb,)

    # Only tiny padding of the input: batch rows to B_pad, features to in_lanes.
    x_p = jnp.pad(x, ((0, B_pad - B), (0, in_lanes - in_dim)))

    # Right-sized VMEM request (weights + tiles + generous activation bound),
    # clamped well below v7x's 64 MiB physical per-TC VMEM.
    weight_bytes = int(
        (w1s.size + b1s.size + w2s.size + b2s.size + wo.size + bo.size)
        * w1s.dtype.itemsize
    )
    act_bytes = 12 * tb * h_pad * 4
    io_bytes = 4 * tb * (in_lanes + 1) * 4
    vmem_limit = int(min(32 << 20,
                         max(8 << 20, 2 * weight_bytes + act_bytes + io_bytes + (2 << 20))))

    def call(single_buffer_weights):
        def wspec(shape, imap):
            # Constant-index weight/bias operands: single-buffer them (their block
            # never changes, so double buffering is pure VMEM waste).
            if single_buffer_weights:
                return pl.BlockSpec(shape, imap, pipeline_mode=pl.Buffered(1))
            return pl.BlockSpec(shape, imap)

        return pl.pallas_call(
            functools.partial(_ritz_kernel, num_blocks=nb, in_lanes=in_lanes),
            out_shape=jax.ShapeDtypeStruct((B_pad, 1), x.dtype),
            grid_spec=pltpu.PrefetchScalarGridSpec(
                num_scalar_prefetch=0,
                grid=grid,
                in_specs=[
                    pl.BlockSpec((tb, in_lanes), lambda i: (i, 0)),      # x tile (narrow)
                    wspec((nb, h_pad, h_pad), lambda i: (0, 0, 0)),       # w1 stack
                    wspec((nb, 1, h_pad), lambda i: (0, 0, 0)),           # b1 stack
                    wspec((nb, h_pad, h_pad), lambda i: (0, 0, 0)),       # w2 stack
                    wspec((nb, 1, h_pad), lambda i: (0, 0, 0)),           # b2 stack
                    wspec((h_pad, out_pad), lambda i: (0, 0)),            # fc_out W
                    wspec((1, out_pad), lambda i: (0, 0)),                # fc_out b
                ],
                out_specs=pl.BlockSpec((tb, 1), lambda i: (i, 0)),        # narrow output
            ),
            compiler_params=pltpu.CompilerParams(
                dimension_semantics=("parallel",),   # batch tiles shard across TCs (v7x)
                vmem_limit_bytes=vmem_limit,
            ),
            interpret=interpret,
        )(x_p, w1s, b1s, w2s, b2s, wo, bo)

    try:
        out = call(single_buffer_weights=True)
    except Exception:
        # pl.Buffered(1) not supported by this JAX/backend combination; fall back
        # to the default double-buffered (still constant-index, DMA'd once) path.
        out = call(single_buffer_weights=False)

    return out[:B]


def ritz_reference(x, block_params, wo, bo):
    """Pure-JAX reference matching the PyTorch RitzModel forward."""
    h = x
    for (w1, b1, w2, b2) in block_params:
        in_size, hidden = w1.shape
        retain = jnp.pad(h, ((0, 0), (0, hidden - in_size))) if in_size < hidden else h
        h1 = jnp.tanh(h @ w1 + b1.reshape(1, -1))
        h2 = jnp.tanh(h1 @ w2 + b2.reshape(1, -1))
        h = h2 + retain
    return h @ wo + bo.reshape(1, -1)


if __name__ == "__main__":
    # RitzModel defaults: input_dim=2, num_blocks=4, hidden_size=10.
    batch, input_dim, num_blocks, hidden = 16, 2, 4, 10

    key = jax.random.PRNGKey(0)
    keys = jax.random.split(key, 2 + 4 * num_blocks + 2)
    kx, kx2, krest = keys[0], keys[1], keys[2:]

    x = jax.random.normal(kx, (batch, input_dim), dtype=jnp.float32)

    # Deterministic params (weights ~ N(0, 0.1) as in the torch init; stored (in, out)).
    block_params = []
    ki = 0
    for b in range(num_blocks):
        in_size = input_dim if b == 0 else hidden
        w1 = jax.random.normal(krest[ki + 0], (in_size, hidden), jnp.float32) * 0.1
        b1 = jax.random.normal(krest[ki + 1], (hidden,), jnp.float32) * 0.1
        w2 = jax.random.normal(krest[ki + 2], (hidden, hidden), jnp.float32) * 0.1
        b2 = jax.random.normal(krest[ki + 3], (hidden,), jnp.float32) * 0.1
        block_params.append((w1, b1, w2, b2))
        ki += 4
    wo = jax.random.normal(krest[ki + 0], (hidden, 1), jnp.float32) * 0.1
    bo = jax.random.normal(krest[ki + 1], (1,), jnp.float32) * 0.1

    # --- f32 path (default; tight tolerance) -------------------------------
    packed_f32 = pack_ritz_params(block_params, wo, bo)

    out = ritz_forward(x, packed_f32)               # auto tiling: 2 tiles of 8 rows
    out = jax.block_until_ready(out)
    ref = ritz_reference(x, block_params, wo, bo)
    assert out.shape == (batch, 1), out.shape
    assert jnp.allclose(out, ref, atol=1e-4, rtol=1e-4), "f32 mismatch vs reference"

    # Ragged batch (non multiple of the tile) exercises the pad/discard path.
    x2 = jax.random.normal(kx2, (20, input_dim), dtype=jnp.float32)
    out2 = jax.block_until_ready(ritz_forward(x2, packed_f32))
    ref2 = ritz_reference(x2, block_params, wo, bo)
    assert out2.shape == (20, 1), out2.shape
    assert jnp.allclose(out2, ref2, atol=1e-4, rtol=1e-4), "ragged mismatch vs reference"

    # --- bf16 weight path (v6e/v7x MXU); loose tolerance smoke test --------
    packed_bf16 = pack_ritz_params(block_params, wo, bo, dtype=jnp.bfloat16)
    out_bf16 = jax.block_until_ready(ritz_forward(x, packed_bf16))
    assert out_bf16.shape == (batch, 1), out_bf16.shape
    assert jnp.allclose(out_bf16, ref, atol=5e-2, rtol=5e-2), "bf16 mismatch vs reference"

    print("KERNEL_OK")
</pallas_src>

<mosaic_0001>
module attributes {stable_mosaic.version = 11 : i64} {
  func.func @_ritz_kernel(%arg0: i32, %arg1: memref<8x8xf32, #tpu.memory_space<vmem>>, %arg2: memref<4x128x128xf32, #tpu.memory_space<vmem>>, %arg3: memref<4x1x128xf32, #tpu.memory_space<vmem>>, %arg4: memref<4x128x128xf32, #tpu.memory_space<vmem>>, %arg5: memref<4x1x128xf32, #tpu.memory_space<vmem>>, %arg6: memref<128x128xf32, #tpu.memory_space<vmem>>, %arg7: memref<1x128xf32, #tpu.memory_space<vmem>>, %arg8: memref<8x1xf32, #tpu.memory_space<vmem>>) attributes {dimension_semantics = [#tpu.dimension_semantics<parallel>], iteration_bounds = array<i64: 2>, scalar_prefetch = 0 : i64, scratch_operands = 0 : i64, tpu.core_type = #tpu.core_type<tc>, window_params = [{transform_indices = @transform_0, window_bounds = array<i64: 8, 8>}, {pipeline_mode = #tpu.pipeline_mode<synchronous>, transform_indices = @transform_1, window_bounds = array<i64: 4, 128, 128>}, {pipeline_mode = #tpu.pipeline_mode<synchronous>, transform_indices = @transform_2, window_bounds = array<i64: 4, 1, 128>}, {pipeline_mode = #tpu.pipeline_mode<synchronous>, transform_indices = @transform_3, window_bounds = array<i64: 4, 128, 128>}, {pipeline_mode = #tpu.pipeline_mode<synchronous>, transform_indices = @transform_4, window_bounds = array<i64: 4, 1, 128>}, {pipeline_mode = #tpu.pipeline_mode<synchronous>, transform_indices = @transform_5, window_bounds = array<i64: 128, 128>}, {pipeline_mode = #tpu.pipeline_mode<synchronous>, transform_indices = @transform_6, window_bounds = array<i64: 1, 128>}, {transform_indices = @transform_7, window_bounds = array<i64: 8, 1>}]} {
    %0 = tpu.iota {dimensions = array<i32: 0>} : vector<8x128xi32>
    %1 = tpu.iota {dimensions = array<i32: 1>} : vector<8x128xi32>
    %2 = arith.cmpi eq, %0, %1 : vector<8x128xi32>
    %cst = arith.constant 1.000000e+00 : f32
    %cst_0 = arith.constant 0.000000e+00 : f32
    %3 = vector.broadcast %cst : f32 to vector<8x128xf32>
    %4 = vector.broadcast %cst_0 : f32 to vector<8x128xf32>
    %5 = arith.select %2, %3, %4 : vector<8x128xi1>, vector<8x128xf32>
    %c0 = arith.constant 0 : index
    %c0_1 = arith.constant 0 : index
    %6 = vector.load %arg1[%c0, %c0_1] : memref<8x8xf32, #tpu.memory_space<vmem>>, vector<8x8xf32>
    %cst_2 = arith.constant dense<0.000000e+00> : vector<8x128xf32>
    %7 = tpu.matmul %6, %5, %cst_2 {dimension_numbers = #tpu.dot_dimension_numbers<[1], [0], [0], [1], [0, 0, 1, 1], [], []>} : vector<8x8xf32>, vector<8x128xf32>, vector<8x128xf32> -> vector<8x128xf32>
    %c0_3 = arith.constant 0 : index
    %c0_4 = arith.constant 0 : index
    %c0_5 = arith.constant 0 : index
    %8 = vector.load %arg2[%c0_3, %c0_4, %c0_5] : memref<4x128x128xf32, #tpu.memory_space<vmem>>, vector<1x128x128xf32>
    %9 = vector.shape_cast %8 : vector<1x128x128xf32> to vector<128x128xf32>
    %cst_6 = arith.constant dense<0.000000e+00> : vector<8x128xf32>
    %10 = tpu.matmul %7, %9, %cst_6 {dimension_numbers = #tpu.dot_dimension_numbers<[1], [0], [0], [1], [0, 0, 1, 1], [], []>} : vector<8x128xf32>, vector<128x128xf32>, vector<8x128xf32> -> vector<8x128xf32>
    %c0_7 = arith.constant 0 : index
    %c0_8 = arith.constant 0 : index
    %c0_9 = arith.constant 0 : index
    %11 = vector.load %arg3[%c0_7, %c0_8, %c0_9] : memref<4x1x128xf32, #tpu.memory_space<vmem>>, vector<1x1x128xf32>
    %12 = vector.shape_cast %11 : vector<1x1x128xf32> to vector<1x128xf32>
    %13 = vector.broadcast %12 : vector<1x128xf32> to vector<8x128xf32>
    %14 = arith.addf %10, %13 : vector<8x128xf32>
    %15 = math.tanh %14 : vector<8x128xf32>
    %c0_10 = arith.constant 0 : index
    %c0_11 = arith.constant 0 : index
    %c0_12 = arith.constant 0 : index
    %16 = vector.load %arg4[%c0_10, %c0_11, %c0_12] : memref<4x128x128xf32, #tpu.memory_space<vmem>>, vector<1x128x128xf32>
    %17 = vector.shape_cast %16 : vector<1x128x128xf32> to vector<128x128xf32>
    %cst_13 = arith.constant dense<0.000000e+00> : vector<8x128xf32>
    %18 = tpu.matmul %15, %17, %cst_13 {dimension_numbers = #tpu.dot_dimension_numbers<[1], [0], [0], [1], [0, 0, 1, 1], [], []>} : vector<8x128xf32>, vector<128x128xf32>, vector<8x128xf32> -> vector<8x128xf32>
    %c0_14 = arith.constant 0 : index
    %c0_15 = arith.constant 0 : index
    %c0_16 = arith.constant 0 : index
    %19 = vector.load %arg5[%c0_14, %c0_15, %c0_16] : memref<4x1x128xf32, #tpu.memory_space<vmem>>, vector<1x1x128xf32>
    %20 = vector.shape_cast %19 : vector<1x1x128xf32> to vector<1x128xf32>
    %21 = vector.broadcast %20 : vector<1x128xf32> to vector<8x128xf32>
    %22 = arith.addf %18, %21 : vector<8x128xf32>
    %23 = math.tanh %22 : vector<8x128xf32>
    %24 = arith.addf %23, %7 : vector<8x128xf32>
    %c1 = arith.constant 1 : index
    %c0_17 = arith.constant 0 : index
    %c0_18 = arith.constant 0 : index
    %25 = vector.load %arg2[%c1, %c0_17, %c0_18] : memref<4x128x128xf32, #tpu.memory_space<vmem>>, vector<1x128x128xf32>
    %26 = vector.shape_cast %25 : vector<1x128x128xf32> to vector<128x128xf32>
    %cst_19 = arith.constant dense<0.000000e+00> : vector<8x128xf32>
    %27 = tpu.matmul %24, %26, %cst_19 {dimension_numbers = #tpu.dot_dimension_numbers<[1], [0], [0], [1], [0, 0, 1, 1], [], []>} : vector<8x128xf32>, vector<128x128xf32>, vector<8x128xf32> -> vector<8x128xf32>
    %c1_20 = arith.constant 1 : index
    %c0_21 = arith.constant 0 : index
    %c0_22 = arith.constant 0 : index
    %28 = vector.load %arg3[%c1_20, %c0_21, %c0_22] : memref<4x1x128xf32, #tpu.memory_space<vmem>>, vector<1x1x128xf32>
    %29 = vector.shape_cast %28 : vector<1x1x128xf32> to vector<1x128xf32>
    %30 = vector.broadcast %29 : vector<1x128xf32> to vector<8x128xf32>
    %31 = arith.addf %27, %30 : vector<8x128xf32>
    %32 = math.tanh %31 : vector<8x128xf32>
    %c1_23 = arith.constant 1 : index
    %c0_24 = arith.constant 0 : index
    %c0_25 = arith.constant 0 : index
    %33 = vector.load %arg4[%c1_23, %c0_24, %c0_25] : memref<4x128x128xf32, #tpu.memory_space<vmem>>, vector<1x128x128xf32>
    %34 = vector.shape_cast %33 : vector<1x128x128xf32> to vector<128x128xf32>
    %cst_26 = arith.constant dense<0.000000e+00> : vector<8x128xf32>
    %35 = tpu.matmul %32, %34, %cst_26 {dimension_numbers = #tpu.dot_dimension_numbers<[1], [0], [0], [1], [0, 0, 1, 1], [], []>} : vector<8x128xf32>, vector<128x128xf32>, vector<8x128xf32> -> vector<8x128xf32>
    %c1_27 = arith.constant 1 : index
    %c0_28 = arith.constant 0 : index
    %c0_29 = arith.constant 0 : index
    %36 = vector.load %arg5[%c1_27, %c0_28, %c0_29] : memref<4x1x128xf32, #tpu.memory_space<vmem>>, vector<1x1x128xf32>
    %37 = vector.shape_cast %36 : vector<1x1x128xf32> to vector<1x128xf32>
    %38 = vector.broadcast %37 : vector<1x128xf32> to vector<8x128xf32>
    %39 = arith.addf %35, %38 : vector<8x128xf32>
    %40 = math.tanh %39 : vector<8x128xf32>
    %41 = arith.addf %40, %24 : vector<8x128xf32>
    %c2 = arith.constant 2 : index
    %c0_30 = arith.constant 0 : index
    %c0_31 = arith.constant 0 : index
    %42 = vector.load %arg2[%c2, %c0_30, %c0_31] : memref<4x128x128xf32, #tpu.memory_space<vmem>>, vector<1x128x128xf32>
    %43 = vector.shape_cast %42 : vector<1x128x128xf32> to vector<128x128xf32>
    %cst_32 = arith.constant dense<0.000000e+00> : vector<8x128xf32>
    %44 = tpu.matmul %41, %43, %cst_32 {dimension_numbers = #tpu.dot_dimension_numbers<[1], [0], [0], [1], [0, 0, 1, 1], [], []>} : vector<8x128xf32>, vector<128x128xf32>, vector<8x128xf32> -> vector<8x128xf32>
    %c2_33 = arith.constant 2 : index
    %c0_34 = arith.constant 0 : index
    %c0_35 = arith.constant 0 : index
    %45 = vector.load %arg3[%c2_33, %c0_34, %c0_35] : memref<4x1x128xf32, #tpu.memory_space<vmem>>, vector<1x1x128xf32>
    %46 = vector.shape_cast %45 : vector<1x1x128xf32> to vector<1x128xf32>
    %47 = vector.broadcast %46 : vector<1x128xf32> to vector<8x128xf32>
    %48 = arith.addf %44, %47 : vector<8x128xf32>
    %49 = math.tanh %48 : vector<8x128xf32>
    %c2_36 = arith.constant 2 : index
    %c0_37 = arith.constant 0 : index
    %c0_38 = arith.constant 0 : index
    %50 = vector.load %arg4[%c2_36, %c0_37, %c0_38] : memref<4x128x128xf32, #tpu.memory_space<vmem>>, vector<1x128x128xf32>
    %51 = vector.shape_cast %50 : vector<1x128x128xf32> to vector<128x128xf32>
    %cst_39 = arith.constant dense<0.000000e+00> : vector<8x128xf32>
    %52 = tpu.matmul %49, %51, %cst_39 {dimension_numbers = #tpu.dot_dimension_numbers<[1], [0], [0], [1], [0, 0, 1, 1], [], []>} : vector<8x128xf32>, vector<128x128xf32>, vector<8x128xf32> -> vector<8x128xf32>
    %c2_40 = arith.constant 2 : index
    %c0_41 = arith.constant 0 : index
    %c0_42 = arith.constant 0 : index
    %53 = vector.load %arg5[%c2_40, %c0_41, %c0_42] : memref<4x1x128xf32, #tpu.memory_space<vmem>>, vector<1x1x128xf32>
    %54 = vector.shape_cast %53 : vector<1x1x128xf32> to vector<1x128xf32>
    %55 = vector.broadcast %54 : vector<1x128xf32> to vector<8x128xf32>
    %56 = arith.addf %52, %55 : vector<8x128xf32>
    %57 = math.tanh %56 : vector<8x128xf32>
    %58 = arith.addf %57, %41 : vector<8x128xf32>
    %c3 = arith.constant 3 : index
    %c0_43 = arith.constant 0 : index
    %c0_44 = arith.constant 0 : index
    %59 = vector.load %arg2[%c3, %c0_43, %c0_44] : memref<4x128x128xf32, #tpu.memory_space<vmem>>, vector<1x128x128xf32>
    %60 = vector.shape_cast %59 : vector<1x128x128xf32> to vector<128x128xf32>
    %cst_45 = arith.constant dense<0.000000e+00> : vector<8x128xf32>
    %61 = tpu.matmul %58, %60, %cst_45 {dimension_numbers = #tpu.dot_dimension_numbers<[1], [0], [0], [1], [0, 0, 1, 1], [], []>} : vector<8x128xf32>, vector<128x128xf32>, vector<8x128xf32> -> vector<8x128xf32>
    %c3_46 = arith.constant 3 : index
    %c0_47 = arith.constant 0 : index
    %c0_48 = arith.constant 0 : index
    %62 = vector.load %arg3[%c3_46, %c0_47, %c0_48] : memref<4x1x128xf32, #tpu.memory_space<vmem>>, vector<1x1x128xf32>
    %63 = vector.shape_cast %62 : vector<1x1x128xf32> to vector<1x128xf32>
    %64 = vector.broadcast %63 : vector<1x128xf32> to vector<8x128xf32>
    %65 = arith.addf %61, %64 : vector<8x128xf32>
    %66 = math.tanh %65 : vector<8x128xf32>
    %c3_49 = arith.constant 3 : index
    %c0_50 = arith.constant 0 : index
    %c0_51 = arith.constant 0 : index
    %67 = vector.load %arg4[%c3_49, %c0_50, %c0_51] : memref<4x128x128xf32, #tpu.memory_space<vmem>>, vector<1x128x128xf32>
    %68 = vector.shape_cast %67 : vector<1x128x128xf32> to vector<128x128xf32>
    %cst_52 = arith.constant dense<0.000000e+00> : vector<8x128xf32>
    %69 = tpu.matmul %66, %68, %cst_52 {dimension_numbers = #tpu.dot_dimension_numbers<[1], [0], [0], [1], [0, 0, 1, 1], [], []>} : vector<8x128xf32>, vector<128x128xf32>, vector<8x128xf32> -> vector<8x128xf32>
    %c3_53 = arith.constant 3 : index
    %c0_54 = arith.constant 0 : index
    %c0_55 = arith.constant 0 : index
    %70 = vector.load %arg5[%c3_53, %c0_54, %c0_55] : memref<4x1x128xf32, #tpu.memory_space<vmem>>, vector<1x1x128xf32>
    %71 = vector.shape_cast %70 : vector<1x1x128xf32> to vector<1x128xf32>
    %72 = vector.broadcast %71 : vector<1x128xf32> to vector<8x128xf32>
    %73 = arith.addf %69, %72 : vector<8x128xf32>
    %74 = math.tanh %73 : vector<8x128xf32>
    %75 = arith.addf %74, %58 : vector<8x128xf32>
    %c0_56 = arith.constant 0 : index
    %c0_57 = arith.constant 0 : index
    %76 = vector.load %arg6[%c0_56, %c0_57] : memref<128x128xf32, #tpu.memory_space<vmem>>, vector<128x128xf32>
    %cst_58 = arith.constant dense<0.000000e+00> : vector<8x128xf32>
    %77 = tpu.matmul %75, %76, %cst_58 {dimension_numbers = #tpu.dot_dimension_numbers<[1], [0], [0], [1], [0, 0, 1, 1], [], []>} : vector<8x128xf32>, vector<128x128xf32>, vector<8x128xf32> -> vector<8x128xf32>
    %c0_59 = arith.constant 0 : index
    %c0_60 = arith.constant 0 : index
    %78 = vector.load %arg7[%c0_59, %c0_60] : memref<1x128xf32, #tpu.memory_space<vmem>>, vector<1x128xf32>
    %79 = vector.broadcast %78 : vector<1x128xf32> to vector<8x128xf32>
    %80 = arith.addf %77, %79 : vector<8x128xf32>
    %81 = vector.extract_strided_slice %80 {offsets = [0, 0], sizes = [8, 1], strides = [1, 1]} : vector<8x128xf32> to vector<8x1xf32>
    %c0_61 = arith.constant 0 : index
    %c0_62 = arith.constant 0 : index
    %82 = vector.load %arg8[%c0_61, %c0_62] : memref<8x1xf32, #tpu.memory_space<vmem>>, vector<8x1xf32>
    tpu.vector_store %arg8[%c0_61, %c0_62], %81 {strides = array<i32>} : memref<8x1xf32, #tpu.memory_space<vmem>>, vector<8x1xf32>,
    return
  }
  func.func @transform_0(%arg0: i32) -> (i32, i32) {
    %c0_i32 = arith.constant 0 : i32
    %c0_i32_0 = arith.constant 0 : i32
    return %arg0, %c0_i32 : i32, i32
  }
  func.func @transform_1(%arg0: i32) -> (i32, i32, i32) {
    %c0_i32 = arith.constant 0 : i32
    %c0_i32_0 = arith.constant 0 : i32
    %c0_i32_1 = arith.constant 0 : i32
    %c0_i32_2 = arith.constant 0 : i32
    return %c0_i32, %c0_i32_0, %c0_i32_1 : i32, i32, i32
  }
  func.func @transform_2(%arg0: i32) -> (i32, i32, i32) {
    %c0_i32 = arith.constant 0 : i32
    %c0_i32_0 = arith.constant 0 : i32
    %c0_i32_1 = arith.constant 0 : i32
    %c0_i32_2 = arith.constant 0 : i32
    return %c0_i32, %c0_i32_0, %c0_i32_1 : i32, i32, i32
  }
  func.func @transform_3(%arg0: i32) -> (i32, i32, i32) {
    %c0_i32 = arith.constant 0 : i32
    %c0_i32_0 = arith.constant 0 : i32
    %c0_i32_1 = arith.constant 0 : i32
    %c0_i32_2 = arith.constant 0 : i32
    return %c0_i32, %c0_i32_0, %c0_i32_1 : i32, i32, i32
  }
  func.func @transform_4(%arg0: i32) -> (i32, i32, i32) {
    %c0_i32 = arith.constant 0 : i32
    %c0_i32_0 = arith.constant 0 : i32
    %c0_i32_1 = arith.constant 0 : i32
    %c0_i32_2 = arith.constant 0 : i32
    return %c0_i32, %c0_i32_0, %c0_i32_1 : i32, i32, i32
  }
  func.func @transform_5(%arg0: i32) -> (i32, i32) {
    %c0_i32 = arith.constant 0 : i32
    %c0_i32_0 = arith.constant 0 : i32
    %c0_i32_1 = arith.constant 0 : i32
    return %c0_i32, %c0_i32_0 : i32, i32
  }
  func.func @transform_6(%arg0: i32) -> (i32, i32) {
    %c0_i32 = arith.constant 0 : i32
    %c0_i32_0 = arith.constant 0 : i32
    %c0_i32_1 = arith.constant 0 : i32
    return %c0_i32, %c0_i32_0 : i32, i32
  }
  func.func @transform_7(%arg0: i32) -> (i32, i32) {
    %c0_i32 = arith.constant 0 : i32
    %c0_i32_0 = arith.constant 0 : i32
    return %arg0, %c0_i32 : i32, i32
  }
}

module attributes {stable_mosaic.version = 11 : i64} {
  func.func @_ritz_kernel(%arg0: i32, %arg1: memref<8x8xf32, #tpu.memory_space<vmem>>, %arg2: memref<4x128x128xf32, #tpu.memory_space<vmem>>, %arg3: memref<4x1x128xf32, #tpu.memory_space<vmem>>, %arg4: memref<4x128x128xf32, #tpu.memory_space<vmem>>, %arg5: memref<4x1x128xf32, #tpu.memory_space<vmem>>, %arg6: memref<128x128xf32, #tpu.memory_space<vmem>>, %arg7: memref<1x128xf32, #tpu.memory_space<vmem>>, %arg8: memref<8x1xf32, #tpu.memory_space<vmem>>) attributes {dimension_semantics = [#tpu.dimension_semantics<parallel>], iteration_bounds = array<i64: 2>, scalar_prefetch = 0 : i64, scratch_operands = 0 : i64, tpu.core_type = #tpu.core_type<tc>, window_params = [{transform_indices = @transform_0, window_bounds = array<i64: 8, 8>}, {pipeline_mode = #tpu.pipeline_mode<synchronous>, transform_indices = @transform_1, window_bounds = array<i64: 4, 128, 128>}, {pipeline_mode = #tpu.pipeline_mode<synchronous>, transform_indices = @transform_2, window_bounds = array<i64: 4, 1, 128>}, {pipeline_mode = #tpu.pipeline_mode<synchronous>, transform_indices = @transform_3, window_bounds = array<i64: 4, 128, 128>}, {pipeline_mode = #tpu.pipeline_mode<synchronous>, transform_indices = @transform_4, window_bounds = array<i64: 4, 1, 128>}, {pipeline_mode = #tpu.pipeline_mode<synchronous>, transform_indices = @transform_5, window_bounds = array<i64: 128, 128>}, {pipeline_mode = #tpu.pipeline_mode<synchronous>, transform_indices = @transform_6, window_bounds = array<i64: 1, 128>}, {transform_indices = @transform_7, window_bounds = array<i64: 8, 1>}]} {
    %0 = tpu.iota {dimensions = array<i32: 0>} : vector<8x128xi32>
    %1 = tpu.iota {dimensions = array<i32: 1>} : vector<8x128xi32>
    %2 = arith.cmpi eq, %0, %1 : vector<8x128xi32>
    %cst = arith.constant 1.000000e+00 : f32
    %cst_0 = arith.constant 0.000000e+00 : f32
    %3 = vector.broadcast %cst : f32 to vector<8x128xf32>
    %4 = vector.broadcast %cst_0 : f32 to vector<8x128xf32>
    %5 = arith.select %2, %3, %4 : vector<8x128xi1>, vector<8x128xf32>
    %c0 = arith.constant 0 : index
    %c0_1 = arith.constant 0 : index
    %6 = vector.load %arg1[%c0, %c0_1] : memref<8x8xf32, #tpu.memory_space<vmem>>, vector<8x8xf32>
    %cst_2 = arith.constant dense<0.000000e+00> : vector<8x128xf32>
    %7 = tpu.matmul %6, %5, %cst_2 {dimension_numbers = #tpu.dot_dimension_numbers<[1], [0], [0], [1], [0, 0, 1, 1], [], []>} : vector<8x8xf32>, vector<8x128xf32>, vector<8x128xf32> -> vector<8x128xf32>
    %c0_3 = arith.constant 0 : index
    %c0_4 = arith.constant 0 : index
    %c0_5 = arith.constant 0 : index
    %8 = vector.load %arg2[%c0_3, %c0_4, %c0_5] : memref<4x128x128xf32, #tpu.memory_space<vmem>>, vector<1x128x128xf32>
    %9 = vector.shape_cast %8 : vector<1x128x128xf32> to vector<128x128xf32>
    %cst_6 = arith.constant dense<0.000000e+00> : vector<8x128xf32>
    %10 = tpu.matmul %7, %9, %cst_6 {dimension_numbers = #tpu.dot_dimension_numbers<[1], [0], [0], [1], [0, 0, 1, 1], [], []>} : vector<8x128xf32>, vector<128x128xf32>, vector<8x128xf32> -> vector<8x128xf32>
    %c0_7 = arith.constant 0 : index
    %c0_8 = arith.constant 0 : index
    %c0_9 = arith.constant 0 : index
    %11 = vector.load %arg3[%c0_7, %c0_8, %c0_9] : memref<4x1x128xf32, #tpu.memory_space<vmem>>, vector<1x1x128xf32>
    %12 = vector.shape_cast %11 : vector<1x1x128xf32> to vector<1x128xf32>
    %13 = vector.broadcast %12 : vector<1x128xf32> to vector<8x128xf32>
    %14 = arith.addf %10, %13 : vector<8x128xf32>
    %15 = math.tanh %14 : vector<8x128xf32>
    %c0_10 = arith.constant 0 : index
    %c0_11 = arith.constant 0 : index
    %c0_12 = arith.constant 0 : index
    %16 = vector.load %arg4[%c0_10, %c0_11, %c0_12] : memref<4x128x128xf32, #tpu.memory_space<vmem>>, vector<1x128x128xf32>
    %17 = vector.shape_cast %16 : vector<1x128x128xf32> to vector<128x128xf32>
    %cst_13 = arith.constant dense<0.000000e+00> : vector<8x128xf32>
    %18 = tpu.matmul %15, %17, %cst_13 {dimension_numbers = #tpu.dot_dimension_numbers<[1], [0], [0], [1], [0, 0, 1, 1], [], []>} : vector<8x128xf32>, vector<128x128xf32>, vector<8x128xf32> -> vector<8x128xf32>
    %c0_14 = arith.constant 0 : index
    %c0_15 = arith.constant 0 : index
    %c0_16 = arith.constant 0 : index
    %19 = vector.load %arg5[%c0_14, %c0_15, %c0_16] : memref<4x1x128xf32, #tpu.memory_space<vmem>>, vector<1x1x128xf32>
    %20 = vector.shape_cast %19 : vector<1x1x128xf32> to vector<1x128xf32>
    %21 = vector.broadcast %20 : vector<1x128xf32> to vector<8x128xf32>
    %22 = arith.addf %18, %21 : vector<8x128xf32>
    %23 = math.tanh %22 : vector<8x128xf32>
    %24 = arith.addf %23, %7 : vector<8x128xf32>
    %c1 = arith.constant 1 : index
    %c0_17 = arith.constant 0 : index
    %c0_18 = arith.constant 0 : index
    %25 = vector.load %arg2[%c1, %c0_17, %c0_18] : memref<4x128x128xf32, #tpu.memory_space<vmem>>, vector<1x128x128xf32>
    %26 = vector.shape_cast %25 : vector<1x128x128xf32> to vector<128x128xf32>
    %cst_19 = arith.constant dense<0.000000e+00> : vector<8x128xf32>
    %27 = tpu.matmul %24, %26, %cst_19 {dimension_numbers = #tpu.dot_dimension_numbers<[1], [0], [0], [1], [0, 0, 1, 1], [], []>} : vector<8x128xf32>, vector<128x128xf32>, vector<8x128xf32> -> vector<8x128xf32>
    %c1_20 = arith.constant 1 : index
    %c0_21 = arith.constant 0 : index
    %c0_22 = arith.constant 0 : index
    %28 = vector.load %arg3[%c1_20, %c0_21, %c0_22] : memref<4x1x128xf32, #tpu.memory_space<vmem>>, vector<1x1x128xf32>
    %29 = vector.shape_cast %28 : vector<1x1x128xf32> to vector<1x128xf32>
    %30 = vector.broadcast %29 : vector<1x128xf32> to vector<8x128xf32>
    %31 = arith.addf %27, %30 : vector<8x128xf32>
    %32 = math.tanh %31 : vector<8x128xf32>
    %c1_23 = arith.constant 1 : index
    %c0_24 = arith.constant 0 : index
    %c0_25 = arith.constant 0 : index
    %33 = vector.load %arg4[%c1_23, %c0_24, %c0_25] : memref<4x128x128xf32, #tpu.memory_space<vmem>>, vector<1x128x128xf32>
    %34 = vector.shape_cast %33 : vector<1x128x128xf32> to vector<128x128xf32>
    %cst_26 = arith.constant dense<0.000000e+00> : vector<8x128xf32>
    %35 = tpu.matmul %32, %34, %cst_26 {dimension_numbers = #tpu.dot_dimension_numbers<[1], [0], [0], [1], [0, 0, 1, 1], [], []>} : vector<8x128xf32>, vector<128x128xf32>, vector<8x128xf32> -> vector<8x128xf32>
    %c1_27 = arith.constant 1 : index
    %c0_28 = arith.constant 0 : index
    %c0_29 = arith.constant 0 : index
    %36 = vector.load %arg5[%c1_27, %c0_28, %c0_29] : memref<4x1x128xf32, #tpu.memory_space<vmem>>, vector<1x1x128xf32>
    %37 = vector.shape_cast %36 : vector<1x1x128xf32> to vector<1x128xf32>
    %38 = vector.broadcast %37 : vector<1x128xf32> to vector<8x128xf32>
    %39 = arith.addf %35, %38 : vector<8x128xf32>
    %40 = math.tanh %39 : vector<8x128xf32>
    %41 = arith.addf %40, %24 : vector<8x128xf32>
    %c2 = arith.constant 2 : index
    %c0_30 = arith.constant 0 : index
    %c0_31 = arith.constant 0 : index
    %42 = vector.load %arg2[%c2, %c0_30, %c0_31] : memref<4x128x128xf32, #tpu.memory_space<vmem>>, vector<1x128x128xf32>
    %43 = vector.shape_cast %42 : vector<1x128x128xf32> to vector<128x128xf32>
    %cst_32 = arith.constant dense<0.000000e+00> : vector<8x128xf32>
    %44 = tpu.matmul %41, %43, %cst_32 {dimension_numbers = #tpu.dot_dimension_numbers<[1], [0], [0], [1], [0, 0, 1, 1], [], []>} : vector<8x128xf32>, vector<128x128xf32>, vector<8x128xf32> -> vector<8x128xf32>
    %c2_33 = arith.constant 2 : index
    %c0_34 = arith.constant 0 : index
    %c0_35 = arith.constant 0 : index
    %45 = vector.load %arg3[%c2_33, %c0_34, %c0_35] : memref<4x1x128xf32, #tpu.memory_space<vmem>>, vector<1x1x128xf32>
    %46 = vector.shape_cast %45 : vector<1x1x128xf32> to vector<1x128xf32>
    %47 = vector.broadcast %46 : vector<1x128xf32> to vector<8x128xf32>
    %48 = arith.addf %44, %47 : vector<8x128xf32>
    %49 = math.tanh %48 : vector<8x128xf32>
    %c2_36 = arith.constant 2 : index
    %c0_37 = arith.constant 0 : index
    %c0_38 = arith.constant 0 : index
    %50 = vector.load %arg4[%c2_36, %c0_37, %c0_38] : memref<4x128x128xf32, #tpu.memory_space<vmem>>, vector<1x128x128xf32>
    %51 = vector.shape_cast %50 : vector<1x128x128xf32> to vector<128x128xf32>
    %cst_39 = arith.constant dense<0.000000e+00> : vector<8x128xf32>
    %52 = tpu.matmul %49, %51, %cst_39 {dimension_numbers = #tpu.dot_dimension_numbers<[1], [0], [0], [1], [0, 0, 1, 1], [], []>} : vector<8x128xf32>, vector<128x128xf32>, vector<8x128xf32> -> vector<8x128xf32>
    %c2_40 = arith.constant 2 : index
    %c0_41 = arith.constant 0 : index
    %c0_42 = arith.constant 0 : index
    %53 = vector.load %arg5[%c2_40, %c0_41, %c0_42] : memref<4x1x128xf32, #tpu.memory_space<vmem>>, vector<1x1x128xf32>
    %54 = vector.shape_cast %53 : vector<1x1x128xf32> to vector<1x128xf32>
    %55 = vector.broadcast %54 : vector<1x128xf32> to vector<8x128xf32>
    %56 = arith.addf %52, %55 : vector<8x128xf32>
    %57 = math.tanh %56 : vector<8x128xf32>
    %58 = arith.addf %57, %41 : vector<8x128xf32>
    %c3 = arith.constant 3 : index
    %c0_43 = arith.constant 0 : index
    %c0_44 = arith.constant 0 : index
    %59 = vector.load %arg2[%c3, %c0_43, %c0_44] : memref<4x128x128xf32, #tpu.memory_space<vmem>>, vector<1x128x128xf32>
    %60 = vector.shape_cast %59 : vector<1x128x128xf32> to vector<128x128xf32>
    %cst_45 = arith.constant dense<0.000000e+00> : vector<8x128xf32>
    %61 = tpu.matmul %58, %60, %cst_45 {dimension_numbers = #tpu.dot_dimension_numbers<[1], [0], [0], [1], [0, 0, 1, 1], [], []>} : vector<8x128xf32>, vector<128x128xf32>, vector<8x128xf32> -> vector<8x128xf32>
    %c3_46 = arith.constant 3 : index
    %c0_47 = arith.constant 0 : index
    %c0_48 = arith.constant 0 : index
    %62 = vector.load %arg3[%c3_46, %c0_47, %c0_48] : memref<4x1x128xf32, #tpu.memory_space<vmem>>, vector<1x1x128xf32>
    %63 = vector.shape_cast %62 : vector<1x1x128xf32> to vector<1x128xf32>
    %64 = vector.broadcast %63 : vector<1x128xf32> to vector<8x128xf32>
    %65 = arith.addf %61, %64 : vector<8x128xf32>
    %66 = math.tanh %65 : vector<8x128xf32>
    %c3_49 = arith.constant 3 : index
    %c0_50 = arith.constant 0 : index
    %c0_51 = arith.constant 0 : index
    %67 = vector.load %arg4[%c3_49, %c0_50, %c0_51] : memref<4x128x128xf32, #tpu.memory_space<vmem>>, vector<1x128x128xf32>
    %68 = vector.shape_cast %67 : vector<1x128x128xf32> to vector<128x128xf32>
    %cst_52 = arith.constant dense<0.000000e+00> : vector<8x128xf32>
    %69 = tpu.matmul %66, %68, %cst_52 {dimension_numbers = #tpu.dot_dimension_numbers<[1], [0], [0], [1], [0, 0, 1, 1], [], []>} : vector<8x128xf32>, vector<128x128xf32>, vector<8x128xf32> -> vector<8x128xf32>
    %c3_53 = arith.constant 3 : index
    %c0_54 = arith.constant 0 : index
    %c0_55 = arith.constant 0 : index
    %70 = vector.load %arg5[%c3_53, %c0_54, %c0_55] : memref<4x1x128xf32, #tpu.memory_space<vmem>>, vector<1x1x128xf32>
    %71 = vector.shape_cast %70 : vector<1x1x128xf32> to vector<1x128xf32>
    %72 = vector.broadcast %71 : vector<1x128xf32> to vector<8x128xf32>
    %73 = arith.addf %69, %72 : vector<8x128xf32>
    %74 = math.tanh %73 : vector<8x128xf32>
    %75 = arith.addf %74, %58 : vector<8x128xf32>
    %c0_56 = arith.constant 0 : index
    %c0_57 = arith.constant 0 : index
    %76 = vector.load %arg6[%c0_56, %c0_57] : memref<128x128xf32, #tpu.memory_space<vmem>>, vector<128x128xf32>
    %cst_58 = arith.constant dense<0.000000e+00> : vector<8x128xf32>
    %77 = tpu.matmul %75, %76, %cst_58 {dimension_numbers = #tpu.dot_dimension_numbers<[1], [0], [0], [1], [0, 0, 1, 1], [], []>} : vector<8x128xf32>, vector<128x128xf32>, vector<8x128xf32> -> vector<8x128xf32>
    %c0_59 = arith.constant 0 : index
    %c0_60 = arith.constant 0 : index
    %78 = vector.load %arg7[%c0_59, %c0_60] : memref<1x128xf32, #tpu.memory_space<vmem>>, vector<1x128xf32>
    %79 = vector.broadcast %78 : vector<1x128xf32> to vector<8x128xf32>
    %80 = arith.addf %77, %79 : vector<8x128xf32>
    %81 = vector.extract_strided_slice %80 {offsets = [0, 0], sizes = [8, 1], strides = [1, 1]} : vector<8x128xf32> to vector<8x1xf32>
    %c0_61 = arith.constant 0 : index
    %c0_62 = arith.constant 0 : index
    %82 = vector.load %arg8[%c0_61, %c0_62] : memref<8x1xf32, #tpu.memory_space<vmem>>, vector<8x1xf32>
    tpu.vector_store %arg8[%c0_61, %c0_62], %81 {strides = array<i32>} : memref<8x1xf32, #tpu.memory_space<vmem>>, vector<8x1xf32>,
    return
  }
  func.func @transform_0(%arg0: i32) -> (i32, i32) {
    %c0_i32 = arith.constant 0 : i32
    %c0_i32_0 = arith.constant 0 : i32
    return %arg0, %c0_i32 : i32, i32
  }
  func.func @transform_1(%arg0: i32) -> (i32, i32, i32) {
    %c0_i32 = arith.constant 0 : i32
    %c0_i32_0 = arith.constant 0 : i32
    %c0_i32_1 = arith.constant 0 : i32
    %c0_i32_2 = arith.constant 0 : i32
    return %c0_i32, %c0_i32_0, %c0_i32_1 : i32, i32, i32
  }
  func.func @transform_2(%arg0: i32) -> (i32, i32, i32) {
    %c0_i32 = arith.constant 0 : i32
    %c0_i32_0 = arith.constant 0 : i32
    %c0_i32_1 = arith.constant 0 : i32
    %c0_i32_2 = arith.constant 0 : i32
    return %c0_i32, %c0_i32_0, %c0_i32_1 : i32, i32, i32
  }
  func.func @transform_3(%arg0: i32) -> (i32, i32, i32) {
    %c0_i32 = arith.constant 0 : i32
    %c0_i32_0 = arith.constant 0 : i32
    %c0_i32_1 = arith.constant 0 : i32
    %c0_i32_2 = arith.constant 0 : i32
    return %c0_i32, %c0_i32_0, %c0_i32_1 : i32, i32, i32
  }
  func.func @transform_4(%arg0: i32) -> (i32, i32, i32) {
    %c0_i32 = arith.constant 0 : i32
    %c0_i32_0 = arith.constant 0 : i32
    %c0_i32_1 = arith.constant 0 : i32
    %c0_i32_2 = arith.constant 0 : i32
    return %c0_i32, %c0_i32_0, %c0_i32_1 : i32, i32, i32
  }
  func.func @transform_5(%arg0: i32) -> (i32, i32) {
    %c0_i32 = arith.constant 0 : i32
    %c0_i32_0 = arith.constant 0 : i32
    %c0_i32_1 = arith.constant 0 : i32
    return %c0_i32, %c0_i32_0 : i32, i32
  }
  func.func @transform_6(%arg0: i32) -> (i32, i32) {
    %c0_i32 = arith.constant 0 : i32
    %c0_i32_0 = arith.constant 0 : i32
    %c0_i32_1 = arith.constant 0 : i32
    return %c0_i32, %c0_i32_0 : i32, i32
  }
  func.func @transform_7(%arg0: i32) -> (i32, i32) {
    %c0_i32 = arith.constant 0 : i32
    %c0_i32_0 = arith.constant 0 : i32
    return %arg0, %c0_i32 : i32, i32
  }
}

</mosaic_0001>

<llo_original>
// kernel: tpu_custom_call.1
$region0: #{tpu_custom_call.1}
  #allocation0 [shape = 'u32[]', space=smem, size = 0x4, offset = 0x4, fixed_abs, tag = 'smem constant byte address 0x4 - core index']
  #allocation1 [shape = 'u32[144,128]{1,0:T(1,128)}', space=vmem, size = 0x12000, scoped, tag = 'internal scratch']
  %s0 = inlined_call_operand.vmem [shape: f32[16,8], index: 0, kind: input, shape index: {}]
  %s1 = inlined_call_operand.hbm [shape: f32[4,128,128], index: 1, kind: input, shape index: {}]
  %s2 = inlined_call_operand.vmem [shape: f32[4,1,128], index: 2, kind: input, shape index: {}]
  %s3 = inlined_call_operand.hbm [shape: f32[4,128,128], index: 3, kind: input, shape index: {}]
  %s4 = inlined_call_operand.vmem [shape: f32[4,1,128], index: 4, kind: input, shape index: {}]
  %s5 = inlined_call_operand.hbm [shape: f32[128,128], index: 5, kind: input, shape index: {}]
  %s6 = inlined_call_operand.vmem [shape: f32[1,128], index: 6, kind: input, shape index: {}]
  %s7 = inlined_call_operand.vmem [shape: f32[16,1], index: 7, kind: output, shape index: {}]
  %s8 = sld [smem:[#allocation0]]
  $region73: #{tpu_custom_call.1} parent=0
    _
  %s10 = ssub.s32 1, %s8
  %s11 = scalar_select 0, %s10, %s8
  $region1: #{tpu_custom_call.1} parent=0
    #allocation2 [shape = 'u8[262144]{0}', space=vmem, size = 0x40000, scoped, tag = 'input window, operand 1, single buffered']
    #allocation3 [shape = 's32[2]{0}', space=sflag, size = 0x8, scoped, tag = 'scoped memory for tpu_custom_call.1']
    #allocation4 [shape = 'u8[262144]{0}', space=vmem, size = 0x40000, scoped, tag = 'input window, operand 3, single buffered']
    #allocation5 [shape = 's32[1]{0}', space=sflag, size = 0x4, scoped, tag = 'scoped memory for tpu_custom_call.1']
    #allocation6 [shape = 'u8[65536]{0}', space=vmem, size = 0x10000, scoped, tag = 'input window, operand 5, single buffered']
    %12 = vsyncpa [#allocation3], 0
    %13 = vsyncpa [#allocation5], 0
    loop: start=0, step=1, limit=4
    $region2: #{tpu_custom_call.1} parent=1 // loop_pre_header
      _
    $region3: #{tpu_custom_call.1} parent=1 // loop_header
      %s15 = sphi 0, %s19
      %p16 = scmp.ge.s32.totalorder %s15, 4
      %s25 = sphi 0, %s27
      %s28 = sphi 0, %s25
      %s29 = sphi 0, %s28
      %s45 = sphi 0, %s29
      %s49 = sphi 0, %s49
      %s51 = sphi 0, %s49
      %s52 = sphi 0, %s51
      %s66 = sphi 0, %s52
      %s70 = sphi 0, %s70
      %s72 = sphi 0, %s70
      %s73 = sphi 0, %s72
      %s87 = sphi 0, %s73
      %s91 = sphi 0, %s91
      %s93 = sphi 0, %s91
      %s94 = sphi 0, %s93
      %s108 = sphi 0, %s94
      %s112 = sphi 0, %s112
      %s114 = sphi 0, %s112
      %s115 = sphi 0, %s114
      %s129 = sphi 0, %s115
      %s133 = sphi 0, %s133
      %s135 = sphi 0, %s133
      %s136 = sphi 0, %s135
      %s150 = sphi 0, %s136
      %s154 = sphi 0, %s154
      %s156 = sphi 0, %s154
      %s157 = sphi 0, %s156
      %s171 = sphi 0, %s157
      %s177 = sphi 0, %s179
      %s180 = sphi 0, %s177
      %s181 = sphi 0, %s180
      %s197 = sphi 0, %s181
    $region4: #{tpu_custom_call.1} parent=1 // loop_header_branch
      %18 = sbr.rel (%p16) target = $region8
    $region5: #{tpu_custom_call.1} parent=1 // loop_body
      %s20 = ssub.s32 %s15, 1
      %s21 = ssub.s32 %s15, 2
      %s22 = sadd.s32 %s15, 1
      %s23 = ssub.s32 %s15, %s22
      %p24 = scmp.eq.s32.totalorder %s23, 0
      %s26 = sadd.s32 %s25, 1
      %s27 = scalar_select %p24, %s25, %s26
      %p30 = pneg %p24
      %p31 = scmp.eq.s32.totalorder %s15, 1
      %p32 = por %p30, %p31
      %p33 = scmp.ne.s32.totalorder %s25, %s28
      %p34 = scmp.eq.s32.totalorder %s15, 0
      %p35 = por %p33, %p34
      %p36 = scmp.ne.s32.totalorder %s25, %s28
      %p37 = scmp.eq.s32.totalorder %s20, 1
      %p38 = por %p36, %p37
      %p39 = scmp.ne.s32.totalorder %s28, %s29
      %p40 = scmp.eq.s32.totalorder %s20, 0
      %p41 = por %p39, %p40
      %p42 = scmp.ne.s32.totalorder %s28, %s29
      %p43 = scmp.eq.s32.totalorder %s21, 1
      %p44 = por %p42, %p43
      %p46 = scmp.ne.s32.totalorder %s29, %s45
      %p47 = scmp.eq.s32.totalorder %s21, 0
      %p48 = por %p46, %p47
      %s50 = sadd.s32 %s49, 1
      %p53 = scmp.eq.s32.totalorder %s15, 1
      %p54 = scmp.ne.s32.totalorder %s49, %s51
      %p55 = scmp.eq.s32.totalorder %s15, 0
      %p56 = por %p54, %p55
      %p57 = scmp.ne.s32.totalorder %s49, %s51
      %p58 = scmp.eq.s32.totalorder %s20, 1
      %p59 = por %p57, %p58
      %p60 = scmp.ne.s32.totalorder %s51, %s52
      %p61 = scmp.eq.s32.totalorder %s20, 0
      %p62 = por %p60, %p61
      %p63 = scmp.ne.s32.totalorder %s51, %s52
      %p64 = scmp.eq.s32.totalorder %s21, 1
      %p65 = por %p63, %p64
      %p67 = scmp.ne.s32.totalorder %s52, %s66
      %p68 = scmp.eq.s32.totalorder %s21, 0
      %p69 = por %p67, %p68
      %s71 = sadd.s32 %s70, 1
      %p74 = scmp.eq.s32.totalorder %s15, 1
      %p75 = scmp.ne.s32.totalorder %s70, %s72
      %p76 = scmp.eq.s32.totalorder %s15, 0
      %p77 = por %p75, %p76
      %p78 = scmp.ne.s32.totalorder %s70, %s72
      %p79 = scmp.eq.s32.totalorder %s20, 1
      %p80 = por %p78, %p79
      %p81 = scmp.ne.s32.totalorder %s72, %s73
      %p82 = scmp.eq.s32.totalorder %s20, 0
      %p83 = por %p81, %p82
      %p84 = scmp.ne.s32.totalorder %s72, %s73
      %p85 = scmp.eq.s32.totalorder %s21, 1
      %p86 = por %p84, %p85
      %p88 = scmp.ne.s32.totalorder %s73, %s87
      %p89 = scmp.eq.s32.totalorder %s21, 0
      %p90 = por %p88, %p89
      %s92 = sadd.s32 %s91, 1
      %p95 = scmp.eq.s32.totalorder %s15, 1
      %p96 = scmp.ne.s32.totalorder %s91, %s93
      %p97 = scmp.eq.s32.totalorder %s15, 0
      %p98 = por %p96, %p97
      %p99 = scmp.ne.s32.totalorder %s91, %s93
      %p100 = scmp.eq.s32.totalorder %s20, 1
      %p101 = por %p99, %p100
      %p102 = scmp.ne.s32.totalorder %s93, %s94
      %p103 = scmp.eq.s32.totalorder %s20, 0
      %p104 = por %p102, %p103
      %p105 = scmp.ne.s32.totalorder %s93, %s94
      %p106 = scmp.eq.s32.totalorder %s21, 1
      %p107 = por %p105, %p106
      %p109 = scmp.ne.s32.totalorder %s94, %s108
      %p110 = scmp.eq.s32.totalorder %s21, 0
      %p111 = por %p109, %p110
      %s113 = sadd.s32 %s112, 1
      %p116 = scmp.eq.s32.totalorder %s15, 1
      %p117 = scmp.ne.s32.totalorder %s112, %s114
      %p118 = scmp.eq.s32.totalorder %s15, 0
      %p119 = por %p117, %p118
      %p120 = scmp.ne.s32.totalorder %s112, %s114
      %p121 = scmp.eq.s32.totalorder %s20, 1
      %p122 = por %p120, %p121
      %p123 = scmp.ne.s32.totalorder %s114, %s115
      %p124 = scmp.eq.s32.totalorder %s20, 0
      %p125 = por %p123, %p124
      %p126 = scmp.ne.s32.totalorder %s114, %s115
      %p127 = scmp.eq.s32.totalorder %s21, 1
      %p128 = por %p126, %p127
      %p130 = scmp.ne.s32.totalorder %s115, %s129
      %p131 = scmp.eq.s32.totalorder %s21, 0
      %p132 = por %p130, %p131
      %s134 = sadd.s32 %s133, 1
      %p137 = scmp.eq.s32.totalorder %s15, 1
      %p138 = scmp.ne.s32.totalorder %s133, %s135
      %p139 = scmp.eq.s32.totalorder %s15, 0
      %p140 = por %p138, %p139
      %p141 = scmp.ne.s32.totalorder %s133, %s135
      %p142 = scmp.eq.s32.totalorder %s20, 1
      %p143 = por %p141, %p142
      %p144 = scmp.ne.s32.totalorder %s135, %s136
      %p145 = scmp.eq.s32.totalorder %s20, 0
      %p146 = por %p144, %p145
      %p147 = scmp.ne.s32.totalorder %s135, %s136
      %p148 = scmp.eq.s32.totalorder %s21, 1
      %p149 = por %p147, %p148
      %p151 = scmp.ne.s32.totalorder %s136, %s150
      %p152 = scmp.eq.s32.totalorder %s21, 0
      %p153 = por %p151, %p152
      %s155 = sadd.s32 %s154, 1
      %p158 = scmp.eq.s32.totalorder %s15, 1
      %p159 = scmp.ne.s32.totalorder %s154, %s156
      %p160 = scmp.eq.s32.totalorder %s15, 0
      %p161 = por %p159, %p160
      %p162 = scmp.ne.s32.totalorder %s154, %s156
      %p163 = scmp.eq.s32.totalorder %s20, 1
      %p164 = por %p162, %p163
      %p165 = scmp.ne.s32.totalorder %s156, %s157
      %p166 = scmp.eq.s32.totalorder %s20, 0
      %p167 = por %p165, %p166
      %p168 = scmp.ne.s32.totalorder %s156, %s157
      %p169 = scmp.eq.s32.totalorder %s21, 1
      %p170 = por %p168, %p169
      %p172 = scmp.ne.s32.totalorder %s157, %s171
      %p173 = scmp.eq.s32.totalorder %s21, 0
      %p174 = por %p172, %p173
      %s175 = ssub.s32 %s15, %s22
      %p176 = scmp.eq.s32.totalorder %s175, 0
      %s178 = sadd.s32 %s177, 1
      %s179 = scalar_select %p176, %s177, %s178
      %p182 = pneg %p176
      %p183 = scmp.eq.s32.totalorder %s15, 1
      %p184 = por %p182, %p183
      %p185 = scmp.ne.s32.totalorder %s177, %s180
      %p186 = scmp.eq.s32.totalorder %s15, 0
      %p187 = por %p185, %p186
      %p188 = scmp.ne.s32.totalorder %s177, %s180
      %p189 = scmp.eq.s32.totalorder %s20, 1
      %p190 = por %p188, %p189
      %p191 = scmp.ne.s32.totalorder %s180, %s181
      %p192 = scmp.eq.s32.totalorder %s20, 0
      %p193 = por %p191, %p192
      %p194 = scmp.ne.s32.totalorder %s180, %s181
      %p195 = scmp.eq.s32.totalorder %s21, 1
      %p196 = por %p194, %p195
      %p198 = scmp.ne.s32.totalorder %s181, %s197
      %p199 = scmp.eq.s32.totalorder %s21, 0
      %p200 = por %p198, %p199
      %p201 = scmp.le.s32.totalorder 1, %s15
      %p202 = scmp.lt.s32.totalorder %s15, 3
      %p203 = pnand %p201, %p202
      %p204 = pneg %p203
      // Predicated region
      $region9: #{tpu_custom_call.1} parent=5 // pred_check
        _
      $region10: #{tpu_custom_call.1} parent=5 // pred_check_branch
        %206 = sbr.rel (%p203) target = $region12
      $region11: #{tpu_custom_call.1} parent=5 // pred_region
        %s207 = ssub.s32 %s15, 1
        // Predicated region
        $region13: #{tpu_custom_call.1} parent=11 // pred_check
          %p208 = pneg %p62
        $region14: #{tpu_custom_call.1} parent=11 // pred_check_branch
          %210 = sbr.rel (%p208) target = $region16
        $region15: #{tpu_custom_call.1} parent=11 // pred_region
          %s212 = ssub.s32 8192, 8192
          %213 = vsyncadd [#allocation3], %s212
          %s214 = sshll.u32 [#allocation2], 4
          %s215 = int_to_ptr.vmem [resolvable:$true] %s214
          %220 = dma.hbm_to_vmem [thread:$0]  %s1, 8192, %s215, [#allocation3], 128, 128, 8
        $region16: #{tpu_custom_call.1} parent=11 // pred_fallthru
          _
        // Predicated region
        $region17: #{tpu_custom_call.1} parent=11 // pred_check
          %p221 = pneg %p83
        $region18: #{tpu_custom_call.1} parent=11 // pred_check_branch
          %223 = sbr.rel (%p221) target = $region20
        $region19: #{tpu_custom_call.1} parent=11 // pred_region
          _
        $region20: #{tpu_custom_call.1} parent=11 // pred_fallthru
          _
        // Predicated region
        $region21: #{tpu_custom_call.1} parent=11 // pred_check
          %p224 = pneg %p104
        $region22: #{tpu_custom_call.1} parent=11 // pred_check_branch
          %226 = sbr.rel (%p224) target = $region24
        $region23: #{tpu_custom_call.1} parent=11 // pred_region
          %s228 = ssub.s32 8192, 8192
          %229 = vsyncadd [#allocation5], %s228
          %s230 = sshll.u32 [#allocation4], 4
          %s231 = int_to_ptr.vmem [resolvable:$true] %s230
          %236 = dma.hbm_to_vmem [thread:$0]  %s3, 8192, %s231, [#allocation5], 128, 128, 8
        $region24: #{tpu_custom_call.1} parent=11 // pred_fallthru
          _
        // Predicated region
        $region25: #{tpu_custom_call.1} parent=11 // pred_check
          %p237 = pneg %p125
        $region26: #{tpu_custom_call.1} parent=11 // pred_check_branch
          %239 = sbr.rel (%p237) target = $region28
        $region27: #{tpu_custom_call.1} parent=11 // pred_region
          _
        $region28: #{tpu_custom_call.1} parent=11 // pred_fallthru
          _
        // Predicated region
        $region29: #{tpu_custom_call.1} parent=11 // pred_check
          %p240 = pneg %p146
        $region30: #{tpu_custom_call.1} parent=11 // pred_check_branch
          %242 = sbr.rel (%p240) target = $region32
        $region31: #{tpu_custom_call.1} parent=11 // pred_region
          %s244 = ssub.s32 2048, 2048
          %245 = vsyncadd [#allocation5], %s244
          %s246 = sshll.u32 [#allocation6], 4
          %s247 = int_to_ptr.vmem [resolvable:$true] %s246
          %252 = dma.hbm_to_vmem [thread:$0]  %s5, 2048, %s247, [#allocation5], 128, 128, 8
        $region32: #{tpu_custom_call.1} parent=11 // pred_fallthru
          _
        // Predicated region
        $region33: #{tpu_custom_call.1} parent=11 // pred_check
          %p253 = pneg %p167
        $region34: #{tpu_custom_call.1} parent=11 // pred_check_branch
          %255 = sbr.rel (%p253) target = $region36
        $region35: #{tpu_custom_call.1} parent=11 // pred_region
          _
        $region36: #{tpu_custom_call.1} parent=11 // pred_fallthru
          _
      $region12: #{tpu_custom_call.1} parent=5 // pred_fallthru
        _
      %p256 = scmp.lt.s32.totalorder %s15, 2
      // Predicated region
      $region37: #{tpu_custom_call.1} parent=5 // pred_check
        %p257 = pneg %p256
      $region38: #{tpu_custom_call.1} parent=5 // pred_check_branch
        %259 = sbr.rel (%p257) target = $region40
      $region39: #{tpu_custom_call.1} parent=5 // pred_region
        // Predicated region
        $region41: #{tpu_custom_call.1} parent=39 // pred_check
          %p260 = pneg %p35
        $region42: #{tpu_custom_call.1} parent=39 // pred_check_branch
          %262 = sbr.rel (%p260) target = $region44
        $region43: #{tpu_custom_call.1} parent=39 // pred_region
          %p263 = scmp.lt.s32.totalorder %s15, 1
          %s264 = scalar_select %p263, %s15, 1
          %s265 = smul.addr %s264, 8
          %s266 = scalar_lea.vmem %s0, %s265
        $region44: #{tpu_custom_call.1} parent=39 // pred_fallthru
          _
      $region40: #{tpu_custom_call.1} parent=5 // pred_fallthru
        _
      %p267 = scmp.le.s32.totalorder 1, %s15
      %p268 = scmp.lt.s32.totalorder %s15, 3
      %p269 = pnand %p267, %p268
      %p270 = pneg %p269
      // Predicated region
      $region45: #{tpu_custom_call.1} parent=5 // pred_check
        _
      $region46: #{tpu_custom_call.1} parent=5 // pred_check_branch
        %272 = sbr.rel (%p269) target = $region48
      $region47: #{tpu_custom_call.1} parent=5 // pred_region
        %s273 = ssub.s32 %s15, 1
        // Predicated region
        $region49: #{tpu_custom_call.1} parent=47 // pred_check
          %p274 = pneg %p62
        $region50: #{tpu_custom_call.1} parent=47 // pred_check_branch
          %276 = sbr.rel (%p274) target = $region52
        $region51: #{tpu_custom_call.1} parent=47 // pred_region
          %277 = dma.done [#allocation3], 8192
        $region52: #{tpu_custom_call.1} parent=47 // pred_fallthru
          _
        // Predicated region
        $region53: #{tpu_custom_call.1} parent=47 // pred_check
          %p278 = pneg %p104
        $region54: #{tpu_custom_call.1} parent=47 // pred_check_branch
          %280 = sbr.rel (%p278) target = $region56
        $region55: #{tpu_custom_call.1} parent=47 // pred_region
          %281 = dma.done [#allocation5], 8192
        $region56: #{tpu_custom_call.1} parent=47 // pred_fallthru
          _
        // Predicated region
        $region57: #{tpu_custom_call.1} parent=47 // pred_check
          %p282 = pneg %p146
        $region58: #{tpu_custom_call.1} parent=47 // pred_check_branch
          %284 = sbr.rel (%p282) target = $region60
        $region59: #{tpu_custom_call.1} parent=47 // pred_region
          %285 = dma.done [#allocation5], 2048
        $region60: #{tpu_custom_call.1} parent=47 // pred_fallthru
          _
        %p286 = scmp.lt.s32.totalorder %s20, 1
        %s287 = scalar_select %p286, %s20, 1
        %s288 = smul.addr %s287, 8
        %s289 = scalar_lea.vmem %s0, %s288
        %p290 = pneg %p41
        %p291 = pneg %p38
        %p292 = pneg %p62
        %p293 = pneg %p59
        %p294 = pneg %p83
        %p295 = pneg %p80
        %p296 = pneg %p104
        %p297 = pneg %p101
        %p298 = pneg %p125
        %p299 = pneg %p122
        %p300 = pneg %p146
        %p301 = pneg %p143
        %p302 = pneg %p167
        %p303 = pneg %p164
        %p304 = pneg %p193
        %p305 = pneg %p190
        %p306 = scmp.lt.s32.totalorder %s20, 1
        %s307 = scalar_select %p306, %s20, 1
        %s308 = smul.addr %s307, 8
        %s309 = scalar_lea.vmem %s7, %s308
        %p310 = scmp.lt.s32.totalorder %s20, 1
        %s311 = scalar_select %p310, %s20, 1
        %s312 = smul.addr %s311, 8
        %s313 = scalar_lea.vmem %s0, %s312
        %p314 = scmp.lt.s32.totalorder %s20, 1
        %s315 = scalar_select %p314, %s20, 1
        %s316 = smul.addr %s315, 8
        %s317 = scalar_lea.vmem %s7, %s316
        %v318 = vlaneseq
        %v319 = vshrl.u32 %v318, 7
        %v320 = vlaneseq
        %v321 = vand.u32 %v320, 127
        %vm322 = vcmp.eq.s32.totalorder %v319, %v321
        %v323 = vsel %vm322, 1.0, 0.0
        %v324 = vld [vmem:[%s313] sm:$0xff]
        %vm325 = vcmask 64512
        %v327 = vsel %vm325, %v324, 0
        %329 = vmatprep.subr.mxu0 0.0
        %330 = vmatpush1.msra.mxu0 %v323
        %331 = vmatprep.subr.mxu0 0.0
        %332 = vmatpush1.msra.mxu0 0.0
        %333 = vmatprep.subr.mxu0 0.0
        %334 = vmatpush1.msra.mxu0 0.0
        %335 = vmatprep.subr.mxu0 0.0
        %336 = vmatpush1.msra.mxu0 0.0
        %337 = vmatprep.subr.mxu0 0.0
        %338 = vmatpush1.msra.mxu0 0.0
        %339 = vmatprep.subr.mxu0 0.0
        %340 = vmatpush1.msra.mxu0 0.0
        %341 = vmatprep.subr.mxu0 0.0
        %342 = vmatpush1.msra.mxu0 0.0
        %343 = vmatprep.subr.mxu0 0.0
        %344 = vmatpush1.msra.mxu0 0.0
        %345 = vmatprep.subr.mxu0 0.0
        %346 = vmatpush1.msra.mxu0 0.0
        %347 = vmatprep.subr.mxu0 0.0
        %348 = vmatpush1.msra.mxu0 0.0
        %349 = vmatprep.subr.mxu0 0.0
        %350 = vmatpush1.msra.mxu0 0.0
        %351 = vmatprep.subr.mxu0 0.0
        %352 = vmatpush1.msra.mxu0 0.0
        %353 = vmatprep.subr.mxu0 0.0
        %354 = vmatpush1.msra.mxu0 0.0
        %355 = vmatprep.subr.mxu0 0.0
        %356 = vmatpush1.msra.mxu0 0.0
        %357 = vmatprep.subr.mxu0 0.0
        %358 = vmatpush1.msra.mxu0 0.0
        %359 = vmatprep.subr.mxu0 0.0
        %360 = vmatpush1.msra.mxu0 0.0
        %361 = vmatprep.subr.mxu0 0.0
        %362 = vmatpush1.msra.mxu0 0.0
        %363 = vmatprep.subr.mxu0 0.0
        %364 = vmatpush1.msra.mxu0 0.0
        %365 = vmatprep.subr.mxu0 0.0
        %366 = vmatpush1.msra.mxu0 0.0
        %367 = vmatprep.subr.mxu0 0.0
        %368 = vmatpush1.msra.mxu0 0.0
        %369 = vmatprep.subr.mxu0 0.0
        %370 = vmatpush1.msra.mxu0 0.0
        %371 = vmatprep.subr.mxu0 0.0
        %372 = vmatpush1.msra.mxu0 0.0
        %373 = vmatprep.subr.mxu0 0.0
        %374 = vmatpush1.msra.mxu0 0.0
        %375 = vmatprep.subr.mxu0 0.0
        %376 = vmatpush1.msra.mxu0 0.0
        %377 = vmatprep.subr.mxu0 0.0
        %378 = vmatpush1.msra.mxu0 0.0
        %379 = vmatprep.subr.mxu0 0.0
        %380 = vmatpush1.msra.mxu0 0.0
        %381 = vmatprep.subr.mxu0 0.0
        %382 = vmatpush1.msra.mxu0 0.0
        %383 = vmatprep.subr.mxu0 0.0
        %384 = vmatpush1.msra.mxu0 0.0
        %385 = vmatprep.subr.mxu0 0.0
        %386 = vmatpush1.msra.mxu0 0.0
        %387 = vmatprep.subr.mxu0 0.0
        %388 = vmatpush1.msra.mxu0 0.0
        %389 = vmatprep.subr.mxu0 0.0
        %390 = vmatpush1.msra.mxu0 0.0
        %391 = vmatprep.subr.mxu0 0.0
        %392 = vmatpush1.msra.mxu0 0.0
        %393 = vmatprep.mubr.f32.mxu0 0.0
        %394 = vmatmul.mubr.f32.gmra.mrb[0].mxu0 %v327
        %v395 = vpop.f32.mrb[0].mxu0
        %v396 = vadd.f32 0.0, %v395
        %v397 = vpop.f32.mrb[0].mxu0
        %398 = vdwg.mxu0
        %v399 = vld [vmem:[#allocation2] sm:$0xff]
        %v400 = vld [vmem:[#allocation2 + $0x8] sm:$0xff]
        %v401 = vld [vmem:[#allocation2 + $0x10] sm:$0xff]
        %v402 = vld [vmem:[#allocation2 + $0x18] sm:$0xff]
        %v403 = vld [vmem:[#allocation2 + $0x20] sm:$0xff]
        %v404 = vld [vmem:[#allocation2 + $0x28] sm:$0xff]
        %v405 = vld [vmem:[#allocation2 + $0x30] sm:$0xff]
        %v406 = vld [vmem:[#allocation2 + $0x38] sm:$0xff]
        %v407 = vld [vmem:[#allocation2 + $0x40] sm:$0xff]
        %v408 = vld [vmem:[#allocation2 + $0x48] sm:$0xff]
        %v409 = vld [vmem:[#allocation2 + $0x50] sm:$0xff]
        %v410 = vld [vmem:[#allocation2 + $0x58] sm:$0xff]
        %v411 = vld [vmem:[#allocation2 + $0x60] sm:$0xff]
        %v412 = vld [vmem:[#allocation2 + $0x68] sm:$0xff]
        %v413 = vld [vmem:[#allocation2 + $0x70] sm:$0xff]
        %v414 = vld [vmem:[#allocation2 + $0x78] sm:$0xff]
        %v415 = vld [vmem:[%s2] sm:$0x1]
        %v417 = vlaneseq
        %v418 = vshrl.u32 %v417, 7
        %v419 = vsub.s32 0, %v418
        %v420 = vrot.slane %v415, %v419
        %422 = vmatprep.subr.mxu0 0.0
        %423 = vmatpush1.msra.mxu0 %v399
        %424 = vmatprep.subr.mxu0 0.0
        %425 = vmatpush1.msra.mxu0 %v400
        %426 = vmatprep.subr.mxu0 0.0
        %427 = vmatpush1.msra.mxu0 %v401
        %428 = vmatprep.subr.mxu0 0.0
        %429 = vmatpush1.msra.mxu0 %v402
        %430 = vmatprep.subr.mxu0 0.0
        %431 = vmatpush1.msra.mxu0 %v403
        %432 = vmatprep.subr.mxu0 0.0
        %433 = vmatpush1.msra.mxu0 %v404
        %434 = vmatprep.subr.mxu0 0.0
        %435 = vmatpush1.msra.mxu0 %v405
        %436 = vmatprep.subr.mxu0 0.0
        %437 = vmatpush1.msra.mxu0 %v406
        %438 = vmatprep.subr.mxu0 0.0
        %439 = vmatpush1.msra.mxu0 %v407
        %440 = vmatprep.subr.mxu0 0.0
        %441 = vmatpush1.msra.mxu0 %v408
        %442 = vmatprep.subr.mxu0 0.0
        %443 = vmatpush1.msra.mxu0 %v409
        %444 = vmatprep.subr.mxu0 0.0
        %445 = vmatpush1.msra.mxu0 %v410
        %446 = vmatprep.subr.mxu0 0.0
        %447 = vmatpush1.msra.mxu0 %v411
        %448 = vmatprep.subr.mxu0 0.0
        %449 = vmatpush1.msra.mxu0 %v412
        %450 = vmatprep.subr.mxu0 0.0
        %451 = vmatpush1.msra.mxu0 %v413
        %452 = vmatprep.subr.mxu0 0.0
        %453 = vmatpush1.msra.mxu0 %v414
        %454 = vmatprep.subr.mxu0 0.0
        %455 = vmatpush1.msra.mxu0 0.0
        %456 = vmatprep.subr.mxu0 0.0
        %457 = vmatpush1.msra.mxu0 0.0
        %458 = vmatprep.subr.mxu0 0.0
        %459 = vmatpush1.msra.mxu0 0.0
        %460 = vmatprep.subr.mxu0 0.0
        %461 = vmatpush1.msra.mxu0 0.0
        %462 = vmatprep.subr.mxu0 0.0
        %463 = vmatpush1.msra.mxu0 0.0
        %464 = vmatprep.subr.mxu0 0.0
        %465 = vmatpush1.msra.mxu0 0.0
        %466 = vmatprep.subr.mxu0 0.0
        %467 = vmatpush1.msra.mxu0 0.0
        %468 = vmatprep.subr.mxu0 0.0
        %469 = vmatpush1.msra.mxu0 0.0
        %470 = vmatprep.subr.mxu0 0.0
        %471 = vmatpush1.msra.mxu0 0.0
        %472 = vmatprep.subr.mxu0 0.0
        %473 = vmatpush1.msra.mxu0 0.0
        %474 = vmatprep.subr.mxu0 0.0
        %475 = vmatpush1.msra.mxu0 0.0
        %476 = vmatprep.subr.mxu0 0.0
        %477 = vmatpush1.msra.mxu0 0.0
        %478 = vmatprep.subr.mxu0 0.0
        %479 = vmatpush1.msra.mxu0 0.0
        %480 = vmatprep.subr.mxu0 0.0
        %481 = vmatpush1.msra.mxu0 0.0
        %482 = vmatprep.subr.mxu0 0.0
        %483 = vmatpush1.msra.mxu0 0.0
        %484 = vmatprep.subr.mxu0 0.0
        %485 = vmatpush1.msra.mxu0 0.0
        %486 = vmatprep.mubr.f32.mxu0 0.0
        %487 = vmatmul.mubr.f32.gmra.mrb[0].mxu0 %v396
        %v488 = vpop.f32.mrb[0].mxu0
        %v489 = vadd.f32 %v420, %v488
        %v490 = vpop.f32.mrb[0].mxu0
        %491 = vdwg.mxu0
        %v492 = vtanh.pop %v489
        %v493 = vld [vmem:[#allocation4] sm:$0xff]
        %v494 = vld [vmem:[#allocation4 + $0x8] sm:$0xff]
        %v495 = vld [vmem:[#allocation4 + $0x10] sm:$0xff]
        %v496 = vld [vmem:[#allocation4 + $0x18] sm:$0xff]
        %v497 = vld [vmem:[#allocation4 + $0x20] sm:$0xff]
        %v498 = vld [vmem:[#allocation4 + $0x28] sm:$0xff]
        %v499 = vld [vmem:[#allocation4 + $0x30] sm:$0xff]
        %v500 = vld [vmem:[#allocation4 + $0x38] sm:$0xff]
        %v501 = vld [vmem:[#allocation4 + $0x40] sm:$0xff]
        %v502 = vld [vmem:[#allocation4 + $0x48] sm:$0xff]
        %v503 = vld [vmem:[#allocation4 + $0x50] sm:$0xff]
        %v504 = vld [vmem:[#allocation4 + $0x58] sm:$0xff]
        %v505 = vld [vmem:[#allocation4 + $0x60] sm:$0xff]
        %v506 = vld [vmem:[#allocation4 + $0x68] sm:$0xff]
        %v507 = vld [vmem:[#allocation4 + $0x70] sm:$0xff]
        %v508 = vld [vmem:[#allocation4 + $0x78] sm:$0xff]
        %v509 = vld [vmem:[%s4] sm:$0x1]
        %v511 = vlaneseq
        %v512 = vshrl.u32 %v511, 7
        %v513 = vsub.s32 0, %v512
        %v514 = vrot.slane %v509, %v513
        %516 = vmatprep.subr.mxu0 0.0
        %517 = vmatpush1.msra.mxu0 %v493
        %518 = vmatprep.subr.mxu0 0.0
        %519 = vmatpush1.msra.mxu0 %v494
        %520 = vmatprep.subr.mxu0 0.0
        %521 = vmatpush1.msra.mxu0 %v495
        %522 = vmatprep.subr.mxu0 0.0
        %523 = vmatpush1.msra.mxu0 %v496
        %524 = vmatprep.subr.mxu0 0.0
        %525 = vmatpush1.msra.mxu0 %v497
        %526 = vmatprep.subr.mxu0 0.0
        %527 = vmatpush1.msra.mxu0 %v498
        %528 = vmatprep.subr.mxu0 0.0
        %529 = vmatpush1.msra.mxu0 %v499
        %530 = vmatprep.subr.mxu0 0.0
        %531 = vmatpush1.msra.mxu0 %v500
        %532 = vmatprep.subr.mxu0 0.0
        %533 = vmatpush1.msra.mxu0 %v501
        %534 = vmatprep.subr.mxu0 0.0
        %535 = vmatpush1.msra.mxu0 %v502
        %536 = vmatprep.subr.mxu0 0.0
        %537 = vmatpush1.msra.mxu0 %v503
        %538 = vmatprep.subr.mxu0 0.0
        %539 = vmatpush1.msra.mxu0 %v504
        %540 = vmatprep.subr.mxu0 0.0
        %541 = vmatpush1.msra.mxu0 %v505
        %542 = vmatprep.subr.mxu0 0.0
        %543 = vmatpush1.msra.mxu0 %v506
        %544 = vmatprep.subr.mxu0 0.0
        %545 = vmatpush1.msra.mxu0 %v507
        %546 = vmatprep.subr.mxu0 0.0
        %547 = vmatpush1.msra.mxu0 %v508
        %548 = vmatprep.subr.mxu0 0.0
        %549 = vmatpush1.msra.mxu0 0.0
        %550 = vmatprep.subr.mxu0 0.0
        %551 = vmatpush1.msra.mxu0 0.0
        %552 = vmatprep.subr.mxu0 0.0
        %553 = vmatpush1.msra.mxu0 0.0
        %554 = vmatprep.subr.mxu0 0.0
        %555 = vmatpush1.msra.mxu0 0.0
        %556 = vmatprep.subr.mxu0 0.0
        %557 = vmatpush1.msra.mxu0 0.0
        %558 = vmatprep.subr.mxu0 0.0
        %559 = vmatpush1.msra.mxu0 0.0
        %560 = vmatprep.subr.mxu0 0.0
        %561 = vmatpush1.msra.mxu0 0.0
        %562 = vmatprep.subr.mxu0 0.0
        %563 = vmatpush1.msra.mxu0 0.0
        %564 = vmatprep.subr.mxu0 0.0
        %565 = vmatpush1.msra.mxu0 0.0
        %566 = vmatprep.subr.mxu0 0.0
        %567 = vmatpush1.msra.mxu0 0.0
        %568 = vmatprep.subr.mxu0 0.0
        %569 = vmatpush1.msra.mxu0 0.0
        %570 = vmatprep.subr.mxu0 0.0
        %571 = vmatpush1.msra.mxu0 0.0
        %572 = vmatprep.subr.mxu0 0.0
        %573 = vmatpush1.msra.mxu0 0.0
        %574 = vmatprep.subr.mxu0 0.0
        %575 = vmatpush1.msra.mxu0 0.0
        %576 = vmatprep.subr.mxu0 0.0
        %577 = vmatpush1.msra.mxu0 0.0
        %578 = vmatprep.subr.mxu0 0.0
        %579 = vmatpush1.msra.mxu0 0.0
        %580 = vmatprep.mubr.f32.mxu0 0.0
        %581 = vmatmul.mubr.f32.gmra.mrb[0].mxu0 %v492
        %v582 = vpop.f32.mrb[0].mxu0
        %v583 = vadd.f32 %v514, %v582
        %v584 = vpop.f32.mrb[0].mxu0
        %585 = vdwg.mxu0
        %v586 = vtanh.pop %v583
        %v587 = vadd.f32 %v586, %v396
        %s588 = scalar_lea.vmem [#allocation2], 128
        %v589 = vld [vmem:[%s588] sm:$0xff]
        %v590 = vld [vmem:[%s588 + $0x8] sm:$0xff]
        %v591 = vld [vmem:[%s588 + $0x10] sm:$0xff]
        %v592 = vld [vmem:[%s588 + $0x18] sm:$0xff]
        %v593 = vld [vmem:[%s588 + $0x20] sm:$0xff]
        %v594 = vld [vmem:[%s588 + $0x28] sm:$0xff]
        %v595 = vld [vmem:[%s588 + $0x30] sm:$0xff]
        %v596 = vld [vmem:[%s588 + $0x38] sm:$0xff]
        %v597 = vld [vmem:[%s588 + $0x40] sm:$0xff]
        %v598 = vld [vmem:[%s588 + $0x48] sm:$0xff]
        %v599 = vld [vmem:[%s588 + $0x50] sm:$0xff]
        %v600 = vld [vmem:[%s588 + $0x58] sm:$0xff]
        %v601 = vld [vmem:[%s588 + $0x60] sm:$0xff]
        %v602 = vld [vmem:[%s588 + $0x68] sm:$0xff]
        %v603 = vld [vmem:[%s588 + $0x70] sm:$0xff]
        %v604 = vld [vmem:[%s588 + $0x78] sm:$0xff]
        %s605 = scalar_lea.vmem %s2, 1
        %v606 = vld [vmem:[%s605] sm:$0x1]
        %v608 = vlaneseq
        %v609 = vshrl.u32 %v608, 7
        %v610 = vsub.s32 0, %v609
        %v611 = vrot.slane %v606, %v610
        %613 = vmatprep.subr.mxu0 0.0
        %614 = vmatpush1.msra.mxu0 %v589
        %615 = vmatprep.subr.mxu0 0.0
        %616 = vmatpush1.msra.mxu0 %v590
        %617 = vmatprep.subr.mxu0 0.0
        %618 = vmatpush1.msra.mxu0 %v591
        %619 = vmatprep.subr.mxu0 0.0
        %620 = vmatpush1.msra.mxu0 %v592
        %621 = vmatprep.subr.mxu0 0.0
        %622 = vmatpush1.msra.mxu0 %v593
        %623 = vmatprep.subr.mxu0 0.0
        %624 = vmatpush1.msra.mxu0 %v594
        %625 = vmatprep.subr.mxu0 0.0
        %626 = vmatpush1.msra.mxu0 %v595
        %627 = vmatprep.subr.mxu0 0.0
        %628 = vmatpush1.msra.mxu0 %v596
        %629 = vmatprep.subr.mxu0 0.0
        %630 = vmatpush1.msra.mxu0 %v597
        %631 = vmatprep.subr.mxu0 0.0
        %632 = vmatpush1.msra.mxu0 %v598
        %633 = vmatprep.subr.mxu0 0.0
        %634 = vmatpush1.msra.mxu0 %v599
        %635 = vmatprep.subr.mxu0 0.0
        %636 = vmatpush1.msra.mxu0 %v600
        %637 = vmatprep.subr.mxu0 0.0
        %638 = vmatpush1.msra.mxu0 %v601
        %639 = vmatprep.subr.mxu0 0.0
        %640 = vmatpush1.msra.mxu0 %v602
        %641 = vmatprep.subr.mxu0 0.0
        %642 = vmatpush1.msra.mxu0 %v603
        %643 = vmatprep.subr.mxu0 0.0
        %644 = vmatpush1.msra.mxu0 %v604
        %645 = vmatprep.subr.mxu0 0.0
        %646 = vmatpush1.msra.mxu0 0.0
        %647 = vmatprep.subr.mxu0 0.0
        %648 = vmatpush1.msra.mxu0 0.0
        %649 = vmatprep.subr.mxu0 0.0
        %650 = vmatpush1.msra.mxu0 0.0
        %651 = vmatprep.subr.mxu0 0.0
        %652 = vmatpush1.msra.mxu0 0.0
        %653 = vmatprep.subr.mxu0 0.0
        %654 = vmatpush1.msra.mxu0 0.0
        %655 = vmatprep.subr.mxu0 0.0
        %656 = vmatpush1.msra.mxu0 0.0
        %657 = vmatprep.subr.mxu0 0.0
        %658 = vmatpush1.msra.mxu0 0.0
        %659 = vmatprep.subr.mxu0 0.0
        %660 = vmatpush1.msra.mxu0 0.0
        %661 = vmatprep.subr.mxu0 0.0
        %662 = vmatpush1.msra.mxu0 0.0
        %663 = vmatprep.subr.mxu0 0.0
        %664 = vmatpush1.msra.mxu0 0.0
        %665 = vmatprep.subr.mxu0 0.0
        %666 = vmatpush1.msra.mxu0 0.0
        %667 = vmatprep.subr.mxu0 0.0
        %668 = vmatpush1.msra.mxu0 0.0
        %669 = vmatprep.subr.mxu0 0.0
        %670 = vmatpush1.msra.mxu0 0.0
        %671 = vmatprep.subr.mxu0 0.0
        %672 = vmatpush1.msra.mxu0 0.0
        %673 = vmatprep.subr.mxu0 0.0
        %674 = vmatpush1.msra.mxu0 0.0
        %675 = vmatprep.subr.mxu0 0.0
        %676 = vmatpush1.msra.mxu0 0.0
        %677 = vmatprep.mubr.f32.mxu0 0.0
        %678 = vmatmul.mubr.f32.gmra.mrb[0].mxu0 %v587
        %v679 = vpop.f32.mrb[0].mxu0
        %v680 = vadd.f32 %v611, %v679
        %v681 = vpop.f32.mrb[0].mxu0
        %682 = vdwg.mxu0
        %v683 = vtanh.pop %v680
        %s684 = scalar_lea.vmem [#allocation4], 128
        %v685 = vld [vmem:[%s684] sm:$0xff]
        %v686 = vld [vmem:[%s684 + $0x8] sm:$0xff]
        %v687 = vld [vmem:[%s684 + $0x10] sm:$0xff]
        %v688 = vld [vmem:[%s684 + $0x18] sm:$0xff]
        %v689 = vld [vmem:[%s684 + $0x20] sm:$0xff]
        %v690 = vld [vmem:[%s684 + $0x28] sm:$0xff]
        %v691 = vld [vmem:[%s684 + $0x30] sm:$0xff]
        %v692 = vld [vmem:[%s684 + $0x38] sm:$0xff]
        %v693 = vld [vmem:[%s684 + $0x40] sm:$0xff]
        %v694 = vld [vmem:[%s684 + $0x48] sm:$0xff]
        %v695 = vld [vmem:[%s684 + $0x50] sm:$0xff]
        %v696 = vld [vmem:[%s684 + $0x58] sm:$0xff]
        %v697 = vld [vmem:[%s684 + $0x60] sm:$0xff]
        %v698 = vld [vmem:[%s684 + $0x68] sm:$0xff]
        %v699 = vld [vmem:[%s684 + $0x70] sm:$0xff]
        %v700 = vld [vmem:[%s684 + $0x78] sm:$0xff]
        %s701 = scalar_lea.vmem %s4, 1
        %v702 = vld [vmem:[%s701] sm:$0x1]
        %v704 = vlaneseq
        %v705 = vshrl.u32 %v704, 7
        %v706 = vsub.s32 0, %v705
        %v707 = vrot.slane %v702, %v706
        %709 = vmatprep.subr.mxu0 0.0
        %710 = vmatpush1.msra.mxu0 %v685
        %711 = vmatprep.subr.mxu0 0.0
        %712 = vmatpush1.msra.mxu0 %v686
        %713 = vmatprep.subr.mxu0 0.0
        %714 = vmatpush1.msra.mxu0 %v687
        %715 = vmatprep.subr.mxu0 0.0
        %716 = vmatpush1.msra.mxu0 %v688
        %717 = vmatprep.subr.mxu0 0.0
        %718 = vmatpush1.msra.mxu0 %v689
        %719 = vmatprep.subr.mxu0 0.0
        %720 = vmatpush1.msra.mxu0 %v690
        %721 = vmatprep.subr.mxu0 0.0
        %722 = vmatpush1.msra.mxu0 %v691
        %723 = vmatprep.subr.mxu0 0.0
        %724 = vmatpush1.msra.mxu0 %v692
        %725 = vmatprep.subr.mxu0 0.0
        %726 = vmatpush1.msra.mxu0 %v693
        %727 = vmatprep.subr.mxu0 0.0
        %728 = vmatpush1.msra.mxu0 %v694
        %729 = vmatprep.subr.mxu0 0.0
        %730 = vmatpush1.msra.mxu0 %v695
        %731 = vmatprep.subr.mxu0 0.0
        %732 = vmatpush1.msra.mxu0 %v696
        %733 = vmatprep.subr.mxu0 0.0
        %734 = vmatpush1.msra.mxu0 %v697
        %735 = vmatprep.subr.mxu0 0.0
        %736 = vmatpush1.msra.mxu0 %v698
        %737 = vmatprep.subr.mxu0 0.0
        %738 = vmatpush1.msra.mxu0 %v699
        %739 = vmatprep.subr.mxu0 0.0
        %740 = vmatpush1.msra.mxu0 %v700
        %741 = vmatprep.subr.mxu0 0.0
        %742 = vmatpush1.msra.mxu0 0.0
        %743 = vmatprep.subr.mxu0 0.0
        %744 = vmatpush1.msra.mxu0 0.0
        %745 = vmatprep.subr.mxu0 0.0
        %746 = vmatpush1.msra.mxu0 0.0
        %747 = vmatprep.subr.mxu0 0.0
        %748 = vmatpush1.msra.mxu0 0.0
        %749 = vmatprep.subr.mxu0 0.0
        %750 = vmatpush1.msra.mxu0 0.0
        %751 = vmatprep.subr.mxu0 0.0
        %752 = vmatpush1.msra.mxu0 0.0
        %753 = vmatprep.subr.mxu0 0.0
        %754 = vmatpush1.msra.mxu0 0.0
        %755 = vmatprep.subr.mxu0 0.0
        %756 = vmatpush1.msra.mxu0 0.0
        %757 = vmatprep.subr.mxu0 0.0
        %758 = vmatpush1.msra.mxu0 0.0
        %759 = vmatprep.subr.mxu0 0.0
        %760 = vmatpush1.msra.mxu0 0.0
        %761 = vmatprep.subr.mxu0 0.0
        %762 = vmatpush1.msra.mxu0 0.0
        %763 = vmatprep.subr.mxu0 0.0
        %764 = vmatpush1.msra.mxu0 0.0
        %765 = vmatprep.subr.mxu0 0.0
        %766 = vmatpush1.msra.mxu0 0.0
        %767 = vmatprep.subr.mxu0 0.0
        %768 = vmatpush1.msra.mxu0 0.0
        %769 = vmatprep.subr.mxu0 0.0
        %770 = vmatpush1.msra.mxu0 0.0
        %771 = vmatprep.subr.mxu0 0.0
        %772 = vmatpush1.msra.mxu0 0.0
        %773 = vmatprep.mubr.f32.mxu0 0.0
        %774 = vmatmul.mubr.f32.gmra.mrb[0].mxu0 %v683
        %v775 = vpop.f32.mrb[0].mxu0
        %v776 = vadd.f32 %v707, %v775
        %v777 = vpop.f32.mrb[0].mxu0
        %778 = vdwg.mxu0
        %v779 = vtanh.pop %v776
        %v780 = vadd.f32 %v779, %v587
        %s781 = scalar_lea.vmem [#allocation2], 256
        %v782 = vld [vmem:[%s781] sm:$0xff]
        %v783 = vld [vmem:[%s781 + $0x8] sm:$0xff]
        %v784 = vld [vmem:[%s781 + $0x10] sm:$0xff]
        %v785 = vld [vmem:[%s781 + $0x18] sm:$0xff]
        %v786 = vld [vmem:[%s781 + $0x20] sm:$0xff]
        %v787 = vld [vmem:[%s781 + $0x28] sm:$0xff]
        %v788 = vld [vmem:[%s781 + $0x30] sm:$0xff]
        %v789 = vld [vmem:[%s781 + $0x38] sm:$0xff]
        %v790 = vld [vmem:[%s781 + $0x40] sm:$0xff]
        %v791 = vld [vmem:[%s781 + $0x48] sm:$0xff]
        %v792 = vld [vmem:[%s781 + $0x50] sm:$0xff]
        %v793 = vld [vmem:[%s781 + $0x58] sm:$0xff]
        %v794 = vld [vmem:[%s781 + $0x60] sm:$0xff]
        %v795 = vld [vmem:[%s781 + $0x68] sm:$0xff]
        %v796 = vld [vmem:[%s781 + $0x70] sm:$0xff]
        %v797 = vld [vmem:[%s781 + $0x78] sm:$0xff]
        %s798 = scalar_lea.vmem %s2, 2
        %v799 = vld [vmem:[%s798] sm:$0x1]
        %v801 = vlaneseq
        %v802 = vshrl.u32 %v801, 7
        %v803 = vsub.s32 0, %v802
        %v804 = vrot.slane %v799, %v803
        %806 = vmatprep.subr.mxu0 0.0
        %807 = vmatpush1.msra.mxu0 %v782
        %808 = vmatprep.subr.mxu0 0.0
        %809 = vmatpush1.msra.mxu0 %v783
        %810 = vmatprep.subr.mxu0 0.0
        %811 = vmatpush1.msra.mxu0 %v784
        %812 = vmatprep.subr.mxu0 0.0
        %813 = vmatpush1.msra.mxu0 %v785
        %814 = vmatprep.subr.mxu0 0.0
        %815 = vmatpush1.msra.mxu0 %v786
        %816 = vmatprep.subr.mxu0 0.0
        %817 = vmatpush1.msra.mxu0 %v787
        %818 = vmatprep.subr.mxu0 0.0
        %819 = vmatpush1.msra.mxu0 %v788
        %820 = vmatprep.subr.mxu0 0.0
        %821 = vmatpush1.msra.mxu0 %v789
        %822 = vmatprep.subr.mxu0 0.0
        %823 = vmatpush1.msra.mxu0 %v790
        %824 = vmatprep.subr.mxu0 0.0
        %825 = vmatpush1.msra.mxu0 %v791
        %826 = vmatprep.subr.mxu0 0.0
        %827 = vmatpush1.msra.mxu0 %v792
        %828 = vmatprep.subr.mxu0 0.0
        %829 = vmatpush1.msra.mxu0 %v793
        %830 = vmatprep.subr.mxu0 0.0
        %831 = vmatpush1.msra.mxu0 %v794
        %832 = vmatprep.subr.mxu0 0.0
        %833 = vmatpush1.msra.mxu0 %v795
        %834 = vmatprep.subr.mxu0 0.0
        %835 = vmatpush1.msra.mxu0 %v796
        %836 = vmatprep.subr.mxu0 0.0
        %837 = vmatpush1.msra.mxu0 %v797
        %838 = vmatprep.subr.mxu0 0.0
        %839 = vmatpush1.msra.mxu0 0.0
        %840 = vmatprep.subr.mxu0 0.0
        %841 = vmatpush1.msra.mxu0 0.0
        %842 = vmatprep.subr.mxu0 0.0
        %843 = vmatpush1.msra.mxu0 0.0
        %844 = vmatprep.subr.mxu0 0.0
        %845 = vmatpush1.msra.mxu0 0.0
        %846 = vmatprep.subr.mxu0 0.0
        %847 = vmatpush1.msra.mxu0 0.0
        %848 = vmatprep.subr.mxu0 0.0
        %849 = vmatpush1.msra.mxu0 0.0
        %850 = vmatprep.subr.mxu0 0.0
        %851 = vmatpush1.msra.mxu0 0.0
        %852 = vmatprep.subr.mxu0 0.0
        %853 = vmatpush1.msra.mxu0 0.0
        %854 = vmatprep.subr.mxu0 0.0
        %855 = vmatpush1.msra.mxu0 0.0
        %856 = vmatprep.subr.mxu0 0.0
        %857 = vmatpush1.msra.mxu0 0.0
        %858 = vmatprep.subr.mxu0 0.0
        %859 = vmatpush1.msra.mxu0 0.0
        %860 = vmatprep.subr.mxu0 0.0
        %861 = vmatpush1.msra.mxu0 0.0
        %862 = vmatprep.subr.mxu0 0.0
        %863 = vmatpush1.msra.mxu0 0.0
        %864 = vmatprep.subr.mxu0 0.0
        %865 = vmatpush1.msra.mxu0 0.0
        %866 = vmatprep.subr.mxu0 0.0
        %867 = vmatpush1.msra.mxu0 0.0
        %868 = vmatprep.subr.mxu0 0.0
        %869 = vmatpush1.msra.mxu0 0.0
        %870 = vmatprep.mubr.f32.mxu0 0.0
        %871 = vmatmul.mubr.f32.gmra.mrb[0].mxu0 %v780
        %v872 = vpop.f32.mrb[0].mxu0
        %v873 = vadd.f32 %v804, %v872
        %v874 = vpop.f32.mrb[0].mxu0
        %875 = vdwg.mxu0
        %v876 = vtanh.pop %v873
        %s877 = scalar_lea.vmem [#allocation4], 256
        %v878 = vld [vmem:[%s877] sm:$0xff]
        %v879 = vld [vmem:[%s877 + $0x8] sm:$0xff]
        %v880 = vld [vmem:[%s877 + $0x10] sm:$0xff]
        %v881 = vld [vmem:[%s877 + $0x18] sm:$0xff]
        %v882 = vld [vmem:[%s877 + $0x20] sm:$0xff]
        %v883 = vld [vmem:[%s877 + $0x28] sm:$0xff]
        %v884 = vld [vmem:[%s877 + $0x30] sm:$0xff]
        %v885 = vld [vmem:[%s877 + $0x38] sm:$0xff]
        %v886 = vld [vmem:[%s877 + $0x40] sm:$0xff]
        %v887 = vld [vmem:[%s877 + $0x48] sm:$0xff]
        %v888 = vld [vmem:[%s877 + $0x50] sm:$0xff]
        %v889 = vld [vmem:[%s877 + $0x58] sm:$0xff]
        %v890 = vld [vmem:[%s877 + $0x60] sm:$0xff]
        %v891 = vld [vmem:[%s877 + $0x68] sm:$0xff]
        %v892 = vld [vmem:[%s877 + $0x70] sm:$0xff]
        %v893 = vld [vmem:[%s877 + $0x78] sm:$0xff]
        %s894 = scalar_lea.vmem %s4, 2
        %v895 = vld [vmem:[%s894] sm:$0x1]
        %v897 = vlaneseq
        %v898 = vshrl.u32 %v897, 7
        %v899 = vsub.s32 0, %v898
        %v900 = vrot.slane %v895, %v899
        %902 = vmatprep.subr.mxu0 0.0
        %903 = vmatpush1.msra.mxu0 %v878
        %904 = vmatprep.subr.mxu0 0.0
        %905 = vmatpush1.msra.mxu0 %v879
        %906 = vmatprep.subr.mxu0 0.0
        %907 = vmatpush1.msra.mxu0 %v880
        %908 = vmatprep.subr.mxu0 0.0
        %909 = vmatpush1.msra.mxu0 %v881
        %910 = vmatprep.subr.mxu0 0.0
        %911 = vmatpush1.msra.mxu0 %v882
        %912 = vmatprep.subr.mxu0 0.0
        %913 = vmatpush1.msra.mxu0 %v883
        %914 = vmatprep.subr.mxu0 0.0
        %915 = vmatpush1.msra.mxu0 %v884
        %916 = vmatprep.subr.mxu0 0.0
        %917 = vmatpush1.msra.mxu0 %v885
        %918 = vmatprep.subr.mxu0 0.0
        %919 = vmatpush1.msra.mxu0 %v886
        %920 = vmatprep.subr.mxu0 0.0
        %921 = vmatpush1.msra.mxu0 %v887
        %922 = vmatprep.subr.mxu0 0.0
        %923 = vmatpush1.msra.mxu0 %v888
        %924 = vmatprep.subr.mxu0 0.0
        %925 = vmatpush1.msra.mxu0 %v889
        %926 = vmatprep.subr.mxu0 0.0
        %927 = vmatpush1.msra.mxu0 %v890
        %928 = vmatprep.subr.mxu0 0.0
        %929 = vmatpush1.msra.mxu0 %v891
        %930 = vmatprep.subr.mxu0 0.0
        %931 = vmatpush1.msra.mxu0 %v892
        %932 = vmatprep.subr.mxu0 0.0
        %933 = vmatpush1.msra.mxu0 %v893
        %934 = vmatprep.subr.mxu0 0.0
        %935 = vmatpush1.msra.mxu0 0.0
        %936 = vmatprep.subr.mxu0 0.0
        %937 = vmatpush1.msra.mxu0 0.0
        %938 = vmatprep.subr.mxu0 0.0
        %939 = vmatpush1.msra.mxu0 0.0
        %940 = vmatprep.subr.mxu0 0.0
        %941 = vmatpush1.msra.mxu0 0.0
        %942 = vmatprep.subr.mxu0 0.0
        %943 = vmatpush1.msra.mxu0 0.0
        %944 = vmatprep.subr.mxu0 0.0
        %945 = vmatpush1.msra.mxu0 0.0
        %946 = vmatprep.subr.mxu0 0.0
        %947 = vmatpush1.msra.mxu0 0.0
        %948 = vmatprep.subr.mxu0 0.0
        %949 = vmatpush1.msra.mxu0 0.0
        %950 = vmatprep.subr.mxu0 0.0
        %951 = vmatpush1.msra.mxu0 0.0
        %952 = vmatprep.subr.mxu0 0.0
        %953 = vmatpush1.msra.mxu0 0.0
        %954 = vmatprep.subr.mxu0 0.0
        %955 = vmatpush1.msra.mxu0 0.0
        %956 = vmatprep.subr.mxu0 0.0
        %957 = vmatpush1.msra.mxu0 0.0
        %958 = vmatprep.subr.mxu0 0.0
        %959 = vmatpush1.msra.mxu0 0.0
        %960 = vmatprep.subr.mxu0 0.0
        %961 = vmatpush1.msra.mxu0 0.0
        %962 = vmatprep.subr.mxu0 0.0
        %963 = vmatpush1.msra.mxu0 0.0
        %964 = vmatprep.subr.mxu0 0.0
        %965 = vmatpush1.msra.mxu0 0.0
        %966 = vmatprep.mubr.f32.mxu0 0.0
        %967 = vmatmul.mubr.f32.gmra.mrb[0].mxu0 %v876
        %v968 = vpop.f32.mrb[0].mxu0
        %v969 = vadd.f32 %v900, %v968
        %v970 = vpop.f32.mrb[0].mxu0
        %971 = vdwg.mxu0
        %v972 = vtanh.pop %v969
        %v973 = vadd.f32 %v972, %v780
        %s974 = scalar_lea.vmem [#allocation2], 384
        %v975 = vld [vmem:[%s974] sm:$0xff]
        %v976 = vld [vmem:[%s974 + $0x8] sm:$0xff]
        %v977 = vld [vmem:[%s974 + $0x10] sm:$0xff]
        %v978 = vld [vmem:[%s974 + $0x18] sm:$0xff]
        %v979 = vld [vmem:[%s974 + $0x20] sm:$0xff]
        %v980 = vld [vmem:[%s974 + $0x28] sm:$0xff]
        %v981 = vld [vmem:[%s974 + $0x30] sm:$0xff]
        %v982 = vld [vmem:[%s974 + $0x38] sm:$0xff]
        %v983 = vld [vmem:[%s974 + $0x40] sm:$0xff]
        %v984 = vld [vmem:[%s974 + $0x48] sm:$0xff]
        %v985 = vld [vmem:[%s974 + $0x50] sm:$0xff]
        %v986 = vld [vmem:[%s974 + $0x58] sm:$0xff]
        %v987 = vld [vmem:[%s974 + $0x60] sm:$0xff]
        %v988 = vld [vmem:[%s974 + $0x68] sm:$0xff]
        %v989 = vld [vmem:[%s974 + $0x70] sm:$0xff]
        %v990 = vld [vmem:[%s974 + $0x78] sm:$0xff]
        %s991 = scalar_lea.vmem %s2, 3
        %v992 = vld [vmem:[%s991] sm:$0x1]
        %v994 = vlaneseq
        %v995 = vshrl.u32 %v994, 7
        %v996 = vsub.s32 0, %v995
        %v997 = vrot.slane %v992, %v996
        %999 = vmatprep.subr.mxu0 0.0
        %1000 = vmatpush1.msra.mxu0 %v975
        %1001 = vmatprep.subr.mxu0 0.0
        %1002 = vmatpush1.msra.mxu0 %v976
        %1003 = vmatprep.subr.mxu0 0.0
        %1004 = vmatpush1.msra.mxu0 %v977
        %1005 = vmatprep.subr.mxu0 0.0
        %1006 = vmatpush1.msra.mxu0 %v978
        %1007 = vmatprep.subr.mxu0 0.0
        %1008 = vmatpush1.msra.mxu0 %v979
        %1009 = vmatprep.subr.mxu0 0.0
        %1010 = vmatpush1.msra.mxu0 %v980
        %1011 = vmatprep.subr.mxu0 0.0
        %1012 = vmatpush1.msra.mxu0 %v981
        %1013 = vmatprep.subr.mxu0 0.0
        %1014 = vmatpush1.msra.mxu0 %v982
        %1015 = vmatprep.subr.mxu0 0.0
        %1016 = vmatpush1.msra.mxu0 %v983
        %1017 = vmatprep.subr.mxu0 0.0
        %1018 = vmatpush1.msra.mxu0 %v984
        %1019 = vmatprep.subr.mxu0 0.0
        %1020 = vmatpush1.msra.mxu0 %v985
        %1021 = vmatprep.subr.mxu0 0.0
        %1022 = vmatpush1.msra.mxu0 %v986
        %1023 = vmatprep.subr.mxu0 0.0
        %1024 = vmatpush1.msra.mxu0 %v987
        %1025 = vmatprep.subr.mxu0 0.0
        %1026 = vmatpush1.msra.mxu0 %v988
        %1027 = vmatprep.subr.mxu0 0.0
        %1028 = vmatpush1.msra.mxu0 %v989
        %1029 = vmatprep.subr.mxu0 0.0
        %1030 = vmatpush1.msra.mxu0 %v990
        %1031 = vmatprep.subr.mxu0 0.0
        %1032 = vmatpush1.msra.mxu0 0.0
        %1033 = vmatprep.subr.mxu0 0.0
        %1034 = vmatpush1.msra.mxu0 0.0
        %1035 = vmatprep.subr.mxu0 0.0
        %1036 = vmatpush1.msra.mxu0 0.0
        %1037 = vmatprep.subr.mxu0 0.0
        %1038 = vmatpush1.msra.mxu0 0.0
        %1039 = vmatprep.subr.mxu0 0.0
        %1040 = vmatpush1.msra.mxu0 0.0
        %1041 = vmatprep.subr.mxu0 0.0
        %1042 = vmatpush1.msra.mxu0 0.0
        %1043 = vmatprep.subr.mxu0 0.0
        %1044 = vmatpush1.msra.mxu0 0.0
        %1045 = vmatprep.subr.mxu0 0.0
        %1046 = vmatpush1.msra.mxu0 0.0
        %1047 = vmatprep.subr.mxu0 0.0
        %1048 = vmatpush1.msra.mxu0 0.0
        %1049 = vmatprep.subr.mxu0 0.0
        %1050 = vmatpush1.msra.mxu0 0.0
        %1051 = vmatprep.subr.mxu0 0.0
        %1052 = vmatpush1.msra.mxu0 0.0
        %1053 = vmatprep.subr.mxu0 0.0
        %1054 = vmatpush1.msra.mxu0 0.0
        %1055 = vmatprep.subr.mxu0 0.0
        %1056 = vmatpush1.msra.mxu0 0.0
        %1057 = vmatprep.subr.mxu0 0.0
        %1058 = vmatpush1.msra.mxu0 0.0
        %1059 = vmatprep.subr.mxu0 0.0
        %1060 = vmatpush1.msra.mxu0 0.0
        %1061 = vmatprep.subr.mxu0 0.0
        %1062 = vmatpush1.msra.mxu0 0.0
        %1063 = vmatprep.mubr.f32.mxu0 0.0
        %1064 = vmatmul.mubr.f32.gmra.mrb[0].mxu0 %v973
        %v1065 = vpop.f32.mrb[0].mxu0
        %v1066 = vadd.f32 %v997, %v1065
        %v1067 = vpop.f32.mrb[0].mxu0
        %1068 = vdwg.mxu0
        %v1069 = vtanh.pop %v1066
        %s1070 = scalar_lea.vmem [#allocation4], 384
        %v1071 = vld [vmem:[%s1070] sm:$0xff]
        %v1072 = vld [vmem:[%s1070 + $0x8] sm:$0xff]
        %v1073 = vld [vmem:[%s1070 + $0x10] sm:$0xff]
        %v1074 = vld [vmem:[%s1070 + $0x18] sm:$0xff]
        %v1075 = vld [vmem:[%s1070 + $0x20] sm:$0xff]
        %v1076 = vld [vmem:[%s1070 + $0x28] sm:$0xff]
        %v1077 = vld [vmem:[%s1070 + $0x30] sm:$0xff]
        %v1078 = vld [vmem:[%s1070 + $0x38] sm:$0xff]
        %v1079 = vld [vmem:[%s1070 + $0x40] sm:$0xff]
        %v1080 = vld [vmem:[%s1070 + $0x48] sm:$0xff]
        %v1081 = vld [vmem:[%s1070 + $0x50] sm:$0xff]
        %v1082 = vld [vmem:[%s1070 + $0x58] sm:$0xff]
        %v1083 = vld [vmem:[%s1070 + $0x60] sm:$0xff]
        %v1084 = vld [vmem:[%s1070 + $0x68] sm:$0xff]
        %v1085 = vld [vmem:[%s1070 + $0x70] sm:$0xff]
        %v1086 = vld [vmem:[%s1070 + $0x78] sm:$0xff]
        %s1087 = scalar_lea.vmem %s4, 3
        %v1088 = vld [vmem:[%s1087] sm:$0x1]
        %v1090 = vlaneseq
        %v1091 = vshrl.u32 %v1090, 7
        %v1092 = vsub.s32 0, %v1091
        %v1093 = vrot.slane %v1088, %v1092
        %1095 = vmatprep.subr.mxu0 0.0
        %1096 = vmatpush1.msra.mxu0 %v1071
        %1097 = vmatprep.subr.mxu0 0.0
        %1098 = vmatpush1.msra.mxu0 %v1072
        %1099 = vmatprep.subr.mxu0 0.0
        %1100 = vmatpush1.msra.mxu0 %v1073
        %1101 = vmatprep.subr.mxu0 0.0
        %1102 = vmatpush1.msra.mxu0 %v1074
        %1103 = vmatprep.subr.mxu0 0.0
        %1104 = vmatpush1.msra.mxu0 %v1075
        %1105 = vmatprep.subr.mxu0 0.0
        %1106 = vmatpush1.msra.mxu0 %v1076
        %1107 = vmatprep.subr.mxu0 0.0
        %1108 = vmatpush1.msra.mxu0 %v1077
        %1109 = vmatprep.subr.mxu0 0.0
        %1110 = vmatpush1.msra.mxu0 %v1078
        %1111 = vmatprep.subr.mxu0 0.0
        %1112 = vmatpush1.msra.mxu0 %v1079
        %1113 = vmatprep.subr.mxu0 0.0
        %1114 = vmatpush1.msra.mxu0 %v1080
        %1115 = vmatprep.subr.mxu0 0.0
        %1116 = vmatpush1.msra.mxu0 %v1081
        %1117 = vmatprep.subr.mxu0 0.0
        %1118 = vmatpush1.msra.mxu0 %v1082
        %1119 = vmatprep.subr.mxu0 0.0
        %1120 = vmatpush1.msra.mxu0 %v1083
        %1121 = vmatprep.subr.mxu0 0.0
        %1122 = vmatpush1.msra.mxu0 %v1084
        %1123 = vmatprep.subr.mxu0 0.0
        %1124 = vmatpush1.msra.mxu0 %v1085
        %1125 = vmatprep.subr.mxu0 0.0
        %1126 = vmatpush1.msra.mxu0 %v1086
        %1127 = vmatprep.subr.mxu0 0.0
        %1128 = vmatpush1.msra.mxu0 0.0
        %1129 = vmatprep.subr.mxu0 0.0
        %1130 = vmatpush1.msra.mxu0 0.0
        %1131 = vmatprep.subr.mxu0 0.0
        %1132 = vmatpush1.msra.mxu0 0.0
        %1133 = vmatprep.subr.mxu0 0.0
        %1134 = vmatpush1.msra.mxu0 0.0
        %1135 = vmatprep.subr.mxu0 0.0
        %1136 = vmatpush1.msra.mxu0 0.0
        %1137 = vmatprep.subr.mxu0 0.0
        %1138 = vmatpush1.msra.mxu0 0.0
        %1139 = vmatprep.subr.mxu0 0.0
        %1140 = vmatpush1.msra.mxu0 0.0
        %1141 = vmatprep.subr.mxu0 0.0
        %1142 = vmatpush1.msra.mxu0 0.0
        %1143 = vmatprep.subr.mxu0 0.0
        %1144 = vmatpush1.msra.mxu0 0.0
        %1145 = vmatprep.subr.mxu0 0.0
        %1146 = vmatpush1.msra.mxu0 0.0
        %1147 = vmatprep.subr.mxu0 0.0
        %1148 = vmatpush1.msra.mxu0 0.0
        %1149 = vmatprep.subr.mxu0 0.0
        %1150 = vmatpush1.msra.mxu0 0.0
        %1151 = vmatprep.subr.mxu0 0.0
        %1152 = vmatpush1.msra.mxu0 0.0
        %1153 = vmatprep.subr.mxu0 0.0
        %1154 = vmatpush1.msra.mxu0 0.0
        %1155 = vmatprep.subr.mxu0 0.0
        %1156 = vmatpush1.msra.mxu0 0.0
        %1157 = vmatprep.subr.mxu0 0.0
        %1158 = vmatpush1.msra.mxu0 0.0
        %1159 = vmatprep.mubr.f32.mxu0 0.0
        %1160 = vmatmul.mubr.f32.gmra.mrb[0].mxu0 %v1069
        %v1161 = vpop.f32.mrb[0].mxu0
        %v1162 = vadd.f32 %v1093, %v1161
        %v1163 = vpop.f32.mrb[0].mxu0
        %1164 = vdwg.mxu0
        %v1165 = vtanh.pop %v1162
        %v1166 = vadd.f32 %v1165, %v973
        %v1167 = vld [vmem:[#allocation6] sm:$0xff]
        %v1168 = vld [vmem:[#allocation6 + $0x8] sm:$0xff]
        %v1169 = vld [vmem:[#allocation6 + $0x10] sm:$0xff]
        %v1170 = vld [vmem:[#allocation6 + $0x18] sm:$0xff]
        %v1171 = vld [vmem:[#allocation6 + $0x20] sm:$0xff]
        %v1172 = vld [vmem:[#allocation6 + $0x28] sm:$0xff]
        %v1173 = vld [vmem:[#allocation6 + $0x30] sm:$0xff]
        %v1174 = vld [vmem:[#allocation6 + $0x38] sm:$0xff]
        %v1175 = vld [vmem:[#allocation6 + $0x40] sm:$0xff]
        %v1176 = vld [vmem:[#allocation6 + $0x48] sm:$0xff]
        %v1177 = vld [vmem:[#allocation6 + $0x50] sm:$0xff]
        %v1178 = vld [vmem:[#allocation6 + $0x58] sm:$0xff]
        %v1179 = vld [vmem:[#allocation6 + $0x60] sm:$0xff]
        %v1180 = vld [vmem:[#allocation6 + $0x68] sm:$0xff]
        %v1181 = vld [vmem:[#allocation6 + $0x70] sm:$0xff]
        %v1182 = vld [vmem:[#allocation6 + $0x78] sm:$0xff]
        %v1183 = vld [vmem:[%s6] sm:$0x1]
        %v1185 = vlaneseq
        %v1186 = vshrl.u32 %v1185, 7
        %v1187 = vsub.s32 0, %v1186
        %v1188 = vrot.slane %v1183, %v1187
        %1190 = vmatprep.subr.mxu0 0.0
        %1191 = vmatpush1.msra.mxu0 %v1167
        %1192 = vmatprep.subr.mxu0 0.0
        %1193 = vmatpush1.msra.mxu0 %v1168
        %1194 = vmatprep.subr.mxu0 0.0
        %1195 = vmatpush1.msra.mxu0 %v1169
        %1196 = vmatprep.subr.mxu0 0.0
        %1197 = vmatpush1.msra.mxu0 %v1170
        %1198 = vmatprep.subr.mxu0 0.0
        %1199 = vmatpush1.msra.mxu0 %v1171
        %1200 = vmatprep.subr.mxu0 0.0
        %1201 = vmatpush1.msra.mxu0 %v1172
        %1202 = vmatprep.subr.mxu0 0.0
        %1203 = vmatpush1.msra.mxu0 %v1173
        %1204 = vmatprep.subr.mxu0 0.0
        %1205 = vmatpush1.msra.mxu0 %v1174
        %1206 = vmatprep.subr.mxu0 0.0
        %1207 = vmatpush1.msra.mxu0 %v1175
        %1208 = vmatprep.subr.mxu0 0.0
        %1209 = vmatpush1.msra.mxu0 %v1176
        %1210 = vmatprep.subr.mxu0 0.0
        %1211 = vmatpush1.msra.mxu0 %v1177
        %1212 = vmatprep.subr.mxu0 0.0
        %1213 = vmatpush1.msra.mxu0 %v1178
        %1214 = vmatprep.subr.mxu0 0.0
        %1215 = vmatpush1.msra.mxu0 %v1179
        %1216 = vmatprep.subr.mxu0 0.0
        %1217 = vmatpush1.msra.mxu0 %v1180
        %1218 = vmatprep.subr.mxu0 0.0
        %1219 = vmatpush1.msra.mxu0 %v1181
        %1220 = vmatprep.subr.mxu0 0.0
        %1221 = vmatpush1.msra.mxu0 %v1182
        %1222 = vmatprep.subr.mxu0 0.0
        %1223 = vmatpush1.msra.mxu0 0.0
        %1224 = vmatprep.subr.mxu0 0.0
        %1225 = vmatpush1.msra.mxu0 0.0
        %1226 = vmatprep.subr.mxu0 0.0
        %1227 = vmatpush1.msra.mxu0 0.0
        %1228 = vmatprep.subr.mxu0 0.0
        %1229 = vmatpush1.msra.mxu0 0.0
        %1230 = vmatprep.subr.mxu0 0.0
        %1231 = vmatpush1.msra.mxu0 0.0
        %1232 = vmatprep.subr.mxu0 0.0
        %1233 = vmatpush1.msra.mxu0 0.0
        %1234 = vmatprep.subr.mxu0 0.0
        %1235 = vmatpush1.msra.mxu0 0.0
        %1236 = vmatprep.subr.mxu0 0.0
        %1237 = vmatpush1.msra.mxu0 0.0
        %1238 = vmatprep.subr.mxu0 0.0
        %1239 = vmatpush1.msra.mxu0 0.0
        %1240 = vmatprep.subr.mxu0 0.0
        %1241 = vmatpush1.msra.mxu0 0.0
        %1242 = vmatprep.subr.mxu0 0.0
        %1243 = vmatpush1.msra.mxu0 0.0
        %1244 = vmatprep.subr.mxu0 0.0
        %1245 = vmatpush1.msra.mxu0 0.0
        %1246 = vmatprep.subr.mxu0 0.0
        %1247 = vmatpush1.msra.mxu0 0.0
        %1248 = vmatprep.subr.mxu0 0.0
        %1249 = vmatpush1.msra.mxu0 0.0
        %1250 = vmatprep.subr.mxu0 0.0
        %1251 = vmatpush1.msra.mxu0 0.0
        %1252 = vmatprep.subr.mxu0 0.0
        %1253 = vmatpush1.msra.mxu0 0.0
        %1254 = vmatprep.mubr.f32.mxu0 0.0
        %1255 = vmatmul.mubr.f32.gmra.mrb[0].mxu0 %v1166
        %v1256 = vpop.f32.mrb[0].mxu0
        %v1257 = vadd.f32 %v1188, %v1256
        %v1258 = vpop.f32.mrb[0].mxu0
        %1259 = vdwg.mxu0
        %vm1260 = vcmask 7168
        %1261 = vst.msk [vmem:[%s317] sm:$0xff] %vm1260, %v1257
        %p1262 = scmp.lt.s32.totalorder %s20, 1
        %s1263 = scalar_select %p1262, %s20, 1
        %s1264 = smul.addr %s1263, 8
        %s1265 = scalar_lea.vmem %s7, %s1264
        // Predicated region
        $region61: #{tpu_custom_call.1} parent=47 // pred_check
          %p1266 = pneg %p190
        $region62: #{tpu_custom_call.1} parent=47 // pred_check_branch
          %1268 = sbr.rel (%p1266) target = $region64
        $region63: #{tpu_custom_call.1} parent=47 // pred_region
          _
        $region64: #{tpu_custom_call.1} parent=47 // pred_fallthru
          _
      $region48: #{tpu_custom_call.1} parent=5 // pred_fallthru
        _
      %p1269 = scmp.le.s32.totalorder 2, %s15
      // Predicated region
      $region65: #{tpu_custom_call.1} parent=5 // pred_check
        %p1270 = pneg %p1269
      $region66: #{tpu_custom_call.1} parent=5 // pred_check_branch
        %1272 = sbr.rel (%p1270) target = $region68
      $region67: #{tpu_custom_call.1} parent=5 // pred_region
        %s1273 = ssub.s32 %s15, 2
        // Predicated region
        $region69: #{tpu_custom_call.1} parent=67 // pred_check
          %p1274 = pneg %p196
        $region70: #{tpu_custom_call.1} parent=67 // pred_check_branch
          %1276 = sbr.rel (%p1274) target = $region72
        $region71: #{tpu_custom_call.1} parent=67 // pred_region
          %p1277 = scmp.lt.s32.totalorder %s21, 1
          %s1278 = scalar_select %p1277, %s21, 1
          %s1279 = smul.addr %s1278, 8
          %s1280 = scalar_lea.vmem %s7, %s1279
        $region72: #{tpu_custom_call.1} parent=67 // pred_fallthru
          _
      $region68: #{tpu_custom_call.1} parent=5 // pred_fallthru
        _
    $region6: #{tpu_custom_call.1} parent=1 // loop_footer
      %s19 = sadd.s32 1, %s15
    $region7: #{tpu_custom_call.1} parent=1 // loop_footer_branch
      %14 = sbr.rel target = $region3
    $region8: #{tpu_custom_call.1} parent=1 // loop_exit
      _
    %1281 = vsyncpa [#allocation3], 1
    %s1282 = scalar_lea.sflag [#allocation3], 1
    %1283 = vsyncpa %s1282, 1
    %1284 = vsyncpa [#allocation5], 1

// kernel: tpu_custom_call.1
$region0: #{tpu_custom_call.1}
  #allocation0 [shape = 'u32[]', space=smem, size = 0x4, offset = 0x4, fixed_abs, tag = 'smem constant byte address 0x4 - core index']
  #allocation1 [shape = 'u32[144,128]{1,0:T(1,128)}', space=vmem, size = 0x12000, scoped, tag = 'internal scratch']
  %s0 = inlined_call_operand.vmem [shape: f32[16,8], index: 0, kind: input, shape index: {}]
  %s1 = inlined_call_operand.hbm [shape: f32[4,128,128], index: 1, kind: input, shape index: {}]
  %s2 = inlined_call_operand.vmem [shape: f32[4,1,128], index: 2, kind: input, shape index: {}]
  %s3 = inlined_call_operand.hbm [shape: f32[4,128,128], index: 3, kind: input, shape index: {}]
  %s4 = inlined_call_operand.vmem [shape: f32[4,1,128], index: 4, kind: input, shape index: {}]
  %s5 = inlined_call_operand.hbm [shape: f32[128,128], index: 5, kind: input, shape index: {}]
  %s6 = inlined_call_operand.vmem [shape: f32[1,128], index: 6, kind: input, shape index: {}]
  %s7 = inlined_call_operand.vmem [shape: f32[16,1], index: 7, kind: output, shape index: {}]
  %s8 = sld [smem:[#allocation0]]
  $region73: #{tpu_custom_call.1} parent=0
    _
  %s10 = ssub.s32 1, %s8
  %s11 = scalar_select 0, %s10, %s8
  $region1: #{tpu_custom_call.1} parent=0
    #allocation2 [shape = 'u8[262144]{0}', space=vmem, size = 0x40000, scoped, tag = 'input window, operand 1, single buffered']
    #allocation3 [shape = 's32[2]{0}', space=sflag, size = 0x8, scoped, tag = 'scoped memory for tpu_custom_call.1']
    #allocation4 [shape = 'u8[262144]{0}', space=vmem, size = 0x40000, scoped, tag = 'input window, operand 3, single buffered']
    #allocation5 [shape = 's32[1]{0}', space=sflag, size = 0x4, scoped, tag = 'scoped memory for tpu_custom_call.1']
    #allocation6 [shape = 'u8[65536]{0}', space=vmem, size = 0x10000, scoped, tag = 'input window, operand 5, single buffered']
    %12 = vsyncpa [#allocation3], 0
    %13 = vsyncpa [#allocation5], 0
    loop: start=0, step=1, limit=4
    $region2: #{tpu_custom_call.1} parent=1 // loop_pre_header
      _
    $region3: #{tpu_custom_call.1} parent=1 // loop_header
      %s15 = sphi 0, %s19
      %p16 = scmp.ge.s32.totalorder %s15, 4
      %s25 = sphi 0, %s27
      %s28 = sphi 0, %s25
      %s29 = sphi 0, %s28
      %s45 = sphi 0, %s29
      %s49 = sphi 0, %s49
      %s51 = sphi 0, %s49
      %s52 = sphi 0, %s51
      %s66 = sphi 0, %s52
      %s70 = sphi 0, %s70
      %s72 = sphi 0, %s70
      %s73 = sphi 0, %s72
      %s87 = sphi 0, %s73
      %s91 = sphi 0, %s91
      %s93 = sphi 0, %s91
      %s94 = sphi 0, %s93
      %s108 = sphi 0, %s94
      %s112 = sphi 0, %s112
      %s114 = sphi 0, %s112
      %s115 = sphi 0, %s114
      %s129 = sphi 0, %s115
      %s133 = sphi 0, %s133
      %s135 = sphi 0, %s133
      %s136 = sphi 0, %s135
      %s150 = sphi 0, %s136
      %s154 = sphi 0, %s154
      %s156 = sphi 0, %s154
      %s157 = sphi 0, %s156
      %s171 = sphi 0, %s157
      %s177 = sphi 0, %s179
      %s180 = sphi 0, %s177
      %s181 = sphi 0, %s180
      %s197 = sphi 0, %s181
    $region4: #{tpu_custom_call.1} parent=1 // loop_header_branch
      %18 = sbr.rel (%p16) target = $region8
    $region5: #{tpu_custom_call.1} parent=1 // loop_body
      %s20 = ssub.s32 %s15, 1
      %s21 = ssub.s32 %s15, 2
      %s22 = sadd.s32 %s15, 1
      %s23 = ssub.s32 %s15, %s22
      %p24 = scmp.eq.s32.totalorder %s23, 0
      %s26 = sadd.s32 %s25, 1
      %s27 = scalar_select %p24, %s25, %s26
      %p30 = pneg %p24
      %p31 = scmp.eq.s32.totalorder %s15, 1
      %p32 = por %p30, %p31
      %p33 = scmp.ne.s32.totalorder %s25, %s28
      %p34 = scmp.eq.s32.totalorder %s15, 0
      %p35 = por %p33, %p34
      %p36 = scmp.ne.s32.totalorder %s25, %s28
      %p37 = scmp.eq.s32.totalorder %s20, 1
      %p38 = por %p36, %p37
      %p39 = scmp.ne.s32.totalorder %s28, %s29
      %p40 = scmp.eq.s32.totalorder %s20, 0
      %p41 = por %p39, %p40
      %p42 = scmp.ne.s32.totalorder %s28, %s29
      %p43 = scmp.eq.s32.totalorder %s21, 1
      %p44 = por %p42, %p43
      %p46 = scmp.ne.s32.totalorder %s29, %s45
      %p47 = scmp.eq.s32.totalorder %s21, 0
      %p48 = por %p46, %p47
      %s50 = sadd.s32 %s49, 1
      %p53 = scmp.eq.s32.totalorder %s15, 1
      %p54 = scmp.ne.s32.totalorder %s49, %s51
      %p55 = scmp.eq.s32.totalorder %s15, 0
      %p56 = por %p54, %p55
      %p57 = scmp.ne.s32.totalorder %s49, %s51
      %p58 = scmp.eq.s32.totalorder %s20, 1
      %p59 = por %p57, %p58
      %p60 = scmp.ne.s32.totalorder %s51, %s52
      %p61 = scmp.eq.s32.totalorder %s20, 0
      %p62 = por %p60, %p61
      %p63 = scmp.ne.s32.totalorder %s51, %s52
      %p64 = scmp.eq.s32.totalorder %s21, 1
      %p65 = por %p63, %p64
      %p67 = scmp.ne.s32.totalorder %s52, %s66
      %p68 = scmp.eq.s32.totalorder %s21, 0
      %p69 = por %p67, %p68
      %s71 = sadd.s32 %s70, 1
      %p74 = scmp.eq.s32.totalorder %s15, 1
      %p75 = scmp.ne.s32.totalorder %s70, %s72
      %p76 = scmp.eq.s32.totalorder %s15, 0
      %p77 = por %p75, %p76
      %p78 = scmp.ne.s32.totalorder %s70, %s72
      %p79 = scmp.eq.s32.totalorder %s20, 1
      %p80 = por %p78, %p79
      %p81 = scmp.ne.s32.totalorder %s72, %s73
      %p82 = scmp.eq.s32.totalorder %s20, 0
      %p83 = por %p81, %p82
      %p84 = scmp.ne.s32.totalorder %s72, %s73
      %p85 = scmp.eq.s32.totalorder %s21, 1
      %p86 = por %p84, %p85
      %p88 = scmp.ne.s32.totalorder %s73, %s87
      %p89 = scmp.eq.s32.totalorder %s21, 0
      %p90 = por %p88, %p89
      %s92 = sadd.s32 %s91, 1
      %p95 = scmp.eq.s32.totalorder %s15, 1
      %p96 = scmp.ne.s32.totalorder %s91, %s93
      %p97 = scmp.eq.s32.totalorder %s15, 0
      %p98 = por %p96, %p97
      %p99 = scmp.ne.s32.totalorder %s91, %s93
      %p100 = scmp.eq.s32.totalorder %s20, 1
      %p101 = por %p99, %p100
      %p102 = scmp.ne.s32.totalorder %s93, %s94
      %p103 = scmp.eq.s32.totalorder %s20, 0
      %p104 = por %p102, %p103
      %p105 = scmp.ne.s32.totalorder %s93, %s94
      %p106 = scmp.eq.s32.totalorder %s21, 1
      %p107 = por %p105, %p106
      %p109 = scmp.ne.s32.totalorder %s94, %s108
      %p110 = scmp.eq.s32.totalorder %s21, 0
      %p111 = por %p109, %p110
      %s113 = sadd.s32 %s112, 1
      %p116 = scmp.eq.s32.totalorder %s15, 1
      %p117 = scmp.ne.s32.totalorder %s112, %s114
      %p118 = scmp.eq.s32.totalorder %s15, 0
      %p119 = por %p117, %p118
      %p120 = scmp.ne.s32.totalorder %s112, %s114
      %p121 = scmp.eq.s32.totalorder %s20, 1
      %p122 = por %p120, %p121
      %p123 = scmp.ne.s32.totalorder %s114, %s115
      %p124 = scmp.eq.s32.totalorder %s20, 0
      %p125 = por %p123, %p124
      %p126 = scmp.ne.s32.totalorder %s114, %s115
      %p127 = scmp.eq.s32.totalorder %s21, 1
      %p128 = por %p126, %p127
      %p130 = scmp.ne.s32.totalorder %s115, %s129
      %p131 = scmp.eq.s32.totalorder %s21, 0
      %p132 = por %p130, %p131
      %s134 = sadd.s32 %s133, 1
      %p137 = scmp.eq.s32.totalorder %s15, 1
      %p138 = scmp.ne.s32.totalorder %s133, %s135
      %p139 = scmp.eq.s32.totalorder %s15, 0
      %p140 = por %p138, %p139
      %p141 = scmp.ne.s32.totalorder %s133, %s135
      %p142 = scmp.eq.s32.totalorder %s20, 1
      %p143 = por %p141, %p142
      %p144 = scmp.ne.s32.totalorder %s135, %s136
      %p145 = scmp.eq.s32.totalorder %s20, 0
      %p146 = por %p144, %p145
      %p147 = scmp.ne.s32.totalorder %s135, %s136
      %p148 = scmp.eq.s32.totalorder %s21, 1
      %p149 = por %p147, %p148
      %p151 = scmp.ne.s32.totalorder %s136, %s150
      %p152 = scmp.eq.s32.totalorder %s21, 0
      %p153 = por %p151, %p152
      %s155 = sadd.s32 %s154, 1
      %p158 = scmp.eq.s32.totalorder %s15, 1
      %p159 = scmp.ne.s32.totalorder %s154, %s156
      %p160 = scmp.eq.s32.totalorder %s15, 0
      %p161 = por %p159, %p160
      %p162 = scmp.ne.s32.totalorder %s154, %s156
      %p163 = scmp.eq.s32.totalorder %s20, 1
      %p164 = por %p162, %p163
      %p165 = scmp.ne.s32.totalorder %s156, %s157
      %p166 = scmp.eq.s32.totalorder %s20, 0
      %p167 = por %p165, %p166
      %p168 = scmp.ne.s32.totalorder %s156, %s157
      %p169 = scmp.eq.s32.totalorder %s21, 1
      %p170 = por %p168, %p169
      %p172 = scmp.ne.s32.totalorder %s157, %s171
      %p173 = scmp.eq.s32.totalorder %s21, 0
      %p174 = por %p172, %p173
      %s175 = ssub.s32 %s15, %s22
      %p176 = scmp.eq.s32.totalorder %s175, 0
      %s178 = sadd.s32 %s177, 1
      %s179 = scalar_select %p176, %s177, %s178
      %p182 = pneg %p176
      %p183 = scmp.eq.s32.totalorder %s15, 1
      %p184 = por %p182, %p183
      %p185 = scmp.ne.s32.totalorder %s177, %s180
      %p186 = scmp.eq.s32.totalorder %s15, 0
      %p187 = por %p185, %p186
      %p188 = scmp.ne.s32.totalorder %s177, %s180
      %p189 = scmp.eq.s32.totalorder %s20, 1
      %p190 = por %p188, %p189
      %p191 = scmp.ne.s32.totalorder %s180, %s181
      %p192 = scmp.eq.s32.totalorder %s20, 0
      %p193 = por %p191, %p192
      %p194 = scmp.ne.s32.totalorder %s180, %s181
      %p195 = scmp.eq.s32.totalorder %s21, 1
      %p196 = por %p194, %p195
      %p198 = scmp.ne.s32.totalorder %s181, %s197
      %p199 = scmp.eq.s32.totalorder %s21, 0
      %p200 = por %p198, %p199
      %p201 = scmp.le.s32.totalorder 1, %s15
      %p202 = scmp.lt.s32.totalorder %s15, 3
      %p203 = pnand %p201, %p202
      %p204 = pneg %p203
      // Predicated region
      $region9: #{tpu_custom_call.1} parent=5 // pred_check
        _
      $region10: #{tpu_custom_call.1} parent=5 // pred_check_branch
        %206 = sbr.rel (%p203) target = $region12
      $region11: #{tpu_custom_call.1} parent=5 // pred_region
        %s207 = ssub.s32 %s15, 1
        // Predicated region
        $region13: #{tpu_custom_call.1} parent=11 // pred_check
          %p208 = pneg %p62
        $region14: #{tpu_custom_call.1} parent=11 // pred_check_branch
          %210 = sbr.rel (%p208) target = $region16
        $region15: #{tpu_custom_call.1} parent=11 // pred_region
          %s212 = ssub.s32 8192, 8192
          %213 = vsyncadd [#allocation3], %s212
          %s214 = sshll.u32 [#allocation2], 4
          %s215 = int_to_ptr.vmem [resolvable:$true] %s214
          %220 = dma.hbm_to_vmem [thread:$0]  %s1, 8192, %s215, [#allocation3], 128, 128, 8
        $region16: #{tpu_custom_call.1} parent=11 // pred_fallthru
          _
        // Predicated region
        $region17: #{tpu_custom_call.1} parent=11 // pred_check
          %p221 = pneg %p83
        $region18: #{tpu_custom_call.1} parent=11 // pred_check_branch
          %223 = sbr.rel (%p221) target = $region20
        $region19: #{tpu_custom_call.1} parent=11 // pred_region
          _
        $region20: #{tpu_custom_call.1} parent=11 // pred_fallthru
          _
        // Predicated region
        $region21: #{tpu_custom_call.1} parent=11 // pred_check
          %p224 = pneg %p104
        $region22: #{tpu_custom_call.1} parent=11 // pred_check_branch
          %226 = sbr.rel (%p224) target = $region24
        $region23: #{tpu_custom_call.1} parent=11 // pred_region
          %s228 = ssub.s32 8192, 8192
          %229 = vsyncadd [#allocation5], %s228
          %s230 = sshll.u32 [#allocation4], 4
          %s231 = int_to_ptr.vmem [resolvable:$true] %s230
          %236 = dma.hbm_to_vmem [thread:$0]  %s3, 8192, %s231, [#allocation5], 128, 128, 8
        $region24: #{tpu_custom_call.1} parent=11 // pred_fallthru
          _
        // Predicated region
        $region25: #{tpu_custom_call.1} parent=11 // pred_check
          %p237 = pneg %p125
        $region26: #{tpu_custom_call.1} parent=11 // pred_check_branch
          %239 = sbr.rel (%p237) target = $region28
        $region27: #{tpu_custom_call.1} parent=11 // pred_region
          _
        $region28: #{tpu_custom_call.1} parent=11 // pred_fallthru
          _
        // Predicated region
        $region29: #{tpu_custom_call.1} parent=11 // pred_check
          %p240 = pneg %p146
        $region30: #{tpu_custom_call.1} parent=11 // pred_check_branch
          %242 = sbr.rel (%p240) target = $region32
        $region31: #{tpu_custom_call.1} parent=11 // pred_region
          %s244 = ssub.s32 2048, 2048
          %245 = vsyncadd [#allocation5], %s244
          %s246 = sshll.u32 [#allocation6], 4
          %s247 = int_to_ptr.vmem [resolvable:$true] %s246
          %252 = dma.hbm_to_vmem [thread:$0]  %s5, 2048, %s247, [#allocation5], 128, 128, 8
        $region32: #{tpu_custom_call.1} parent=11 // pred_fallthru
          _
        // Predicated region
        $region33: #{tpu_custom_call.1} parent=11 // pred_check
          %p253 = pneg %p167
        $region34: #{tpu_custom_call.1} parent=11 // pred_check_branch
          %255 = sbr.rel (%p253) target = $region36
        $region35: #{tpu_custom_call.1} parent=11 // pred_region
          _
        $region36: #{tpu_custom_call.1} parent=11 // pred_fallthru
          _
      $region12: #{tpu_custom_call.1} parent=5 // pred_fallthru
        _
      %p256 = scmp.lt.s32.totalorder %s15, 2
      // Predicated region
      $region37: #{tpu_custom_call.1} parent=5 // pred_check
        %p257 = pneg %p256
      $region38: #{tpu_custom_call.1} parent=5 // pred_check_branch
        %259 = sbr.rel (%p257) target = $region40
      $region39: #{tpu_custom_call.1} parent=5 // pred_region
        // Predicated region
        $region41: #{tpu_custom_call.1} parent=39 // pred_check
          %p260 = pneg %p35
        $region42: #{tpu_custom_call.1} parent=39 // pred_check_branch
          %262 = sbr.rel (%p260) target = $region44
        $region43: #{tpu_custom_call.1} parent=39 // pred_region
          %p263 = scmp.lt.s32.totalorder %s15, 1
          %s264 = scalar_select %p263, %s15, 1
          %s265 = smul.addr %s264, 8
          %s266 = scalar_lea.vmem %s0, %s265
        $region44: #{tpu_custom_call.1} parent=39 // pred_fallthru
          _
      $region40: #{tpu_custom_call.1} parent=5 // pred_fallthru
        _
      %p267 = scmp.le.s32.totalorder 1, %s15
      %p268 = scmp.lt.s32.totalorder %s15, 3
      %p269 = pnand %p267, %p268
      %p270 = pneg %p269
      // Predicated region
      $region45: #{tpu_custom_call.1} parent=5 // pred_check
        _
      $region46: #{tpu_custom_call.1} parent=5 // pred_check_branch
        %272 = sbr.rel (%p269) target = $region48
      $region47: #{tpu_custom_call.1} parent=5 // pred_region
        %s273 = ssub.s32 %s15, 1
        // Predicated region
        $region49: #{tpu_custom_call.1} parent=47 // pred_check
          %p274 = pneg %p62
        $region50: #{tpu_custom_call.1} parent=47 // pred_check_branch
          %276 = sbr.rel (%p274) target = $region52
        $region51: #{tpu_custom_call.1} parent=47 // pred_region
          %277 = dma.done [#allocation3], 8192
        $region52: #{tpu_custom_call.1} parent=47 // pred_fallthru
          _
        // Predicated region
        $region53: #{tpu_custom_call.1} parent=47 // pred_check
          %p278 = pneg %p104
        $region54: #{tpu_custom_call.1} parent=47 // pred_check_branch
          %280 = sbr.rel (%p278) target = $region56
        $region55: #{tpu_custom_call.1} parent=47 // pred_region
          %281 = dma.done [#allocation5], 8192
        $region56: #{tpu_custom_call.1} parent=47 // pred_fallthru
          _
        // Predicated region
        $region57: #{tpu_custom_call.1} parent=47 // pred_check
          %p282 = pneg %p146
        $region58: #{tpu_custom_call.1} parent=47 // pred_check_branch
          %284 = sbr.rel (%p282) target = $region60
        $region59: #{tpu_custom_call.1} parent=47 // pred_region
          %285 = dma.done [#allocation5], 2048
        $region60: #{tpu_custom_call.1} parent=47 // pred_fallthru
          _
        %p286 = scmp.lt.s32.totalorder %s20, 1
        %s287 = scalar_select %p286, %s20, 1
        %s288 = smul.addr %s287, 8
        %s289 = scalar_lea.vmem %s0, %s288
        %p290 = pneg %p41
        %p291 = pneg %p38
        %p292 = pneg %p62
        %p293 = pneg %p59
        %p294 = pneg %p83
        %p295 = pneg %p80
        %p296 = pneg %p104
        %p297 = pneg %p101
        %p298 = pneg %p125
        %p299 = pneg %p122
        %p300 = pneg %p146
        %p301 = pneg %p143
        %p302 = pneg %p167
        %p303 = pneg %p164
        %p304 = pneg %p193
        %p305 = pneg %p190
        %p306 = scmp.lt.s32.totalorder %s20, 1
        %s307 = scalar_select %p306, %s20, 1
        %s308 = smul.addr %s307, 8
        %s309 = scalar_lea.vmem %s7, %s308
        %p310 = scmp.lt.s32.totalorder %s20, 1
        %s311 = scalar_select %p310, %s20, 1
        %s312 = smul.addr %s311, 8
        %s313 = scalar_lea.vmem %s0, %s312
        %p314 = scmp.lt.s32.totalorder %s20, 1
        %s315 = scalar_select %p314, %s20, 1
        %s316 = smul.addr %s315, 8
        %s317 = scalar_lea.vmem %s7, %s316
        %v318 = vlaneseq
        %v319 = vshrl.u32 %v318, 7
        %v320 = vlaneseq
        %v321 = vand.u32 %v320, 127
        %vm322 = vcmp.eq.s32.totalorder %v319, %v321
        %v323 = vsel %vm322, 1.0, 0.0
        %v324 = vld [vmem:[%s313] sm:$0xff]
        %vm325 = vcmask 64512
        %v327 = vsel %vm325, %v324, 0
        %329 = vmatprep.subr.mxu0 0.0
        %330 = vmatpush1.msra.mxu0 %v323
        %331 = vmatprep.subr.mxu0 0.0
        %332 = vmatpush1.msra.mxu0 0.0
        %333 = vmatprep.subr.mxu0 0.0
        %334 = vmatpush1.msra.mxu0 0.0
        %335 = vmatprep.subr.mxu0 0.0
        %336 = vmatpush1.msra.mxu0 0.0
        %337 = vmatprep.subr.mxu0 0.0
        %338 = vmatpush1.msra.mxu0 0.0
        %339 = vmatprep.subr.mxu0 0.0
        %340 = vmatpush1.msra.mxu0 0.0
        %341 = vmatprep.subr.mxu0 0.0
        %342 = vmatpush1.msra.mxu0 0.0
        %343 = vmatprep.subr.mxu0 0.0
        %344 = vmatpush1.msra.mxu0 0.0
        %345 = vmatprep.subr.mxu0 0.0
        %346 = vmatpush1.msra.mxu0 0.0
        %347 = vmatprep.subr.mxu0 0.0
        %348 = vmatpush1.msra.mxu0 0.0
        %349 = vmatprep.subr.mxu0 0.0
        %350 = vmatpush1.msra.mxu0 0.0
        %351 = vmatprep.subr.mxu0 0.0
        %352 = vmatpush1.msra.mxu0 0.0
        %353 = vmatprep.subr.mxu0 0.0
        %354 = vmatpush1.msra.mxu0 0.0
        %355 = vmatprep.subr.mxu0 0.0
        %356 = vmatpush1.msra.mxu0 0.0
        %357 = vmatprep.subr.mxu0 0.0
        %358 = vmatpush1.msra.mxu0 0.0
        %359 = vmatprep.subr.mxu0 0.0
        %360 = vmatpush1.msra.mxu0 0.0
        %361 = vmatprep.subr.mxu0 0.0
        %362 = vmatpush1.msra.mxu0 0.0
        %363 = vmatprep.subr.mxu0 0.0
        %364 = vmatpush1.msra.mxu0 0.0
        %365 = vmatprep.subr.mxu0 0.0
        %366 = vmatpush1.msra.mxu0 0.0
        %367 = vmatprep.subr.mxu0 0.0
        %368 = vmatpush1.msra.mxu0 0.0
        %369 = vmatprep.subr.mxu0 0.0
        %370 = vmatpush1.msra.mxu0 0.0
        %371 = vmatprep.subr.mxu0 0.0
        %372 = vmatpush1.msra.mxu0 0.0
        %373 = vmatprep.subr.mxu0 0.0
        %374 = vmatpush1.msra.mxu0 0.0
        %375 = vmatprep.subr.mxu0 0.0
        %376 = vmatpush1.msra.mxu0 0.0
        %377 = vmatprep.subr.mxu0 0.0
        %378 = vmatpush1.msra.mxu0 0.0
        %379 = vmatprep.subr.mxu0 0.0
        %380 = vmatpush1.msra.mxu0 0.0
        %381 = vmatprep.subr.mxu0 0.0
        %382 = vmatpush1.msra.mxu0 0.0
        %383 = vmatprep.subr.mxu0 0.0
        %384 = vmatpush1.msra.mxu0 0.0
        %385 = vmatprep.subr.mxu0 0.0
        %386 = vmatpush1.msra.mxu0 0.0
        %387 = vmatprep.subr.mxu0 0.0
        %388 = vmatpush1.msra.mxu0 0.0
        %389 = vmatprep.subr.mxu0 0.0
        %390 = vmatpush1.msra.mxu0 0.0
        %391 = vmatprep.subr.mxu0 0.0
        %392 = vmatpush1.msra.mxu0 0.0
        %393 = vmatprep.mubr.f32.mxu0 0.0
        %394 = vmatmul.mubr.f32.gmra.mrb[0].mxu0 %v327
        %v395 = vpop.f32.mrb[0].mxu0
        %v396 = vadd.f32 0.0, %v395
        %v397 = vpop.f32.mrb[0].mxu0
        %398 = vdwg.mxu0
        %v399 = vld [vmem:[#allocation2] sm:$0xff]
        %v400 = vld [vmem:[#allocation2 + $0x8] sm:$0xff]
        %v401 = vld [vmem:[#allocation2 + $0x10] sm:$0xff]
        %v402 = vld [vmem:[#allocation2 + $0x18] sm:$0xff]
        %v403 = vld [vmem:[#allocation2 + $0x20] sm:$0xff]
        %v404 = vld [vmem:[#allocation2 + $0x28] sm:$0xff]
        %v405 = vld [vmem:[#allocation2 + $0x30] sm:$0xff]
        %v406 = vld [vmem:[#allocation2 + $0x38] sm:$0xff]
        %v407 = vld [vmem:[#allocation2 + $0x40] sm:$0xff]
        %v408 = vld [vmem:[#allocation2 + $0x48] sm:$0xff]
        %v409 = vld [vmem:[#allocation2 + $0x50] sm:$0xff]
        %v410 = vld [vmem:[#allocation2 + $0x58] sm:$0xff]
        %v411 = vld [vmem:[#allocation2 + $0x60] sm:$0xff]
        %v412 = vld [vmem:[#allocation2 + $0x68] sm:$0xff]
        %v413 = vld [vmem:[#allocation2 + $0x70] sm:$0xff]
        %v414 = vld [vmem:[#allocation2 + $0x78] sm:$0xff]
        %v415 = vld [vmem:[%s2] sm:$0x1]
        %v417 = vlaneseq
        %v418 = vshrl.u32 %v417, 7
        %v419 = vsub.s32 0, %v418
        %v420 = vrot.slane %v415, %v419
        %422 = vmatprep.subr.mxu0 0.0
        %423 = vmatpush1.msra.mxu0 %v399
        %424 = vmatprep.subr.mxu0 0.0
        %425 = vmatpush1.msra.mxu0 %v400
        %426 = vmatprep.subr.mxu0 0.0
        %427 = vmatpush1.msra.mxu0 %v401
        %428 = vmatprep.subr.mxu0 0.0
        %429 = vmatpush1.msra.mxu0 %v402
        %430 = vmatprep.subr.mxu0 0.0
        %431 = vmatpush1.msra.mxu0 %v403
        %432 = vmatprep.subr.mxu0 0.0
        %433 = vmatpush1.msra.mxu0 %v404
        %434 = vmatprep.subr.mxu0 0.0
        %435 = vmatpush1.msra.mxu0 %v405
        %436 = vmatprep.subr.mxu0 0.0
        %437 = vmatpush1.msra.mxu0 %v406
        %438 = vmatprep.subr.mxu0 0.0
        %439 = vmatpush1.msra.mxu0 %v407
        %440 = vmatprep.subr.mxu0 0.0
        %441 = vmatpush1.msra.mxu0 %v408
        %442 = vmatprep.subr.mxu0 0.0
        %443 = vmatpush1.msra.mxu0 %v409
        %444 = vmatprep.subr.mxu0 0.0
        %445 = vmatpush1.msra.mxu0 %v410
        %446 = vmatprep.subr.mxu0 0.0
        %447 = vmatpush1.msra.mxu0 %v411
        %448 = vmatprep.subr.mxu0 0.0
        %449 = vmatpush1.msra.mxu0 %v412
        %450 = vmatprep.subr.mxu0 0.0
        %451 = vmatpush1.msra.mxu0 %v413
        %452 = vmatprep.subr.mxu0 0.0
        %453 = vmatpush1.msra.mxu0 %v414
        %454 = vmatprep.subr.mxu0 0.0
        %455 = vmatpush1.msra.mxu0 0.0
        %456 = vmatprep.subr.mxu0 0.0
        %457 = vmatpush1.msra.mxu0 0.0
        %458 = vmatprep.subr.mxu0 0.0
        %459 = vmatpush1.msra.mxu0 0.0
        %460 = vmatprep.subr.mxu0 0.0
        %461 = vmatpush1.msra.mxu0 0.0
        %462 = vmatprep.subr.mxu0 0.0
        %463 = vmatpush1.msra.mxu0 0.0
        %464 = vmatprep.subr.mxu0 0.0
        %465 = vmatpush1.msra.mxu0 0.0
        %466 = vmatprep.subr.mxu0 0.0
        %467 = vmatpush1.msra.mxu0 0.0
        %468 = vmatprep.subr.mxu0 0.0
        %469 = vmatpush1.msra.mxu0 0.0
        %470 = vmatprep.subr.mxu0 0.0
        %471 = vmatpush1.msra.mxu0 0.0
        %472 = vmatprep.subr.mxu0 0.0
        %473 = vmatpush1.msra.mxu0 0.0
        %474 = vmatprep.subr.mxu0 0.0
        %475 = vmatpush1.msra.mxu0 0.0
        %476 = vmatprep.subr.mxu0 0.0
        %477 = vmatpush1.msra.mxu0 0.0
        %478 = vmatprep.subr.mxu0 0.0
        %479 = vmatpush1.msra.mxu0 0.0
        %480 = vmatprep.subr.mxu0 0.0
        %481 = vmatpush1.msra.mxu0 0.0
        %482 = vmatprep.subr.mxu0 0.0
        %483 = vmatpush1.msra.mxu0 0.0
        %484 = vmatprep.subr.mxu0 0.0
        %485 = vmatpush1.msra.mxu0 0.0
        %486 = vmatprep.mubr.f32.mxu0 0.0
        %487 = vmatmul.mubr.f32.gmra.mrb[0].mxu0 %v396
        %v488 = vpop.f32.mrb[0].mxu0
        %v489 = vadd.f32 %v420, %v488
        %v490 = vpop.f32.mrb[0].mxu0
        %491 = vdwg.mxu0
        %v492 = vtanh.pop %v489
        %v493 = vld [vmem:[#allocation4] sm:$0xff]
        %v494 = vld [vmem:[#allocation4 + $0x8] sm:$0xff]
        %v495 = vld [vmem:[#allocation4 + $0x10] sm:$0xff]
        %v496 = vld [vmem:[#allocation4 + $0x18] sm:$0xff]
        %v497 = vld [vmem:[#allocation4 + $0x20] sm:$0xff]
        %v498 = vld [vmem:[#allocation4 + $0x28] sm:$0xff]
        %v499 = vld [vmem:[#allocation4 + $0x30] sm:$0xff]
        %v500 = vld [vmem:[#allocation4 + $0x38] sm:$0xff]
        %v501 = vld [vmem:[#allocation4 + $0x40] sm:$0xff]
        %v502 = vld [vmem:[#allocation4 + $0x48] sm:$0xff]
        %v503 = vld [vmem:[#allocation4 + $0x50] sm:$0xff]
        %v504 = vld [vmem:[#allocation4 + $0x58] sm:$0xff]
        %v505 = vld [vmem:[#allocation4 + $0x60] sm:$0xff]
        %v506 = vld [vmem:[#allocation4 + $0x68] sm:$0xff]
        %v507 = vld [vmem:[#allocation4 + $0x70] sm:$0xff]
        %v508 = vld [vmem:[#allocation4 + $0x78] sm:$0xff]
        %v509 = vld [vmem:[%s4] sm:$0x1]
        %v511 = vlaneseq
        %v512 = vshrl.u32 %v511, 7
        %v513 = vsub.s32 0, %v512
        %v514 = vrot.slane %v509, %v513
        %516 = vmatprep.subr.mxu0 0.0
        %517 = vmatpush1.msra.mxu0 %v493
        %518 = vmatprep.subr.mxu0 0.0
        %519 = vmatpush1.msra.mxu0 %v494
        %520 = vmatprep.subr.mxu0 0.0
        %521 = vmatpush1.msra.mxu0 %v495
        %522 = vmatprep.subr.mxu0 0.0
        %523 = vmatpush1.msra.mxu0 %v496
        %524 = vmatprep.subr.mxu0 0.0
        %525 = vmatpush1.msra.mxu0 %v497
        %526 = vmatprep.subr.mxu0 0.0
        %527 = vmatpush1.msra.mxu0 %v498
        %528 = vmatprep.subr.mxu0 0.0
        %529 = vmatpush1.msra.mxu0 %v499
        %530 = vmatprep.subr.mxu0 0.0
        %531 = vmatpush1.msra.mxu0 %v500
        %532 = vmatprep.subr.mxu0 0.0
        %533 = vmatpush1.msra.mxu0 %v501
        %534 = vmatprep.subr.mxu0 0.0
        %535 = vmatpush1.msra.mxu0 %v502
        %536 = vmatprep.subr.mxu0 0.0
        %537 = vmatpush1.msra.mxu0 %v503
        %538 = vmatprep.subr.mxu0 0.0
        %539 = vmatpush1.msra.mxu0 %v504
        %540 = vmatprep.subr.mxu0 0.0
        %541 = vmatpush1.msra.mxu0 %v505
        %542 = vmatprep.subr.mxu0 0.0
        %543 = vmatpush1.msra.mxu0 %v506
        %544 = vmatprep.subr.mxu0 0.0
        %545 = vmatpush1.msra.mxu0 %v507
        %546 = vmatprep.subr.mxu0 0.0
        %547 = vmatpush1.msra.mxu0 %v508
        %548 = vmatprep.subr.mxu0 0.0
        %549 = vmatpush1.msra.mxu0 0.0
        %550 = vmatprep.subr.mxu0 0.0
        %551 = vmatpush1.msra.mxu0 0.0
        %552 = vmatprep.subr.mxu0 0.0
        %553 = vmatpush1.msra.mxu0 0.0
        %554 = vmatprep.subr.mxu0 0.0
        %555 = vmatpush1.msra.mxu0 0.0
        %556 = vmatprep.subr.mxu0 0.0
        %557 = vmatpush1.msra.mxu0 0.0
        %558 = vmatprep.subr.mxu0 0.0
        %559 = vmatpush1.msra.mxu0 0.0
        %560 = vmatprep.subr.mxu0 0.0
        %561 = vmatpush1.msra.mxu0 0.0
        %562 = vmatprep.subr.mxu0 0.0
        %563 = vmatpush1.msra.mxu0 0.0
        %564 = vmatprep.subr.mxu0 0.0
        %565 = vmatpush1.msra.mxu0 0.0
        %566 = vmatprep.subr.mxu0 0.0
        %567 = vmatpush1.msra.mxu0 0.0
        %568 = vmatprep.subr.mxu0 0.0
        %569 = vmatpush1.msra.mxu0 0.0
        %570 = vmatprep.subr.mxu0 0.0
        %571 = vmatpush1.msra.mxu0 0.0
        %572 = vmatprep.subr.mxu0 0.0
        %573 = vmatpush1.msra.mxu0 0.0
        %574 = vmatprep.subr.mxu0 0.0
        %575 = vmatpush1.msra.mxu0 0.0
        %576 = vmatprep.subr.mxu0 0.0
        %577 = vmatpush1.msra.mxu0 0.0
        %578 = vmatprep.subr.mxu0 0.0
        %579 = vmatpush1.msra.mxu0 0.0
        %580 = vmatprep.mubr.f32.mxu0 0.0
        %581 = vmatmul.mubr.f32.gmra.mrb[0].mxu0 %v492
        %v582 = vpop.f32.mrb[0].mxu0
        %v583 = vadd.f32 %v514, %v582
        %v584 = vpop.f32.mrb[0].mxu0
        %585 = vdwg.mxu0
        %v586 = vtanh.pop %v583
        %v587 = vadd.f32 %v586, %v396
        %s588 = scalar_lea.vmem [#allocation2], 128
        %v589 = vld [vmem:[%s588] sm:$0xff]
        %v590 = vld [vmem:[%s588 + $0x8] sm:$0xff]
        %v591 = vld [vmem:[%s588 + $0x10] sm:$0xff]
        %v592 = vld [vmem:[%s588 + $0x18] sm:$0xff]
        %v593 = vld [vmem:[%s588 + $0x20] sm:$0xff]
        %v594 = vld [vmem:[%s588 + $0x28] sm:$0xff]
        %v595 = vld [vmem:[%s588 + $0x30] sm:$0xff]
        %v596 = vld [vmem:[%s588 + $0x38] sm:$0xff]
        %v597 = vld [vmem:[%s588 + $0x40] sm:$0xff]
        %v598 = vld [vmem:[%s588 + $0x48] sm:$0xff]
        %v599 = vld [vmem:[%s588 + $0x50] sm:$0xff]
        %v600 = vld [vmem:[%s588 + $0x58] sm:$0xff]
        %v601 = vld [vmem:[%s588 + $0x60] sm:$0xff]
        %v602 = vld [vmem:[%s588 + $0x68] sm:$0xff]
        %v603 = vld [vmem:[%s588 + $0x70] sm:$0xff]
        %v604 = vld [vmem:[%s588 + $0x78] sm:$0xff]
        %s605 = scalar_lea.vmem %s2, 1
        %v606 = vld [vmem:[%s605] sm:$0x1]
        %v608 = vlaneseq
        %v609 = vshrl.u32 %v608, 7
        %v610 = vsub.s32 0, %v609
        %v611 = vrot.slane %v606, %v610
        %613 = vmatprep.subr.mxu0 0.0
        %614 = vmatpush1.msra.mxu0 %v589
        %615 = vmatprep.subr.mxu0 0.0
        %616 = vmatpush1.msra.mxu0 %v590
        %617 = vmatprep.subr.mxu0 0.0
        %618 = vmatpush1.msra.mxu0 %v591
        %619 = vmatprep.subr.mxu0 0.0
        %620 = vmatpush1.msra.mxu0 %v592
        %621 = vmatprep.subr.mxu0 0.0
        %622 = vmatpush1.msra.mxu0 %v593
        %623 = vmatprep.subr.mxu0 0.0
        %624 = vmatpush1.msra.mxu0 %v594
        %625 = vmatprep.subr.mxu0 0.0
        %626 = vmatpush1.msra.mxu0 %v595
        %627 = vmatprep.subr.mxu0 0.0
        %628 = vmatpush1.msra.mxu0 %v596
        %629 = vmatprep.subr.mxu0 0.0
        %630 = vmatpush1.msra.mxu0 %v597
        %631 = vmatprep.subr.mxu0 0.0
        %632 = vmatpush1.msra.mxu0 %v598
        %633 = vmatprep.subr.mxu0 0.0
        %634 = vmatpush1.msra.mxu0 %v599
        %635 = vmatprep.subr.mxu0 0.0
        %636 = vmatpush1.msra.mxu0 %v600
        %637 = vmatprep.subr.mxu0 0.0
        %638 = vmatpush1.msra.mxu0 %v601
        %639 = vmatprep.subr.mxu0 0.0
        %640 = vmatpush1.msra.mxu0 %v602
        %641 = vmatprep.subr.mxu0 0.0
        %642 = vmatpush1.msra.mxu0 %v603
        %643 = vmatprep.subr.mxu0 0.0
        %644 = vmatpush1.msra.mxu0 %v604
        %645 = vmatprep.subr.mxu0 0.0
        %646 = vmatpush1.msra.mxu0 0.0
        %647 = vmatprep.subr.mxu0 0.0
        %648 = vmatpush1.msra.mxu0 0.0
        %649 = vmatprep.subr.mxu0 0.0
        %650 = vmatpush1.msra.mxu0 0.0
        %651 = vmatprep.subr.mxu0 0.0
        %652 = vmatpush1.msra.mxu0 0.0
        %653 = vmatprep.subr.mxu0 0.0
        %654 = vmatpush1.msra.mxu0 0.0
        %655 = vmatprep.subr.mxu0 0.0
        %656 = vmatpush1.msra.mxu0 0.0
        %657 = vmatprep.subr.mxu0 0.0
        %658 = vmatpush1.msra.mxu0 0.0
        %659 = vmatprep.subr.mxu0 0.0
        %660 = vmatpush1.msra.mxu0 0.0
        %661 = vmatprep.subr.mxu0 0.0
        %662 = vmatpush1.msra.mxu0 0.0
        %663 = vmatprep.subr.mxu0 0.0
        %664 = vmatpush1.msra.mxu0 0.0
        %665 = vmatprep.subr.mxu0 0.0
        %666 = vmatpush1.msra.mxu0 0.0
        %667 = vmatprep.subr.mxu0 0.0
        %668 = vmatpush1.msra.mxu0 0.0
        %669 = vmatprep.subr.mxu0 0.0
        %670 = vmatpush1.msra.mxu0 0.0
        %671 = vmatprep.subr.mxu0 0.0
        %672 = vmatpush1.msra.mxu0 0.0
        %673 = vmatprep.subr.mxu0 0.0
        %674 = vmatpush1.msra.mxu0 0.0
        %675 = vmatprep.subr.mxu0 0.0
        %676 = vmatpush1.msra.mxu0 0.0
        %677 = vmatprep.mubr.f32.mxu0 0.0
        %678 = vmatmul.mubr.f32.gmra.mrb[0].mxu0 %v587
        %v679 = vpop.f32.mrb[0].mxu0
        %v680 = vadd.f32 %v611, %v679
        %v681 = vpop.f32.mrb[0].mxu0
        %682 = vdwg.mxu0
        %v683 = vtanh.pop %v680
        %s684 = scalar_lea.vmem [#allocation4], 128
        %v685 = vld [vmem:[%s684] sm:$0xff]
        %v686 = vld [vmem:[%s684 + $0x8] sm:$0xff]
        %v687 = vld [vmem:[%s684 + $0x10] sm:$0xff]
        %v688 = vld [vmem:[%s684 + $0x18] sm:$0xff]
        %v689 = vld [vmem:[%s684 + $0x20] sm:$0xff]
        %v690 = vld [vmem:[%s684 + $0x28] sm:$0xff]
        %v691 = vld [vmem:[%s684 + $0x30] sm:$0xff]
        %v692 = vld [vmem:[%s684 + $0x38] sm:$0xff]
        %v693 = vld [vmem:[%s684 + $0x40] sm:$0xff]
        %v694 = vld [vmem:[%s684 + $0x48] sm:$0xff]
        %v695 = vld [vmem:[%s684 + $0x50] sm:$0xff]
        %v696 = vld [vmem:[%s684 + $0x58] sm:$0xff]
        %v697 = vld [vmem:[%s684 + $0x60] sm:$0xff]
        %v698 = vld [vmem:[%s684 + $0x68] sm:$0xff]
        %v699 = vld [vmem:[%s684 + $0x70] sm:$0xff]
        %v700 = vld [vmem:[%s684 + $0x78] sm:$0xff]
        %s701 = scalar_lea.vmem %s4, 1
        %v702 = vld [vmem:[%s701] sm:$0x1]
        %v704 = vlaneseq
        %v705 = vshrl.u32 %v704, 7
        %v706 = vsub.s32 0, %v705
        %v707 = vrot.slane %v702, %v706
        %709 = vmatprep.subr.mxu0 0.0
        %710 = vmatpush1.msra.mxu0 %v685
        %711 = vmatprep.subr.mxu0 0.0
        %712 = vmatpush1.msra.mxu0 %v686
        %713 = vmatprep.subr.mxu0 0.0
        %714 = vmatpush1.msra.mxu0 %v687
        %715 = vmatprep.subr.mxu0 0.0
        %716 = vmatpush1.msra.mxu0 %v688
        %717 = vmatprep.subr.mxu0 0.0
        %718 = vmatpush1.msra.mxu0 %v689
        %719 = vmatprep.subr.mxu0 0.0
        %720 = vmatpush1.msra.mxu0 %v690
        %721 = vmatprep.subr.mxu0 0.0
        %722 = vmatpush1.msra.mxu0 %v691
        %723 = vmatprep.subr.mxu0 0.0
        %724 = vmatpush1.msra.mxu0 %v692
        %725 = vmatprep.subr.mxu0 0.0
        %726 = vmatpush1.msra.mxu0 %v693
        %727 = vmatprep.subr.mxu0 0.0
        %728 = vmatpush1.msra.mxu0 %v694
        %729 = vmatprep.subr.mxu0 0.0
        %730 = vmatpush1.msra.mxu0 %v695
        %731 = vmatprep.subr.mxu0 0.0
        %732 = vmatpush1.msra.mxu0 %v696
        %733 = vmatprep.subr.mxu0 0.0
        %734 = vmatpush1.msra.mxu0 %v697
        %735 = vmatprep.subr.mxu0 0.0
        %736 = vmatpush1.msra.mxu0 %v698
        %737 = vmatprep.subr.mxu0 0.0
        %738 = vmatpush1.msra.mxu0 %v699
        %739 = vmatprep.subr.mxu0 0.0
        %740 = vmatpush1.msra.mxu0 %v700
        %741 = vmatprep.subr.mxu0 0.0
        %742 = vmatpush1.msra.mxu0 0.0
        %743 = vmatprep.subr.mxu0 0.0
        %744 = vmatpush1.msra.mxu0 0.0
        %745 = vmatprep.subr.mxu0 0.0
        %746 = vmatpush1.msra.mxu0 0.0
        %747 = vmatprep.subr.mxu0 0.0
        %748 = vmatpush1.msra.mxu0 0.0
        %749 = vmatprep.subr.mxu0 0.0
        %750 = vmatpush1.msra.mxu0 0.0
        %751 = vmatprep.subr.mxu0 0.0
        %752 = vmatpush1.msra.mxu0 0.0
        %753 = vmatprep.subr.mxu0 0.0
        %754 = vmatpush1.msra.mxu0 0.0
        %755 = vmatprep.subr.mxu0 0.0
        %756 = vmatpush1.msra.mxu0 0.0
        %757 = vmatprep.subr.mxu0 0.0
        %758 = vmatpush1.msra.mxu0 0.0
        %759 = vmatprep.subr.mxu0 0.0
        %760 = vmatpush1.msra.mxu0 0.0
        %761 = vmatprep.subr.mxu0 0.0
        %762 = vmatpush1.msra.mxu0 0.0
        %763 = vmatprep.subr.mxu0 0.0
        %764 = vmatpush1.msra.mxu0 0.0
        %765 = vmatprep.subr.mxu0 0.0
        %766 = vmatpush1.msra.mxu0 0.0
        %767 = vmatprep.subr.mxu0 0.0
        %768 = vmatpush1.msra.mxu0 0.0
        %769 = vmatprep.subr.mxu0 0.0
        %770 = vmatpush1.msra.mxu0 0.0
        %771 = vmatprep.subr.mxu0 0.0
        %772 = vmatpush1.msra.mxu0 0.0
        %773 = vmatprep.mubr.f32.mxu0 0.0
        %774 = vmatmul.mubr.f32.gmra.mrb[0].mxu0 %v683
        %v775 = vpop.f32.mrb[0].mxu0
        %v776 = vadd.f32 %v707, %v775
        %v777 = vpop.f32.mrb[0].mxu0
        %778 = vdwg.mxu0
        %v779 = vtanh.pop %v776
        %v780 = vadd.f32 %v779, %v587
        %s781 = scalar_lea.vmem [#allocation2], 256
        %v782 = vld [vmem:[%s781] sm:$0xff]
        %v783 = vld [vmem:[%s781 + $0x8] sm:$0xff]
        %v784 = vld [vmem:[%s781 + $0x10] sm:$0xff]
        %v785 = vld [vmem:[%s781 + $0x18] sm:$0xff]
        %v786 = vld [vmem:[%s781 + $0x20] sm:$0xff]
        %v787 = vld [vmem:[%s781 + $0x28] sm:$0xff]
        %v788 = vld [vmem:[%s781 + $0x30] sm:$0xff]
        %v789 = vld [vmem:[%s781 + $0x38] sm:$0xff]
        %v790 = vld [vmem:[%s781 + $0x40] sm:$0xff]
        %v791 = vld [vmem:[%s781 + $0x48] sm:$0xff]
        %v792 = vld [vmem:[%s781 + $0x50] sm:$0xff]
        %v793 = vld [vmem:[%s781 + $0x58] sm:$0xff]
        %v794 = vld [vmem:[%s781 + $0x60] sm:$0xff]
        %v795 = vld [vmem:[%s781 + $0x68] sm:$0xff]
        %v796 = vld [vmem:[%s781 + $0x70] sm:$0xff]
        %v797 = vld [vmem:[%s781 + $0x78] sm:$0xff]
        %s798 = scalar_lea.vmem %s2, 2
        %v799 = vld [vmem:[%s798] sm:$0x1]
        %v801 = vlaneseq
        %v802 = vshrl.u32 %v801, 7
        %v803 = vsub.s32 0, %v802
        %v804 = vrot.slane %v799, %v803
        %806 = vmatprep.subr.mxu0 0.0
        %807 = vmatpush1.msra.mxu0 %v782
        %808 = vmatprep.subr.mxu0 0.0
        %809 = vmatpush1.msra.mxu0 %v783
        %810 = vmatprep.subr.mxu0 0.0
        %811 = vmatpush1.msra.mxu0 %v784
        %812 = vmatprep.subr.mxu0 0.0
        %813 = vmatpush1.msra.mxu0 %v785
        %814 = vmatprep.subr.mxu0 0.0
        %815 = vmatpush1.msra.mxu0 %v786
        %816 = vmatprep.subr.mxu0 0.0
        %817 = vmatpush1.msra.mxu0 %v787
        %818 = vmatprep.subr.mxu0 0.0
        %819 = vmatpush1.msra.mxu0 %v788
        %820 = vmatprep.subr.mxu0 0.0
        %821 = vmatpush1.msra.mxu0 %v789
        %822 = vmatprep.subr.mxu0 0.0
        %823 = vmatpush1.msra.mxu0 %v790
        %824 = vmatprep.subr.mxu0 0.0
        %825 = vmatpush1.msra.mxu0 %v791
        %826 = vmatprep.subr.mxu0 0.0
        %827 = vmatpush1.msra.mxu0 %v792
        %828 = vmatprep.subr.mxu0 0.0
        %829 = vmatpush1.msra.mxu0 %v793
        %830 = vmatprep.subr.mxu0 0.0
        %831 = vmatpush1.msra.mxu0 %v794
        %832 = vmatprep.subr.mxu0 0.0
        %833 = vmatpush1.msra.mxu0 %v795
        %834 = vmatprep.subr.mxu0 0.0
        %835 = vmatpush1.msra.mxu0 %v796
        %836 = vmatprep.subr.mxu0 0.0
        %837 = vmatpush1.msra.mxu0 %v797
        %838 = vmatprep.subr.mxu0 0.0
        %839 = vmatpush1.msra.mxu0 0.0
        %840 = vmatprep.subr.mxu0 0.0
        %841 = vmatpush1.msra.mxu0 0.0
        %842 = vmatprep.subr.mxu0 0.0
        %843 = vmatpush1.msra.mxu0 0.0
        %844 = vmatprep.subr.mxu0 0.0
        %845 = vmatpush1.msra.mxu0 0.0
        %846 = vmatprep.subr.mxu0 0.0
        %847 = vmatpush1.msra.mxu0 0.0
        %848 = vmatprep.subr.mxu0 0.0
        %849 = vmatpush1.msra.mxu0 0.0
        %850 = vmatprep.subr.mxu0 0.0
        %851 = vmatpush1.msra.mxu0 0.0
        %852 = vmatprep.subr.mxu0 0.0
        %853 = vmatpush1.msra.mxu0 0.0
        %854 = vmatprep.subr.mxu0 0.0
        %855 = vmatpush1.msra.mxu0 0.0
        %856 = vmatprep.subr.mxu0 0.0
        %857 = vmatpush1.msra.mxu0 0.0
        %858 = vmatprep.subr.mxu0 0.0
        %859 = vmatpush1.msra.mxu0 0.0
        %860 = vmatprep.subr.mxu0 0.0
        %861 = vmatpush1.msra.mxu0 0.0
        %862 = vmatprep.subr.mxu0 0.0
        %863 = vmatpush1.msra.mxu0 0.0
        %864 = vmatprep.subr.mxu0 0.0
        %865 = vmatpush1.msra.mxu0 0.0
        %866 = vmatprep.subr.mxu0 0.0
        %867 = vmatpush1.msra.mxu0 0.0
        %868 = vmatprep.subr.mxu0 0.0
        %869 = vmatpush1.msra.mxu0 0.0
        %870 = vmatprep.mubr.f32.mxu0 0.0
        %871 = vmatmul.mubr.f32.gmra.mrb[0].mxu0 %v780
        %v872 = vpop.f32.mrb[0].mxu0
        %v873 = vadd.f32 %v804, %v872
        %v874 = vpop.f32.mrb[0].mxu0
        %875 = vdwg.mxu0
        %v876 = vtanh.pop %v873
        %s877 = scalar_lea.vmem [#allocation4], 256
        %v878 = vld [vmem:[%s877] sm:$0xff]
        %v879 = vld [vmem:[%s877 + $0x8] sm:$0xff]
        %v880 = vld [vmem:[%s877 + $0x10] sm:$0xff]
        %v881 = vld [vmem:[%s877 + $0x18] sm:$0xff]
        %v882 = vld [vmem:[%s877 + $0x20] sm:$0xff]
        %v883 = vld [vmem:[%s877 + $0x28] sm:$0xff]
        %v884 = vld [vmem:[%s877 + $0x30] sm:$0xff]
        %v885 = vld [vmem:[%s877 + $0x38] sm:$0xff]
        %v886 = vld [vmem:[%s877 + $0x40] sm:$0xff]
        %v887 = vld [vmem:[%s877 + $0x48] sm:$0xff]
        %v888 = vld [vmem:[%s877 + $0x50] sm:$0xff]
        %v889 = vld [vmem:[%s877 + $0x58] sm:$0xff]
        %v890 = vld [vmem:[%s877 + $0x60] sm:$0xff]
        %v891 = vld [vmem:[%s877 + $0x68] sm:$0xff]
        %v892 = vld [vmem:[%s877 + $0x70] sm:$0xff]
        %v893 = vld [vmem:[%s877 + $0x78] sm:$0xff]
        %s894 = scalar_lea.vmem %s4, 2
        %v895 = vld [vmem:[%s894] sm:$0x1]
        %v897 = vlaneseq
        %v898 = vshrl.u32 %v897, 7
        %v899 = vsub.s32 0, %v898
        %v900 = vrot.slane %v895, %v899
        %902 = vmatprep.subr.mxu0 0.0
        %903 = vmatpush1.msra.mxu0 %v878
        %904 = vmatprep.subr.mxu0 0.0
        %905 = vmatpush1.msra.mxu0 %v879
        %906 = vmatprep.subr.mxu0 0.0
        %907 = vmatpush1.msra.mxu0 %v880
        %908 = vmatprep.subr.mxu0 0.0
        %909 = vmatpush1.msra.mxu0 %v881
        %910 = vmatprep.subr.mxu0 0.0
        %911 = vmatpush1.msra.mxu0 %v882
        %912 = vmatprep.subr.mxu0 0.0
        %913 = vmatpush1.msra.mxu0 %v883
        %914 = vmatprep.subr.mxu0 0.0
        %915 = vmatpush1.msra.mxu0 %v884
        %916 = vmatprep.subr.mxu0 0.0
        %917 = vmatpush1.msra.mxu0 %v885
        %918 = vmatprep.subr.mxu0 0.0
        %919 = vmatpush1.msra.mxu0 %v886
        %920 = vmatprep.subr.mxu0 0.0
        %921 = vmatpush1.msra.mxu0 %v887
        %922 = vmatprep.subr.mxu0 0.0
        %923 = vmatpush1.msra.mxu0 %v888
        %924 = vmatprep.subr.mxu0 0.0
        %925 = vmatpush1.msra.mxu0 %v889
        %926 = vmatprep.subr.mxu0 0.0
        %927 = vmatpush1.msra.mxu0 %v890
        %928 = vmatprep.subr.mxu0 0.0
        %929 = vmatpush1.msra.mxu0 %v891
        %930 = vmatprep.subr.mxu0 0.0
        %931 = vmatpush1.msra.mxu0 %v892
        %932 = vmatprep.subr.mxu0 0.0
        %933 = vmatpush1.msra.mxu0 %v893
        %934 = vmatprep.subr.mxu0 0.0
        %935 = vmatpush1.msra.mxu0 0.0
        %936 = vmatprep.subr.mxu0 0.0
        %937 = vmatpush1.msra.mxu0 0.0
        %938 = vmatprep.subr.mxu0 0.0
        %939 = vmatpush1.msra.mxu0 0.0
        %940 = vmatprep.subr.mxu0 0.0
        %941 = vmatpush1.msra.mxu0 0.0
        %942 = vmatprep.subr.mxu0 0.0
        %943 = vmatpush1.msra.mxu0 0.0
        %944 = vmatprep.subr.mxu0 0.0
        %945 = vmatpush1.msra.mxu0 0.0
        %946 = vmatprep.subr.mxu0 0.0
        %947 = vmatpush1.msra.mxu0 0.0
        %948 = vmatprep.subr.mxu0 0.0
        %949 = vmatpush1.msra.mxu0 0.0
        %950 = vmatprep.subr.mxu0 0.0
        %951 = vmatpush1.msra.mxu0 0.0
        %952 = vmatprep.subr.mxu0 0.0
        %953 = vmatpush1.msra.mxu0 0.0
        %954 = vmatprep.subr.mxu0 0.0
        %955 = vmatpush1.msra.mxu0 0.0
        %956 = vmatprep.subr.mxu0 0.0
        %957 = vmatpush1.msra.mxu0 0.0
        %958 = vmatprep.subr.mxu0 0.0
        %959 = vmatpush1.msra.mxu0 0.0
        %960 = vmatprep.subr.mxu0 0.0
        %961 = vmatpush1.msra.mxu0 0.0
        %962 = vmatprep.subr.mxu0 0.0
        %963 = vmatpush1.msra.mxu0 0.0
        %964 = vmatprep.subr.mxu0 0.0
        %965 = vmatpush1.msra.mxu0 0.0
        %966 = vmatprep.mubr.f32.mxu0 0.0
        %967 = vmatmul.mubr.f32.gmra.mrb[0].mxu0 %v876
        %v968 = vpop.f32.mrb[0].mxu0
        %v969 = vadd.f32 %v900, %v968
        %v970 = vpop.f32.mrb[0].mxu0
        %971 = vdwg.mxu0
        %v972 = vtanh.pop %v969
        %v973 = vadd.f32 %v972, %v780
        %s974 = scalar_lea.vmem [#allocation2], 384
        %v975 = vld [vmem:[%s974] sm:$0xff]
        %v976 = vld [vmem:[%s974 + $0x8] sm:$0xff]
        %v977 = vld [vmem:[%s974 + $0x10] sm:$0xff]
        %v978 = vld [vmem:[%s974 + $0x18] sm:$0xff]
        %v979 = vld [vmem:[%s974 + $0x20] sm:$0xff]
        %v980 = vld [vmem:[%s974 + $0x28] sm:$0xff]
        %v981 = vld [vmem:[%s974 + $0x30] sm:$0xff]
        %v982 = vld [vmem:[%s974 + $0x38] sm:$0xff]
        %v983 = vld [vmem:[%s974 + $0x40] sm:$0xff]
        %v984 = vld [vmem:[%s974 + $0x48] sm:$0xff]
        %v985 = vld [vmem:[%s974 + $0x50] sm:$0xff]
        %v986 = vld [vmem:[%s974 + $0x58] sm:$0xff]
        %v987 = vld [vmem:[%s974 + $0x60] sm:$0xff]
        %v988 = vld [vmem:[%s974 + $0x68] sm:$0xff]
        %v989 = vld [vmem:[%s974 + $0x70] sm:$0xff]
        %v990 = vld [vmem:[%s974 + $0x78] sm:$0xff]
        %s991 = scalar_lea.vmem %s2, 3
        %v992 = vld [vmem:[%s991] sm:$0x1]
        %v994 = vlaneseq
        %v995 = vshrl.u32 %v994, 7
        %v996 = vsub.s32 0, %v995
        %v997 = vrot.slane %v992, %v996
        %999 = vmatprep.subr.mxu0 0.0
        %1000 = vmatpush1.msra.mxu0 %v975
        %1001 = vmatprep.subr.mxu0 0.0
        %1002 = vmatpush1.msra.mxu0 %v976
        %1003 = vmatprep.subr.mxu0 0.0
        %1004 = vmatpush1.msra.mxu0 %v977
        %1005 = vmatprep.subr.mxu0 0.0
        %1006 = vmatpush1.msra.mxu0 %v978
        %1007 = vmatprep.subr.mxu0 0.0
        %1008 = vmatpush1.msra.mxu0 %v979
        %1009 = vmatprep.subr.mxu0 0.0
        %1010 = vmatpush1.msra.mxu0 %v980
        %1011 = vmatprep.subr.mxu0 0.0
        %1012 = vmatpush1.msra.mxu0 %v981
        %1013 = vmatprep.subr.mxu0 0.0
        %1014 = vmatpush1.msra.mxu0 %v982
        %1015 = vmatprep.subr.mxu0 0.0
        %1016 = vmatpush1.msra.mxu0 %v983
        %1017 = vmatprep.subr.mxu0 0.0
        %1018 = vmatpush1.msra.mxu0 %v984
        %1019 = vmatprep.subr.mxu0 0.0
        %1020 = vmatpush1.msra.mxu0 %v985
        %1021 = vmatprep.subr.mxu0 0.0
        %1022 = vmatpush1.msra.mxu0 %v986
        %1023 = vmatprep.subr.mxu0 0.0
        %1024 = vmatpush1.msra.mxu0 %v987
        %1025 = vmatprep.subr.mxu0 0.0
        %1026 = vmatpush1.msra.mxu0 %v988
        %1027 = vmatprep.subr.mxu0 0.0
        %1028 = vmatpush1.msra.mxu0 %v989
        %1029 = vmatprep.subr.mxu0 0.0
        %1030 = vmatpush1.msra.mxu0 %v990
        %1031 = vmatprep.subr.mxu0 0.0
        %1032 = vmatpush1.msra.mxu0 0.0
        %1033 = vmatprep.subr.mxu0 0.0
        %1034 = vmatpush1.msra.mxu0 0.0
        %1035 = vmatprep.subr.mxu0 0.0
        %1036 = vmatpush1.msra.mxu0 0.0
        %1037 = vmatprep.subr.mxu0 0.0
        %1038 = vmatpush1.msra.mxu0 0.0
        %1039 = vmatprep.subr.mxu0 0.0
        %1040 = vmatpush1.msra.mxu0 0.0
        %1041 = vmatprep.subr.mxu0 0.0
        %1042 = vmatpush1.msra.mxu0 0.0
        %1043 = vmatprep.subr.mxu0 0.0
        %1044 = vmatpush1.msra.mxu0 0.0
        %1045 = vmatprep.subr.mxu0 0.0
        %1046 = vmatpush1.msra.mxu0 0.0
        %1047 = vmatprep.subr.mxu0 0.0
        %1048 = vmatpush1.msra.mxu0 0.0
        %1049 = vmatprep.subr.mxu0 0.0
        %1050 = vmatpush1.msra.mxu0 0.0
        %1051 = vmatprep.subr.mxu0 0.0
        %1052 = vmatpush1.msra.mxu0 0.0
        %1053 = vmatprep.subr.mxu0 0.0
        %1054 = vmatpush1.msra.mxu0 0.0
        %1055 = vmatprep.subr.mxu0 0.0
        %1056 = vmatpush1.msra.mxu0 0.0
        %1057 = vmatprep.subr.mxu0 0.0
        %1058 = vmatpush1.msra.mxu0 0.0
        %1059 = vmatprep.subr.mxu0 0.0
        %1060 = vmatpush1.msra.mxu0 0.0
        %1061 = vmatprep.subr.mxu0 0.0
        %1062 = vmatpush1.msra.mxu0 0.0
        %1063 = vmatprep.mubr.f32.mxu0 0.0
        %1064 = vmatmul.mubr.f32.gmra.mrb[0].mxu0 %v973
        %v1065 = vpop.f32.mrb[0].mxu0
        %v1066 = vadd.f32 %v997, %v1065
        %v1067 = vpop.f32.mrb[0].mxu0
        %1068 = vdwg.mxu0
        %v1069 = vtanh.pop %v1066
        %s1070 = scalar_lea.vmem [#allocation4], 384
        %v1071 = vld [vmem:[%s1070] sm:$0xff]
        %v1072 = vld [vmem:[%s1070 + $0x8] sm:$0xff]
        %v1073 = vld [vmem:[%s1070 + $0x10] sm:$0xff]
        %v1074 = vld [vmem:[%s1070 + $0x18] sm:$0xff]
        %v1075 = vld [vmem:[%s1070 + $0x20] sm:$0xff]
        %v1076 = vld [vmem:[%s1070 + $0x28] sm:$0xff]
        %v1077 = vld [vmem:[%s1070 + $0x30] sm:$0xff]
        %v1078 = vld [vmem:[%s1070 + $0x38] sm:$0xff]
        %v1079 = vld [vmem:[%s1070 + $0x40] sm:$0xff]
        %v1080 = vld [vmem:[%s1070 + $0x48] sm:$0xff]
        %v1081 = vld [vmem:[%s1070 + $0x50] sm:$0xff]
        %v1082 = vld [vmem:[%s1070 + $0x58] sm:$0xff]
        %v1083 = vld [vmem:[%s1070 + $0x60] sm:$0xff]
        %v1084 = vld [vmem:[%s1070 + $0x68] sm:$0xff]
        %v1085 = vld [vmem:[%s1070 + $0x70] sm:$0xff]
        %v1086 = vld [vmem:[%s1070 + $0x78] sm:$0xff]
        %s1087 = scalar_lea.vmem %s4, 3
        %v1088 = vld [vmem:[%s1087] sm:$0x1]
        %v1090 = vlaneseq
        %v1091 = vshrl.u32 %v1090, 7
        %v1092 = vsub.s32 0, %v1091
        %v1093 = vrot.slane %v1088, %v1092
        %1095 = vmatprep.subr.mxu0 0.0
        %1096 = vmatpush1.msra.mxu0 %v1071
        %1097 = vmatprep.subr.mxu0 0.0
        %1098 = vmatpush1.msra.mxu0 %v1072
        %1099 = vmatprep.subr.mxu0 0.0
        %1100 = vmatpush1.msra.mxu0 %v1073
        %1101 = vmatprep.subr.mxu0 0.0
        %1102 = vmatpush1.msra.mxu0 %v1074
        %1103 = vmatprep.subr.mxu0 0.0
        %1104 = vmatpush1.msra.mxu0 %v1075
        %1105 = vmatprep.subr.mxu0 0.0
        %1106 = vmatpush1.msra.mxu0 %v1076
        %1107 = vmatprep.subr.mxu0 0.0
        %1108 = vmatpush1.msra.mxu0 %v1077
        %1109 = vmatprep.subr.mxu0 0.0
        %1110 = vmatpush1.msra.mxu0 %v1078
        %1111 = vmatprep.subr.mxu0 0.0
        %1112 = vmatpush1.msra.mxu0 %v1079
        %1113 = vmatprep.subr.mxu0 0.0
        %1114 = vmatpush1.msra.mxu0 %v1080
        %1115 = vmatprep.subr.mxu0 0.0
        %1116 = vmatpush1.msra.mxu0 %v1081
        %1117 = vmatprep.subr.mxu0 0.0
        %1118 = vmatpush1.msra.mxu0 %v1082
        %1119 = vmatprep.subr.mxu0 0.0
        %1120 = vmatpush1.msra.mxu0 %v1083
        %1121 = vmatprep.subr.mxu0 0.0
        %1122 = vmatpush1.msra.mxu0 %v1084
        %1123 = vmatprep.subr.mxu0 0.0
        %1124 = vmatpush1.msra.mxu0 %v1085
        %1125 = vmatprep.subr.mxu0 0.0
        %1126 = vmatpush1.msra.mxu0 %v1086
        %1127 = vmatprep.subr.mxu0 0.0
        %1128 = vmatpush1.msra.mxu0 0.0
        %1129 = vmatprep.subr.mxu0 0.0
        %1130 = vmatpush1.msra.mxu0 0.0
        %1131 = vmatprep.subr.mxu0 0.0
        %1132 = vmatpush1.msra.mxu0 0.0
        %1133 = vmatprep.subr.mxu0 0.0
        %1134 = vmatpush1.msra.mxu0 0.0
        %1135 = vmatprep.subr.mxu0 0.0
        %1136 = vmatpush1.msra.mxu0 0.0
        %1137 = vmatprep.subr.mxu0 0.0
        %1138 = vmatpush1.msra.mxu0 0.0
        %1139 = vmatprep.subr.mxu0 0.0
        %1140 = vmatpush1.msra.mxu0 0.0
        %1141 = vmatprep.subr.mxu0 0.0
        %1142 = vmatpush1.msra.mxu0 0.0
        %1143 = vmatprep.subr.mxu0 0.0
        %1144 = vmatpush1.msra.mxu0 0.0
        %1145 = vmatprep.subr.mxu0 0.0
        %1146 = vmatpush1.msra.mxu0 0.0
        %1147 = vmatprep.subr.mxu0 0.0
        %1148 = vmatpush1.msra.mxu0 0.0
        %1149 = vmatprep.subr.mxu0 0.0
        %1150 = vmatpush1.msra.mxu0 0.0
        %1151 = vmatprep.subr.mxu0 0.0
        %1152 = vmatpush1.msra.mxu0 0.0
        %1153 = vmatprep.subr.mxu0 0.0
        %1154 = vmatpush1.msra.mxu0 0.0
        %1155 = vmatprep.subr.mxu0 0.0
        %1156 = vmatpush1.msra.mxu0 0.0
        %1157 = vmatprep.subr.mxu0 0.0
        %1158 = vmatpush1.msra.mxu0 0.0
        %1159 = vmatprep.mubr.f32.mxu0 0.0
        %1160 = vmatmul.mubr.f32.gmra.mrb[0].mxu0 %v1069
        %v1161 = vpop.f32.mrb[0].mxu0
        %v1162 = vadd.f32 %v1093, %v1161
        %v1163 = vpop.f32.mrb[0].mxu0
        %1164 = vdwg.mxu0
        %v1165 = vtanh.pop %v1162
        %v1166 = vadd.f32 %v1165, %v973
        %v1167 = vld [vmem:[#allocation6] sm:$0xff]
        %v1168 = vld [vmem:[#allocation6 + $0x8] sm:$0xff]
        %v1169 = vld [vmem:[#allocation6 + $0x10] sm:$0xff]
        %v1170 = vld [vmem:[#allocation6 + $0x18] sm:$0xff]
        %v1171 = vld [vmem:[#allocation6 + $0x20] sm:$0xff]
        %v1172 = vld [vmem:[#allocation6 + $0x28] sm:$0xff]
        %v1173 = vld [vmem:[#allocation6 + $0x30] sm:$0xff]
        %v1174 = vld [vmem:[#allocation6 + $0x38] sm:$0xff]
        %v1175 = vld [vmem:[#allocation6 + $0x40] sm:$0xff]
        %v1176 = vld [vmem:[#allocation6 + $0x48] sm:$0xff]
        %v1177 = vld [vmem:[#allocation6 + $0x50] sm:$0xff]
        %v1178 = vld [vmem:[#allocation6 + $0x58] sm:$0xff]
        %v1179 = vld [vmem:[#allocation6 + $0x60] sm:$0xff]
        %v1180 = vld [vmem:[#allocation6 + $0x68] sm:$0xff]
        %v1181 = vld [vmem:[#allocation6 + $0x70] sm:$0xff]
        %v1182 = vld [vmem:[#allocation6 + $0x78] sm:$0xff]
        %v1183 = vld [vmem:[%s6] sm:$0x1]
        %v1185 = vlaneseq
        %v1186 = vshrl.u32 %v1185, 7
        %v1187 = vsub.s32 0, %v1186
        %v1188 = vrot.slane %v1183, %v1187
        %1190 = vmatprep.subr.mxu0 0.0
        %1191 = vmatpush1.msra.mxu0 %v1167
        %1192 = vmatprep.subr.mxu0 0.0
        %1193 = vmatpush1.msra.mxu0 %v1168
        %1194 = vmatprep.subr.mxu0 0.0
        %1195 = vmatpush1.msra.mxu0 %v1169
        %1196 = vmatprep.subr.mxu0 0.0
        %1197 = vmatpush1.msra.mxu0 %v1170
        %1198 = vmatprep.subr.mxu0 0.0
        %1199 = vmatpush1.msra.mxu0 %v1171
        %1200 = vmatprep.subr.mxu0 0.0
        %1201 = vmatpush1.msra.mxu0 %v1172
        %1202 = vmatprep.subr.mxu0 0.0
        %1203 = vmatpush1.msra.mxu0 %v1173
        %1204 = vmatprep.subr.mxu0 0.0
        %1205 = vmatpush1.msra.mxu0 %v1174
        %1206 = vmatprep.subr.mxu0 0.0
        %1207 = vmatpush1.msra.mxu0 %v1175
        %1208 = vmatprep.subr.mxu0 0.0
        %1209 = vmatpush1.msra.mxu0 %v1176
        %1210 = vmatprep.subr.mxu0 0.0
        %1211 = vmatpush1.msra.mxu0 %v1177
        %1212 = vmatprep.subr.mxu0 0.0
        %1213 = vmatpush1.msra.mxu0 %v1178
        %1214 = vmatprep.subr.mxu0 0.0
        %1215 = vmatpush1.msra.mxu0 %v1179
        %1216 = vmatprep.subr.mxu0 0.0
        %1217 = vmatpush1.msra.mxu0 %v1180
        %1218 = vmatprep.subr.mxu0 0.0
        %1219 = vmatpush1.msra.mxu0 %v1181
        %1220 = vmatprep.subr.mxu0 0.0
        %1221 = vmatpush1.msra.mxu0 %v1182
        %1222 = vmatprep.subr.mxu0 0.0
        %1223 = vmatpush1.msra.mxu0 0.0
        %1224 = vmatprep.subr.mxu0 0.0
        %1225 = vmatpush1.msra.mxu0 0.0
        %1226 = vmatprep.subr.mxu0 0.0
        %1227 = vmatpush1.msra.mxu0 0.0
        %1228 = vmatprep.subr.mxu0 0.0
        %1229 = vmatpush1.msra.mxu0 0.0
        %1230 = vmatprep.subr.mxu0 0.0
        %1231 = vmatpush1.msra.mxu0 0.0
        %1232 = vmatprep.subr.mxu0 0.0
        %1233 = vmatpush1.msra.mxu0 0.0
        %1234 = vmatprep.subr.mxu0 0.0
        %1235 = vmatpush1.msra.mxu0 0.0
        %1236 = vmatprep.subr.mxu0 0.0
        %1237 = vmatpush1.msra.mxu0 0.0
        %1238 = vmatprep.subr.mxu0 0.0
        %1239 = vmatpush1.msra.mxu0 0.0
        %1240 = vmatprep.subr.mxu0 0.0
        %1241 = vmatpush1.msra.mxu0 0.0
        %1242 = vmatprep.subr.mxu0 0.0
        %1243 = vmatpush1.msra.mxu0 0.0
        %1244 = vmatprep.subr.mxu0 0.0
        %1245 = vmatpush1.msra.mxu0 0.0
        %1246 = vmatprep.subr.mxu0 0.0
        %1247 = vmatpush1.msra.mxu0 0.0
        %1248 = vmatprep.subr.mxu0 0.0
        %1249 = vmatpush1.msra.mxu0 0.0
        %1250 = vmatprep.subr.mxu0 0.0
        %1251 = vmatpush1.msra.mxu0 0.0
        %1252 = vmatprep.subr.mxu0 0.0
        %1253 = vmatpush1.msra.mxu0 0.0
        %1254 = vmatprep.mubr.f32.mxu0 0.0
        %1255 = vmatmul.mubr.f32.gmra.mrb[0].mxu0 %v1166
        %v1256 = vpop.f32.mrb[0].mxu0
        %v1257 = vadd.f32 %v1188, %v1256
        %v1258 = vpop.f32.mrb[0].mxu0
        %1259 = vdwg.mxu0
        %vm1260 = vcmask 7168
        %1261 = vst.msk [vmem:[%s317] sm:$0xff] %vm1260, %v1257
        %p1262 = scmp.lt.s32.totalorder %s20, 1
        %s1263 = scalar_select %p1262, %s20, 1
        %s1264 = smul.addr %s1263, 8
        %s1265 = scalar_lea.vmem %s7, %s1264
        // Predicated region
        $region61: #{tpu_custom_call.1} parent=47 // pred_check
          %p1266 = pneg %p190
        $region62: #{tpu_custom_call.1} parent=47 // pred_check_branch
          %1268 = sbr.rel (%p1266) target = $region64
        $region63: #{tpu_custom_call.1} parent=47 // pred_region
          _
        $region64: #{tpu_custom_call.1} parent=47 // pred_fallthru
          _
      $region48: #{tpu_custom_call.1} parent=5 // pred_fallthru
        _
      %p1269 = scmp.le.s32.totalorder 2, %s15
      // Predicated region
      $region65: #{tpu_custom_call.1} parent=5 // pred_check
        %p1270 = pneg %p1269
      $region66: #{tpu_custom_call.1} parent=5 // pred_check_branch
        %1272 = sbr.rel (%p1270) target = $region68
      $region67: #{tpu_custom_call.1} parent=5 // pred_region
        %s1273 = ssub.s32 %s15, 2
        // Predicated region
        $region69: #{tpu_custom_call.1} parent=67 // pred_check
          %p1274 = pneg %p196
        $region70: #{tpu_custom_call.1} parent=67 // pred_check_branch
          %1276 = sbr.rel (%p1274) target = $region72
        $region71: #{tpu_custom_call.1} parent=67 // pred_region
          %p1277 = scmp.lt.s32.totalorder %s21, 1
          %s1278 = scalar_select %p1277, %s21, 1
          %s1279 = smul.addr %s1278, 8
          %s1280 = scalar_lea.vmem %s7, %s1279
        $region72: #{tpu_custom_call.1} parent=67 // pred_fallthru
          _
      $region68: #{tpu_custom_call.1} parent=5 // pred_fallthru
        _
    $region6: #{tpu_custom_call.1} parent=1 // loop_footer
      %s19 = sadd.s32 1, %s15
    $region7: #{tpu_custom_call.1} parent=1 // loop_footer_branch
      %14 = sbr.rel target = $region3
    $region8: #{tpu_custom_call.1} parent=1 // loop_exit
      _
    %1281 = vsyncpa [#allocation3], 1
    %s1282 = scalar_lea.sflag [#allocation3], 1
    %1283 = vsyncpa %s1282, 1
    %1284 = vsyncpa [#allocation5], 1

</llo_original>
